<compile_context>
chip_gen: v7x
topology: tpu7x:2x2x1
jax: 0.10.0
libtpu: 0.0.40
codegen_flags: <defaults>
</compile_context>

<pallas_src>
import jax
import jax.numpy as jnp
from jax.experimental import pallas as pl
from jax.experimental.pallas import tpu as pltpu

NUM_HEADS = 8
LN_EPS = 1e-5
SCALE = 1.0e6


# ------------------------------ fused model kernel --------------------------- #

def make_model_kernel(num_heads, head_dim, compute_dtype):
    inv_sqrt_d = 1.0 / float(head_dim) ** 0.5

    def kernel(x_ref, avg_ref,
               wqkv1_ref, wo1_ref, w11_ref, b11_ref, w21_ref, b21_ref,
               wqkv2_ref, wo2_ref, w12_ref, b12_ref, w22_ref, b22_ref,
               o_ref):
        # Precomputed block-diagonal averaging matrix (symmetric):
        # A[p, p'] = 1/W if p//W == p'//W else 0  ->  mean over each W-lane group.
        A = avg_ref[...]                                            # (HW, HW) f32

        def group_mean(t):            # per-W-group mean, broadcast back (single MXU op)
            return jnp.dot(t, A, preferred_element_type=jnp.float32)

        def layernorm_w(t, eps):      # LayerNorm (no affine) over W lane-groups
            mu = group_mean(t)
            diff = t - mu
            var = group_mean(diff * diff)
            return diff * jax.lax.rsqrt(var + eps)

        def mm(w_ref, act):           # weight @ activation; bf16 MXU inputs on v6e/v7x
            return jnp.dot(w_ref[...].astype(compute_dtype),
                           act.astype(compute_dtype),
                           preferred_element_type=jnp.float32)

        def conv_block(x_in, total_scale,
                       wqkv_ref, wo_ref, w1_ref, b1_ref, w2_ref, b2_ref):
            # torch: x = x_in * total_scale = identity; x_norm = norm1(x).
            # LN is scale-invariant, so stats are computed on the unscaled input
            # with eps rescaled (same math, far better f32 conditioning).
            xn = layernorm_w(x_in, LN_EPS / (total_scale * total_scale))

            qkv = mm(wqkv_ref, xn)                                  # (3C, HW) fused Q|K|V

            def part(t, d):           # (num_heads, HW), 8-sublane aligned static slice
                r0 = (t * head_dim + d) * num_heads
                return qkv[r0:r0 + num_heads, :]

            # Cross-head attention at every position.  Only `e` stays live as an
            # (nh, nh, HW) tensor; no max-subtraction (s is O(1), exp cannot overflow);
            # softmax reciprocal applied after the m-sum on (nh, HW) tensors only.
            s = part(0, 0)[:, None, :] * part(1, 0)[None, :, :]
            for d in range(1, head_dim):
                s = s + part(0, d)[:, None, :] * part(1, d)[None, :, :]
            e = jnp.exp(s * inv_sqrt_d)                             # (nh, nh, HW)
            inv_den = pl.reciprocal(jnp.sum(e, axis=1), approx=True)  # (nh, HW) on the EUP
            # x_attn rows packed as (d, n); wo_ref columns are pre-permuted to match.
            x_attn = jnp.concatenate(
                [jnp.sum(e * part(2, d)[None, :, :], axis=1) * inv_den
                 for d in range(head_dim)], axis=0)                 # (C, HW)

            attn_out = mm(wo_ref, x_attn)
            y = jnp.maximum(xn + attn_out, 0.0)                     # x_norm + attn, relu

            h = jnp.maximum(mm(w1_ref, y) + b1_ref[...], 0.0)       # ffn1 + relu  (4C, HW)
            z = mm(w2_ref, h) + b2_ref[...]                         # ffn2         (C, HW)

            # norm2 + identity shortcut (scaled pre-norm input) + relu + floor-div.
            out = jnp.maximum(layernorm_w(z, LN_EPS) + x_in * total_scale, 0.0)
            return jnp.floor(out / SCALE)                           # block-level // 1e6

        x_in = x_ref[...]                                           # (C, HW)
        # Block 1 absorbs the model-level leading *1e6 (total scale 1e6*1e6).
        y1 = conv_block(x_in, SCALE * SCALE,
                        wqkv1_ref, wo1_ref, w11_ref, b11_ref, w21_ref, b21_ref)
        y2 = conv_block(y1, SCALE,
                        wqkv2_ref, wo2_ref, w12_ref, b12_ref, w22_ref, b22_ref)
        o_ref[...] = jnp.floor(y2 / SCALE)                          # model-level // 1e6

    return kernel


# ------------------------------ pallas_call wrapper -------------------------- #

def _matmul_dtype():
    # bf16 MXU inputs halve the emulated-f32 matmul passes on v6e/v7x; keep f32 on v5
    # (values fed to the MXU are O(1) after LayerNorm, so bf16 is numerically safe).
    try:
        kind = jax.devices()[0].device_kind.lower()
    except Exception:
        return jnp.bfloat16
    return jnp.float32 if "v5" in kind else jnp.bfloat16


def _group_averaging_matrix(hw, w_dim):
    p = jnp.arange(hw, dtype=jnp.int32)
    same = (p[:, None] // w_dim) == (p[None, :] // w_dim)
    return same.astype(jnp.float32) / float(w_dim)                  # (HW, HW), symmetric


def transformer_model_forward(x, blocks):
    # TransformerModel.forward: x*1e6 -> layer1 (2 TransformerConvBlocks) -> x//1e6,
    # all fused into a single pallas_call.
    B, C, H, W = x.shape
    assert W == C, "nn.LayerNorm(in_channels) applied to NCHW requires W == C"
    assert C % NUM_HEADS == 0
    HW = H * W
    hidden = blocks[0]["w1"].shape[0]
    compute_dtype = _matmul_dtype()

    # Free (layout-preserving) reshapes only: per batch, NCHW is already channel-major.
    x_r = x.reshape(B, C, HW)
    avg = _group_averaging_matrix(HW, W)

    kernel = make_model_kernel(NUM_HEADS, C // NUM_HEADS, compute_dtype)

    def full(shape):
        return pl.BlockSpec(shape, lambda b, _s=shape: (0,) * len(_s))

    def block_specs():
        return [full((3 * C, C)),      # packed W_Q|W_K|W_V (channel-major)
                full((C, C)),          # permuted W_O^T
                full((hidden, C)),     # ffn1.weight
                full((hidden, 1)),     # ffn1.bias
                full((C, hidden)),     # ffn2.weight
                full((C, 1))]          # ffn2.bias

    def block_args(p):
        return [p["wqkv"], p["wo"], p["w1"], p["b1"], p["w2"], p["b2"]]

    act_in = pl.BlockSpec((None, C, HW), lambda b: (b, 0, 0))
    act_out = pl.BlockSpec((None, C, HW), lambda b: (b, 0, 0))

    out = pl.pallas_call(
        kernel,
        out_shape=jax.ShapeDtypeStruct((B, C, HW), jnp.float32),
        grid=(B,),
        in_specs=[act_in, full((HW, HW))] + block_specs() + block_specs(),
        out_specs=act_out,
        compiler_params=pltpu.CompilerParams(
            # TODO(synk): on v7x, verify CORE_PARALLEL actually shards the batch grid
            # across both TensorCores; "parallel" is the safe default on every chip.
            dimension_semantics=("parallel",),
        ),
    )(x_r, avg, *block_args(blocks[0]), *block_args(blocks[1]))
    return out.reshape(B, C, H, W)


# --------------------------- parameter construction -------------------------- #

def _pack_heads_by_dim(w_cm, num_heads, head_dim):
    # rows of w_cm are indexed by n*head_dim + d; re-order to d*num_heads + n so the
    # kernel's per-head-dim slices are contiguous 8-sublane aligned tiles.
    C = w_cm.shape[0]
    return w_cm.reshape(num_heads, head_dim, -1).transpose(1, 0, 2).reshape(C, -1)


def _permute_wo_columns(wo, num_heads, head_dim):
    # wo is torch's W_O (num_heads*head_dim, C).  Returns W_O^T with its columns
    # permuted from (n*head_dim + d) to (d*num_heads + n) to match x_attn's packing.
    woT = wo.T                                                      # (C, nh*hd)
    rows = woT.shape[0]
    return woT.reshape(rows, num_heads, head_dim).transpose(0, 2, 1).reshape(rows, -1)


def init_block_params(key, C, num_heads):
    hd = C // num_heads
    hidden = 4 * C
    ks = jax.random.split(key, 6)
    wq = jax.random.uniform(ks[0], (num_heads, C, hd), jnp.float32, -0.1, 0.1)
    wk = jax.random.uniform(ks[1], (num_heads, C, hd), jnp.float32, -0.1, 0.1)
    # TODO(synk): W_V / ffn1.weight are partially overwritten from pretrained resnet
    # conv weights in load_conv_weights(); no checkpoint is available in-script, so
    # they keep the module's synthetic uniform init instead.
    wv = jax.random.uniform(ks[2], (num_heads, C, hd), jnp.float32, -0.1, 0.1)
    bo = (6.0 / (2.0 * C)) ** 0.5                                    # xavier_uniform
    wo = jax.random.uniform(ks[3], (num_heads * hd, C), jnp.float32, -bo, bo)
    b1w = 1.0 / (C ** 0.5)
    w1 = jax.random.uniform(ks[4], (hidden, C), jnp.float32, -b1w, b1w)
    b2w = 1.0 / (hidden ** 0.5)
    w2 = jax.random.uniform(ks[5], (C, hidden), jnp.float32, -b2w, b2w)

    # torch computes x(P,C) @ W.reshape(C, C); channel-major uses W^T @ x_cm with rows
    # re-packed (n, d) -> (d, n) so the kernel's per-head-dim slices stay aligned.
    wq_cm = _pack_heads_by_dim(wq.reshape(C, C).T, num_heads, hd)
    wk_cm = _pack_heads_by_dim(wk.reshape(C, C).T, num_heads, hd)
    wv_cm = _pack_heads_by_dim(wv.reshape(C, C).T, num_heads, hd)
    return {
        "wqkv": jnp.concatenate([wq_cm, wk_cm, wv_cm], axis=0),      # (3C, C)
        "wo": _permute_wo_columns(wo, num_heads, hd),                # (C, C)
        "w1": w1, "b1": jnp.zeros((hidden, 1), jnp.float32),
        "w2": w2, "b2": jnp.zeros((C, 1), jnp.float32),
    }


if __name__ == "__main__":
    # Small, self-consistent shapes: channels divisible by 8 heads, and W == C so that
    # nn.LayerNorm(in_channels) over the NCHW last axis is well-defined.
    B, C, H, W = 2, 16, 16, 16
    key = jax.random.PRNGKey(0)
    kx, k1, k2 = jax.random.split(key, 3)
    x = jax.random.normal(kx, (B, C, H, W), dtype=jnp.float32)
    blocks = [init_block_params(k1, C, NUM_HEADS),
              init_block_params(k2, C, NUM_HEADS)]   # resnet.layer1 has 2 blocks

    fwd = jax.jit(transformer_model_forward)
    out = jax.block_until_ready(fwd(x, blocks))
    assert out.shape == (B, C, H, W) and out.dtype == jnp.float32
    print("KERNEL_OK")
</pallas_src>

<mosaic_0001>
module attributes {stable_mosaic.version = 11 : i64} {
  func.func @kernel(%arg0: i32, %arg1: memref<1x16x256xf32, #tpu.memory_space<vmem>>, %arg2: memref<256x256xf32, #tpu.memory_space<vmem>>, %arg3: memref<48x16xf32, #tpu.memory_space<vmem>>, %arg4: memref<16x16xf32, #tpu.memory_space<vmem>>, %arg5: memref<64x16xf32, #tpu.memory_space<vmem>>, %arg6: memref<64x1xf32, #tpu.memory_space<vmem>>, %arg7: memref<16x64xf32, #tpu.memory_space<vmem>>, %arg8: memref<16x1xf32, #tpu.memory_space<vmem>>, %arg9: memref<48x16xf32, #tpu.memory_space<vmem>>, %arg10: memref<16x16xf32, #tpu.memory_space<vmem>>, %arg11: memref<64x16xf32, #tpu.memory_space<vmem>>, %arg12: memref<64x1xf32, #tpu.memory_space<vmem>>, %arg13: memref<16x64xf32, #tpu.memory_space<vmem>>, %arg14: memref<16x1xf32, #tpu.memory_space<vmem>>, %arg15: memref<1x16x256xf32, #tpu.memory_space<vmem>>) attributes {dimension_semantics = [#tpu.dimension_semantics<parallel>], iteration_bounds = array<i64: 2>, scalar_prefetch = 0 : i64, scratch_operands = 0 : i64, tpu.core_type = #tpu.core_type<tc>, window_params = [{transform_indices = @transform_0, window_bounds = array<i64: 1, 16, 256>}, {pipeline_mode = #tpu.pipeline_mode<synchronous>, transform_indices = @transform_1, window_bounds = array<i64: 256, 256>}, {pipeline_mode = #tpu.pipeline_mode<synchronous>, transform_indices = @transform_2, window_bounds = array<i64: 48, 16>}, {pipeline_mode = #tpu.pipeline_mode<synchronous>, transform_indices = @transform_3, window_bounds = array<i64: 16, 16>}, {pipeline_mode = #tpu.pipeline_mode<synchronous>, transform_indices = @transform_4, window_bounds = array<i64: 64, 16>}, {pipeline_mode = #tpu.pipeline_mode<synchronous>, transform_indices = @transform_5, window_bounds = array<i64: 64, 1>}, {pipeline_mode = #tpu.pipeline_mode<synchronous>, transform_indices = @transform_6, window_bounds = array<i64: 16, 64>}, {pipeline_mode = #tpu.pipeline_mode<synchronous>, transform_indices = @transform_7, window_bounds = array<i64: 16, 1>}, {pipeline_mode = #tpu.pipeline_mode<synchronous>, transform_indices = @transform_8, window_bounds = array<i64: 48, 16>}, {pipeline_mode = #tpu.pipeline_mode<synchronous>, transform_indices = @transform_9, window_bounds = array<i64: 16, 16>}, {pipeline_mode = #tpu.pipeline_mode<synchronous>, transform_indices = @transform_10, window_bounds = array<i64: 64, 16>}, {pipeline_mode = #tpu.pipeline_mode<synchronous>, transform_indices = @transform_11, window_bounds = array<i64: 64, 1>}, {pipeline_mode = #tpu.pipeline_mode<synchronous>, transform_indices = @transform_12, window_bounds = array<i64: 16, 64>}, {pipeline_mode = #tpu.pipeline_mode<synchronous>, transform_indices = @transform_13, window_bounds = array<i64: 16, 1>}, {transform_indices = @transform_14, window_bounds = array<i64: 1, 16, 256>}]} {
    %c0 = arith.constant 0 : index
    %c0_0 = arith.constant 0 : index
    %0 = vector.load %arg2[%c0, %c0_0] : memref<256x256xf32, #tpu.memory_space<vmem>>, vector<256x256xf32>
    %c0_1 = arith.constant 0 : index
    %c0_2 = arith.constant 0 : index
    %c0_3 = arith.constant 0 : index
    %1 = vector.load %arg1[%c0_1, %c0_2, %c0_3] : memref<1x16x256xf32, #tpu.memory_space<vmem>>, vector<1x16x256xf32>
    %2 = vector.shape_cast %1 : vector<1x16x256xf32> to vector<16x256xf32>
    %cst = arith.constant dense<0.000000e+00> : vector<16x256xf32>
    %3 = tpu.matmul %2, %0, %cst {dimension_numbers = #tpu.dot_dimension_numbers<[1], [0], [0], [1], [0, 0, 1, 1], [], []>} : vector<16x256xf32>, vector<256x256xf32>, vector<16x256xf32> -> vector<16x256xf32>
    %4 = arith.subf %2, %3 : vector<16x256xf32>
    %5 = arith.mulf %4, %4 : vector<16x256xf32>
    %cst_4 = arith.constant dense<0.000000e+00> : vector<16x256xf32>
    %6 = tpu.matmul %5, %0, %cst_4 {dimension_numbers = #tpu.dot_dimension_numbers<[1], [0], [0], [1], [0, 0, 1, 1], [], []>} : vector<16x256xf32>, vector<256x256xf32>, vector<16x256xf32> -> vector<16x256xf32>
    %cst_5 = arith.constant 1.000000e-29 : f32
    %7 = vector.broadcast %cst_5 : f32 to vector<16x256xf32>
    %8 = arith.addf %6, %7 : vector<16x256xf32>
    %9 = math.rsqrt %8 : vector<16x256xf32>
    %10 = arith.mulf %4, %9 : vector<16x256xf32>
    %c0_6 = arith.constant 0 : index
    %c0_7 = arith.constant 0 : index
    %11 = vector.load %arg3[%c0_6, %c0_7] : memref<48x16xf32, #tpu.memory_space<vmem>>, vector<48x16xf32>
    %12 = arith.truncf %11 : vector<48x16xf32> to vector<48x16xbf16>
    %13 = arith.truncf %10 : vector<16x256xf32> to vector<16x256xbf16>
    %cst_8 = arith.constant dense<0.000000e+00> : vector<48x256xf32>
    %14 = tpu.matmul %12, %13, %cst_8 {dimension_numbers = #tpu.dot_dimension_numbers<[1], [0], [0], [1], [0, 0, 1, 1], [], []>} : vector<48x16xbf16>, vector<16x256xbf16>, vector<48x256xf32> -> vector<48x256xf32>
    %15 = vector.extract_strided_slice %14 {offsets = [0, 0], sizes = [8, 256], strides = [1, 1]} : vector<48x256xf32> to vector<8x256xf32>
    %16 = vector.shape_cast %15 : vector<8x256xf32> to vector<8x1x256xf32>
    %17 = vector.extract_strided_slice %14 {offsets = [16, 0], sizes = [8, 256], strides = [1, 1]} : vector<48x256xf32> to vector<8x256xf32>
    %18 = vector.shape_cast %17 : vector<8x256xf32> to vector<1x8x256xf32>
    %19 = vector.broadcast %16 : vector<8x1x256xf32> to vector<8x8x256xf32>
    %20 = vector.broadcast %18 : vector<1x8x256xf32> to vector<8x8x256xf32>
    %21 = arith.mulf %19, %20 : vector<8x8x256xf32>
    %22 = vector.extract_strided_slice %14 {offsets = [8, 0], sizes = [8, 256], strides = [1, 1]} : vector<48x256xf32> to vector<8x256xf32>
    %23 = vector.shape_cast %22 : vector<8x256xf32> to vector<8x1x256xf32>
    %24 = vector.extract_strided_slice %14 {offsets = [24, 0], sizes = [8, 256], strides = [1, 1]} : vector<48x256xf32> to vector<8x256xf32>
    %25 = vector.shape_cast %24 : vector<8x256xf32> to vector<1x8x256xf32>
    %26 = vector.broadcast %23 : vector<8x1x256xf32> to vector<8x8x256xf32>
    %27 = vector.broadcast %25 : vector<1x8x256xf32> to vector<8x8x256xf32>
    %28 = arith.mulf %26, %27 : vector<8x8x256xf32>
    %29 = arith.addf %21, %28 : vector<8x8x256xf32>
    %cst_9 = arith.constant 0.707106769 : f32
    %30 = vector.broadcast %cst_9 : f32 to vector<8x8x256xf32>
    %31 = arith.mulf %29, %30 : vector<8x8x256xf32>
    %32 = math.exp %31 : vector<8x8x256xf32>
    %cst_10 = arith.constant dense<0.000000e+00> : vector<8x256xf32>
    %33 = vector.multi_reduction <add>, %32, %cst_10 [1] : vector<8x8x256xf32> to vector<8x256xf32>
    %34 = tpu.reciprocal %33 {approx = true} : vector<8x256xf32> -> vector<8x256xf32>
    %35 = vector.extract_strided_slice %14 {offsets = [32, 0], sizes = [8, 256], strides = [1, 1]} : vector<48x256xf32> to vector<8x256xf32>
    %36 = vector.shape_cast %35 : vector<8x256xf32> to vector<1x8x256xf32>
    %37 = vector.broadcast %36 : vector<1x8x256xf32> to vector<8x8x256xf32>
    %38 = arith.mulf %32, %37 : vector<8x8x256xf32>
    %cst_11 = arith.constant dense<0.000000e+00> : vector<8x256xf32>
    %39 = vector.multi_reduction <add>, %38, %cst_11 [1] : vector<8x8x256xf32> to vector<8x256xf32>
    %40 = arith.mulf %39, %34 : vector<8x256xf32>
    %41 = vector.extract_strided_slice %14 {offsets = [40, 0], sizes = [8, 256], strides = [1, 1]} : vector<48x256xf32> to vector<8x256xf32>
    %42 = vector.shape_cast %41 : vector<8x256xf32> to vector<1x8x256xf32>
    %43 = vector.broadcast %42 : vector<1x8x256xf32> to vector<8x8x256xf32>
    %44 = arith.mulf %32, %43 : vector<8x8x256xf32>
    %cst_12 = arith.constant dense<0.000000e+00> : vector<8x256xf32>
    %45 = vector.multi_reduction <add>, %44, %cst_12 [1] : vector<8x8x256xf32> to vector<8x256xf32>
    %46 = arith.mulf %45, %34 : vector<8x256xf32>
    %47 = tpu.concatenate %40, %46 in 0 : vector<8x256xf32>, vector<8x256xf32> -> vector<16x256xf32>
    %c0_13 = arith.constant 0 : index
    %c0_14 = arith.constant 0 : index
    %48 = vector.load %arg4[%c0_13, %c0_14] : memref<16x16xf32, #tpu.memory_space<vmem>>, vector<16x16xf32>
    %49 = arith.truncf %48 : vector<16x16xf32> to vector<16x16xbf16>
    %50 = arith.truncf %47 : vector<16x256xf32> to vector<16x256xbf16>
    %cst_15 = arith.constant dense<0.000000e+00> : vector<16x256xf32>
    %51 = tpu.matmul %49, %50, %cst_15 {dimension_numbers = #tpu.dot_dimension_numbers<[1], [0], [0], [1], [0, 0, 1, 1], [], []>} : vector<16x16xbf16>, vector<16x256xbf16>, vector<16x256xf32> -> vector<16x256xf32>
    %52 = arith.addf %10, %51 : vector<16x256xf32>
    %cst_16 = arith.constant 0.000000e+00 : f32
    %53 = vector.broadcast %cst_16 : f32 to vector<16x256xf32>
    %54 = arith.maximumf %52, %53 : vector<16x256xf32>
    %c0_17 = arith.constant 0 : index
    %c0_18 = arith.constant 0 : index
    %55 = vector.load %arg5[%c0_17, %c0_18] : memref<64x16xf32, #tpu.memory_space<vmem>>, vector<64x16xf32>
    %56 = arith.truncf %55 : vector<64x16xf32> to vector<64x16xbf16>
    %57 = arith.truncf %54 : vector<16x256xf32> to vector<16x256xbf16>
    %cst_19 = arith.constant dense<0.000000e+00> : vector<64x256xf32>
    %58 = tpu.matmul %56, %57, %cst_19 {dimension_numbers = #tpu.dot_dimension_numbers<[1], [0], [0], [1], [0, 0, 1, 1], [], []>} : vector<64x16xbf16>, vector<16x256xbf16>, vector<64x256xf32> -> vector<64x256xf32>
    %c0_20 = arith.constant 0 : index
    %c0_21 = arith.constant 0 : index
    %59 = vector.load %arg6[%c0_20, %c0_21] : memref<64x1xf32, #tpu.memory_space<vmem>>, vector<64x1xf32>
    %60 = vector.broadcast %59 : vector<64x1xf32> to vector<64x256xf32>
    %61 = arith.addf %58, %60 : vector<64x256xf32>
    %cst_22 = arith.constant 0.000000e+00 : f32
    %62 = vector.broadcast %cst_22 : f32 to vector<64x256xf32>
    %63 = arith.maximumf %61, %62 : vector<64x256xf32>
    %c0_23 = arith.constant 0 : index
    %c0_24 = arith.constant 0 : index
    %64 = vector.load %arg7[%c0_23, %c0_24] : memref<16x64xf32, #tpu.memory_space<vmem>>, vector<16x64xf32>
    %65 = arith.truncf %64 : vector<16x64xf32> to vector<16x64xbf16>
    %66 = arith.truncf %63 : vector<64x256xf32> to vector<64x256xbf16>
    %cst_25 = arith.constant dense<0.000000e+00> : vector<16x256xf32>
    %67 = tpu.matmul %65, %66, %cst_25 {dimension_numbers = #tpu.dot_dimension_numbers<[1], [0], [0], [1], [0, 0, 1, 1], [], []>} : vector<16x64xbf16>, vector<64x256xbf16>, vector<16x256xf32> -> vector<16x256xf32>
    %c0_26 = arith.constant 0 : index
    %c0_27 = arith.constant 0 : index
    %68 = vector.load %arg8[%c0_26, %c0_27] : memref<16x1xf32, #tpu.memory_space<vmem>>, vector<16x1xf32>
    %69 = vector.broadcast %68 : vector<16x1xf32> to vector<16x256xf32>
    %70 = arith.addf %67, %69 : vector<16x256xf32>
    %cst_28 = arith.constant dense<0.000000e+00> : vector<16x256xf32>
    %71 = tpu.matmul %70, %0, %cst_28 {dimension_numbers = #tpu.dot_dimension_numbers<[1], [0], [0], [1], [0, 0, 1, 1], [], []>} : vector<16x256xf32>, vector<256x256xf32>, vector<16x256xf32> -> vector<16x256xf32>
    %72 = arith.subf %70, %71 : vector<16x256xf32>
    %73 = arith.mulf %72, %72 : vector<16x256xf32>
    %cst_29 = arith.constant dense<0.000000e+00> : vector<16x256xf32>
    %74 = tpu.matmul %73, %0, %cst_29 {dimension_numbers = #tpu.dot_dimension_numbers<[1], [0], [0], [1], [0, 0, 1, 1], [], []>} : vector<16x256xf32>, vector<256x256xf32>, vector<16x256xf32> -> vector<16x256xf32>
    %cst_30 = arith.constant 9.99999974E-6 : f32
    %75 = vector.broadcast %cst_30 : f32 to vector<16x256xf32>
    %76 = arith.addf %74, %75 : vector<16x256xf32>
    %77 = math.rsqrt %76 : vector<16x256xf32>
    %78 = arith.mulf %72, %77 : vector<16x256xf32>
    %cst_31 = arith.constant 9.99999995E+11 : f32
    %79 = vector.broadcast %cst_31 : f32 to vector<16x256xf32>
    %80 = arith.mulf %2, %79 : vector<16x256xf32>
    %81 = arith.addf %78, %80 : vector<16x256xf32>
    %cst_32 = arith.constant 0.000000e+00 : f32
    %82 = vector.broadcast %cst_32 : f32 to vector<16x256xf32>
    %83 = arith.maximumf %81, %82 : vector<16x256xf32>
    %cst_33 = arith.constant 1.000000e+06 : f32
    %84 = vector.broadcast %cst_33 : f32 to vector<16x256xf32>
    %85 = arith.divf %83, %84 : vector<16x256xf32>
    %86 = math.floor %85 : vector<16x256xf32>
    %cst_34 = arith.constant dense<0.000000e+00> : vector<16x256xf32>
    %87 = tpu.matmul %86, %0, %cst_34 {dimension_numbers = #tpu.dot_dimension_numbers<[1], [0], [0], [1], [0, 0, 1, 1], [], []>} : vector<16x256xf32>, vector<256x256xf32>, vector<16x256xf32> -> vector<16x256xf32>
    %88 = arith.subf %86, %87 : vector<16x256xf32>
    %89 = arith.mulf %88, %88 : vector<16x256xf32>
    %cst_35 = arith.constant dense<0.000000e+00> : vector<16x256xf32>
    %90 = tpu.matmul %89, %0, %cst_35 {dimension_numbers = #tpu.dot_dimension_numbers<[1], [0], [0], [1], [0, 0, 1, 1], [], []>} : vector<16x256xf32>, vector<256x256xf32>, vector<16x256xf32> -> vector<16x256xf32>
    %cst_36 = arith.constant 1.000000e-17 : f32
    %91 = vector.broadcast %cst_36 : f32 to vector<16x256xf32>
    %92 = arith.addf %90, %91 : vector<16x256xf32>
    %93 = math.rsqrt %92 : vector<16x256xf32>
    %94 = arith.mulf %88, %93 : vector<16x256xf32>
    %c0_37 = arith.constant 0 : index
    %c0_38 = arith.constant 0 : index
    %95 = vector.load %arg9[%c0_37, %c0_38] : memref<48x16xf32, #tpu.memory_space<vmem>>, vector<48x16xf32>
    %96 = arith.truncf %95 : vector<48x16xf32> to vector<48x16xbf16>
    %97 = arith.truncf %94 : vector<16x256xf32> to vector<16x256xbf16>
    %cst_39 = arith.constant dense<0.000000e+00> : vector<48x256xf32>
    %98 = tpu.matmul %96, %97, %cst_39 {dimension_numbers = #tpu.dot_dimension_numbers<[1], [0], [0], [1], [0, 0, 1, 1], [], []>} : vector<48x16xbf16>, vector<16x256xbf16>, vector<48x256xf32> -> vector<48x256xf32>
    %99 = vector.extract_strided_slice %98 {offsets = [0, 0], sizes = [8, 256], strides = [1, 1]} : vector<48x256xf32> to vector<8x256xf32>
    %100 = vector.shape_cast %99 : vector<8x256xf32> to vector<8x1x256xf32>
    %101 = vector.extract_strided_slice %98 {offsets = [16, 0], sizes = [8, 256], strides = [1, 1]} : vector<48x256xf32> to vector<8x256xf32>
    %102 = vector.shape_cast %101 : vector<8x256xf32> to vector<1x8x256xf32>
    %103 = vector.broadcast %100 : vector<8x1x256xf32> to vector<8x8x256xf32>
    %104 = vector.broadcast %102 : vector<1x8x256xf32> to vector<8x8x256xf32>
    %105 = arith.mulf %103, %104 : vector<8x8x256xf32>
    %106 = vector.extract_strided_slice %98 {offsets = [8, 0], sizes = [8, 256], strides = [1, 1]} : vector<48x256xf32> to vector<8x256xf32>
    %107 = vector.shape_cast %106 : vector<8x256xf32> to vector<8x1x256xf32>
    %108 = vector.extract_strided_slice %98 {offsets = [24, 0], sizes = [8, 256], strides = [1, 1]} : vector<48x256xf32> to vector<8x256xf32>
    %109 = vector.shape_cast %108 : vector<8x256xf32> to vector<1x8x256xf32>
    %110 = vector.broadcast %107 : vector<8x1x256xf32> to vector<8x8x256xf32>
    %111 = vector.broadcast %109 : vector<1x8x256xf32> to vector<8x8x256xf32>
    %112 = arith.mulf %110, %111 : vector<8x8x256xf32>
    %113 = arith.addf %105, %112 : vector<8x8x256xf32>
    %cst_40 = arith.constant 0.707106769 : f32
    %114 = vector.broadcast %cst_40 : f32 to vector<8x8x256xf32>
    %115 = arith.mulf %113, %114 : vector<8x8x256xf32>
    %116 = math.exp %115 : vector<8x8x256xf32>
    %cst_41 = arith.constant dense<0.000000e+00> : vector<8x256xf32>
    %117 = vector.multi_reduction <add>, %116, %cst_41 [1] : vector<8x8x256xf32> to vector<8x256xf32>
    %118 = tpu.reciprocal %117 {approx = true} : vector<8x256xf32> -> vector<8x256xf32>
    %119 = vector.extract_strided_slice %98 {offsets = [32, 0], sizes = [8, 256], strides = [1, 1]} : vector<48x256xf32> to vector<8x256xf32>
    %120 = vector.shape_cast %119 : vector<8x256xf32> to vector<1x8x256xf32>
    %121 = vector.broadcast %120 : vector<1x8x256xf32> to vector<8x8x256xf32>
    %122 = arith.mulf %116, %121 : vector<8x8x256xf32>
    %cst_42 = arith.constant dense<0.000000e+00> : vector<8x256xf32>
    %123 = vector.multi_reduction <add>, %122, %cst_42 [1] : vector<8x8x256xf32> to vector<8x256xf32>
    %124 = arith.mulf %123, %118 : vector<8x256xf32>
    %125 = vector.extract_strided_slice %98 {offsets = [40, 0], sizes = [8, 256], strides = [1, 1]} : vector<48x256xf32> to vector<8x256xf32>
    %126 = vector.shape_cast %125 : vector<8x256xf32> to vector<1x8x256xf32>
    %127 = vector.broadcast %126 : vector<1x8x256xf32> to vector<8x8x256xf32>
    %128 = arith.mulf %116, %127 : vector<8x8x256xf32>
    %cst_43 = arith.constant dense<0.000000e+00> : vector<8x256xf32>
    %129 = vector.multi_reduction <add>, %128, %cst_43 [1] : vector<8x8x256xf32> to vector<8x256xf32>
    %130 = arith.mulf %129, %118 : vector<8x256xf32>
    %131 = tpu.concatenate %124, %130 in 0 : vector<8x256xf32>, vector<8x256xf32> -> vector<16x256xf32>
    %c0_44 = arith.constant 0 : index
    %c0_45 = arith.constant 0 : index
    %132 = vector.load %arg10[%c0_44, %c0_45] : memref<16x16xf32, #tpu.memory_space<vmem>>, vector<16x16xf32>
    %133 = arith.truncf %132 : vector<16x16xf32> to vector<16x16xbf16>
    %134 = arith.truncf %131 : vector<16x256xf32> to vector<16x256xbf16>
    %cst_46 = arith.constant dense<0.000000e+00> : vector<16x256xf32>
    %135 = tpu.matmul %133, %134, %cst_46 {dimension_numbers = #tpu.dot_dimension_numbers<[1], [0], [0], [1], [0, 0, 1, 1], [], []>} : vector<16x16xbf16>, vector<16x256xbf16>, vector<16x256xf32> -> vector<16x256xf32>
    %136 = arith.addf %94, %135 : vector<16x256xf32>
    %cst_47 = arith.constant 0.000000e+00 : f32
    %137 = vector.broadcast %cst_47 : f32 to vector<16x256xf32>
    %138 = arith.maximumf %136, %137 : vector<16x256xf32>
    %c0_48 = arith.constant 0 : index
    %c0_49 = arith.constant 0 : index
    %139 = vector.load %arg11[%c0_48, %c0_49] : memref<64x16xf32, #tpu.memory_space<vmem>>, vector<64x16xf32>
    %140 = arith.truncf %139 : vector<64x16xf32> to vector<64x16xbf16>
    %141 = arith.truncf %138 : vector<16x256xf32> to vector<16x256xbf16>
    %cst_50 = arith.constant dense<0.000000e+00> : vector<64x256xf32>
    %142 = tpu.matmul %140, %141, %cst_50 {dimension_numbers = #tpu.dot_dimension_numbers<[1], [0], [0], [1], [0, 0, 1, 1], [], []>} : vector<64x16xbf16>, vector<16x256xbf16>, vector<64x256xf32> -> vector<64x256xf32>
    %c0_51 = arith.constant 0 : index
    %c0_52 = arith.constant 0 : index
    %143 = vector.load %arg12[%c0_51, %c0_52] : memref<64x1xf32, #tpu.memory_space<vmem>>, vector<64x1xf32>
    %144 = vector.broadcast %143 : vector<64x1xf32> to vector<64x256xf32>
    %145 = arith.addf %142, %144 : vector<64x256xf32>
    %cst_53 = arith.constant 0.000000e+00 : f32
    %146 = vector.broadcast %cst_53 : f32 to vector<64x256xf32>
    %147 = arith.maximumf %145, %146 : vector<64x256xf32>
    %c0_54 = arith.constant 0 : index
    %c0_55 = arith.constant 0 : index
    %148 = vector.load %arg13[%c0_54, %c0_55] : memref<16x64xf32, #tpu.memory_space<vmem>>, vector<16x64xf32>
    %149 = arith.truncf %148 : vector<16x64xf32> to vector<16x64xbf16>
    %150 = arith.truncf %147 : vector<64x256xf32> to vector<64x256xbf16>
    %cst_56 = arith.constant dense<0.000000e+00> : vector<16x256xf32>
    %151 = tpu.matmul %149, %150, %cst_56 {dimension_numbers = #tpu.dot_dimension_numbers<[1], [0], [0], [1], [0, 0, 1, 1], [], []>} : vector<16x64xbf16>, vector<64x256xbf16>, vector<16x256xf32> -> vector<16x256xf32>
    %c0_57 = arith.constant 0 : index
    %c0_58 = arith.constant 0 : index
    %152 = vector.load %arg14[%c0_57, %c0_58] : memref<16x1xf32, #tpu.memory_space<vmem>>, vector<16x1xf32>
    %153 = vector.broadcast %152 : vector<16x1xf32> to vector<16x256xf32>
    %154 = arith.addf %151, %153 : vector<16x256xf32>
    %cst_59 = arith.constant dense<0.000000e+00> : vector<16x256xf32>
    %155 = tpu.matmul %154, %0, %cst_59 {dimension_numbers = #tpu.dot_dimension_numbers<[1], [0], [0], [1], [0, 0, 1, 1], [], []>} : vector<16x256xf32>, vector<256x256xf32>, vector<16x256xf32> -> vector<16x256xf32>
    %156 = arith.subf %154, %155 : vector<16x256xf32>
    %157 = arith.mulf %156, %156 : vector<16x256xf32>
    %cst_60 = arith.constant dense<0.000000e+00> : vector<16x256xf32>
    %158 = tpu.matmul %157, %0, %cst_60 {dimension_numbers = #tpu.dot_dimension_numbers<[1], [0], [0], [1], [0, 0, 1, 1], [], []>} : vector<16x256xf32>, vector<256x256xf32>, vector<16x256xf32> -> vector<16x256xf32>
    %cst_61 = arith.constant 9.99999974E-6 : f32
    %159 = vector.broadcast %cst_61 : f32 to vector<16x256xf32>
    %160 = arith.addf %158, %159 : vector<16x256xf32>
    %161 = math.rsqrt %160 : vector<16x256xf32>
    %162 = arith.mulf %156, %161 : vector<16x256xf32>
    %cst_62 = arith.constant 1.000000e+06 : f32
    %163 = vector.broadcast %cst_62 : f32 to vector<16x256xf32>
    %164 = arith.mulf %86, %163 : vector<16x256xf32>
    %165 = arith.addf %162, %164 : vector<16x256xf32>
    %cst_63 = arith.constant 0.000000e+00 : f32
    %166 = vector.broadcast %cst_63 : f32 to vector<16x256xf32>
    %167 = arith.maximumf %165, %166 : vector<16x256xf32>
    %cst_64 = arith.constant 1.000000e+06 : f32
    %168 = vector.broadcast %cst_64 : f32 to vector<16x256xf32>
    %169 = arith.divf %167, %168 : vector<16x256xf32>
    %170 = math.floor %169 : vector<16x256xf32>
    %cst_65 = arith.constant 1.000000e+06 : f32
    %171 = vector.broadcast %cst_65 : f32 to vector<16x256xf32>
    %172 = arith.divf %170, %171 : vector<16x256xf32>
    %173 = math.floor %172 : vector<16x256xf32>
    %c0_66 = arith.constant 0 : index
    %c0_67 = arith.constant 0 : index
    %c0_68 = arith.constant 0 : index
    %174 = vector.load %arg15[%c0_66, %c0_67, %c0_68] : memref<1x16x256xf32, #tpu.memory_space<vmem>>, vector<1x16x256xf32>
    %175 = vector.shape_cast %174 : vector<1x16x256xf32> to vector<16x256xf32>
    %176 = vector.shape_cast %173 : vector<16x256xf32> to vector<1x16x256xf32>
    tpu.vector_store %arg15[%c0_66, %c0_67, %c0_68], %176 {strides = array<i32>} : memref<1x16x256xf32, #tpu.memory_space<vmem>>, vector<1x16x256xf32>,
    return
  }
  func.func @transform_0(%arg0: i32) -> (i32, i32, i32) {
    %c0_i32 = arith.constant 0 : i32
    %c0_i32_0 = arith.constant 0 : i32
    %c0_i32_1 = arith.constant 0 : i32
    return %arg0, %c0_i32, %c0_i32_0 : i32, i32, i32
  }
  func.func @transform_1(%arg0: i32) -> (i32, i32) {
    %c0_i32 = arith.constant 0 : i32
    %c0_i32_0 = arith.constant 0 : i32
    %c0_i32_1 = arith.constant 0 : i32
    return %c0_i32, %c0_i32_0 : i32, i32
  }
  func.func @transform_2(%arg0: i32) -> (i32, i32) {
    %c0_i32 = arith.constant 0 : i32
    %c0_i32_0 = arith.constant 0 : i32
    %c0_i32_1 = arith.constant 0 : i32
    return %c0_i32, %c0_i32_0 : i32, i32
  }
  func.func @transform_3(%arg0: i32) -> (i32, i32) {
    %c0_i32 = arith.constant 0 : i32
    %c0_i32_0 = arith.constant 0 : i32
    %c0_i32_1 = arith.constant 0 : i32
    return %c0_i32, %c0_i32_0 : i32, i32
  }
  func.func @transform_4(%arg0: i32) -> (i32, i32) {
    %c0_i32 = arith.constant 0 : i32
    %c0_i32_0 = arith.constant 0 : i32
    %c0_i32_1 = arith.constant 0 : i32
    return %c0_i32, %c0_i32_0 : i32, i32
  }
  func.func @transform_5(%arg0: i32) -> (i32, i32) {
    %c0_i32 = arith.constant 0 : i32
    %c0_i32_0 = arith.constant 0 : i32
    %c0_i32_1 = arith.constant 0 : i32
    return %c0_i32, %c0_i32_0 : i32, i32
  }
  func.func @transform_6(%arg0: i32) -> (i32, i32) {
    %c0_i32 = arith.constant 0 : i32
    %c0_i32_0 = arith.constant 0 : i32
    %c0_i32_1 = arith.constant 0 : i32
    return %c0_i32, %c0_i32_0 : i32, i32
  }
  func.func @transform_7(%arg0: i32) -> (i32, i32) {
    %c0_i32 = arith.constant 0 : i32
    %c0_i32_0 = arith.constant 0 : i32
    %c0_i32_1 = arith.constant 0 : i32
    return %c0_i32, %c0_i32_0 : i32, i32
  }
  func.func @transform_8(%arg0: i32) -> (i32, i32) {
    %c0_i32 = arith.constant 0 : i32
    %c0_i32_0 = arith.constant 0 : i32
    %c0_i32_1 = arith.constant 0 : i32
    return %c0_i32, %c0_i32_0 : i32, i32
  }
  func.func @transform_9(%arg0: i32) -> (i32, i32) {
    %c0_i32 = arith.constant 0 : i32
    %c0_i32_0 = arith.constant 0 : i32
    %c0_i32_1 = arith.constant 0 : i32
    return %c0_i32, %c0_i32_0 : i32, i32
  }
  func.func @transform_10(%arg0: i32) -> (i32, i32) {
    %c0_i32 = arith.constant 0 : i32
    %c0_i32_0 = arith.constant 0 : i32
    %c0_i32_1 = arith.constant 0 : i32
    return %c0_i32, %c0_i32_0 : i32, i32
  }
  func.func @transform_11(%arg0: i32) -> (i32, i32) {
    %c0_i32 = arith.constant 0 : i32
    %c0_i32_0 = arith.constant 0 : i32
    %c0_i32_1 = arith.constant 0 : i32
    return %c0_i32, %c0_i32_0 : i32, i32
  }
  func.func @transform_12(%arg0: i32) -> (i32, i32) {
    %c0_i32 = arith.constant 0 : i32
    %c0_i32_0 = arith.constant 0 : i32
    %c0_i32_1 = arith.constant 0 : i32
    return %c0_i32, %c0_i32_0 : i32, i32
  }
  func.func @transform_13(%arg0: i32) -> (i32, i32) {
    %c0_i32 = arith.constant 0 : i32
    %c0_i32_0 = arith.constant 0 : i32
    %c0_i32_1 = arith.constant 0 : i32
    return %c0_i32, %c0_i32_0 : i32, i32
  }
  func.func @transform_14(%arg0: i32) -> (i32, i32, i32) {
    %c0_i32 = arith.constant 0 : i32
    %c0_i32_0 = arith.constant 0 : i32
    %c0_i32_1 = arith.constant 0 : i32
    return %arg0, %c0_i32, %c0_i32_0 : i32, i32, i32
  }
}

</mosaic_0001>

<llo_original>
// kernel: transformer_model_forward.1
$region0: #{transformer_model_forward.1}
  #allocation0 [shape = 'u32[]', space=smem, size = 0x4, offset = 0x4, fixed_abs, tag = 'smem constant byte address 0x4 - core index']
  #allocation1 [shape = 'u32[144,128]{1,0:T(1,128)}', space=vmem, size = 0x12000, scoped, tag = 'internal scratch']
  %s0 = inlined_call_operand.vmem [shape: f32[2,16,256], index: 0, kind: input, shape index: {}]
  %s1 = inlined_call_operand.vmem [shape: f32[256,256], index: 1, kind: input, shape index: {}]
  %s2 = inlined_call_operand.vmem [shape: f32[48,16], index: 2, kind: input, shape index: {}]
  %s3 = inlined_call_operand.vmem [shape: f32[16,16], index: 3, kind: input, shape index: {}]
  %s4 = inlined_call_operand.vmem [shape: f32[64,16], index: 4, kind: input, shape index: {}]
  %s5 = inlined_call_operand.vmem [shape: f32[64,1], index: 5, kind: input, shape index: {}]
  %s6 = inlined_call_operand.vmem [shape: f32[16,64], index: 6, kind: input, shape index: {}]
  %s7 = inlined_call_operand.vmem [shape: f32[16,1], index: 7, kind: input, shape index: {}]
  %s8 = inlined_call_operand.vmem [shape: f32[48,16], index: 8, kind: input, shape index: {}]
  %s9 = inlined_call_operand.vmem [shape: f32[16,16], index: 9, kind: input, shape index: {}]
  %s10 = inlined_call_operand.vmem [shape: f32[64,16], index: 10, kind: input, shape index: {}]
  %s11 = inlined_call_operand.vmem [shape: f32[64,1], index: 11, kind: input, shape index: {}]
  %s12 = inlined_call_operand.vmem [shape: f32[16,64], index: 12, kind: input, shape index: {}]
  %s13 = inlined_call_operand.vmem [shape: f32[16,1], index: 13, kind: input, shape index: {}]
  %s14 = inlined_call_operand.vmem [shape: f32[2,16,256], index: 14, kind: output, shape index: {}]
  %s15 = sld [smem:[#allocation0]]
  $region89: #{transformer_model_forward.1} parent=0
    _
  %s17 = ssub.s32 1, %s15
  %s18 = scalar_select 0, %s17, %s15
  loop: start=0, step=1, limit=4
  $region2: #{transformer_model_forward.1} parent=0 // loop_pre_header
    _
  $region3: #{transformer_model_forward.1} parent=0 // loop_header
    %s20 = sphi 0, %s24
    %p21 = scmp.ge.s32.totalorder %s20, 4
    %s30 = sphi 0, %s32
    %s33 = sphi 0, %s30
    %s34 = sphi 0, %s33
    %s50 = sphi 0, %s34
    %s54 = sphi 0, %s54
    %s56 = sphi 0, %s54
    %s57 = sphi 0, %s56
    %s71 = sphi 0, %s57
    %s75 = sphi 0, %s75
    %s77 = sphi 0, %s75
    %s78 = sphi 0, %s77
    %s92 = sphi 0, %s78
    %s96 = sphi 0, %s96
    %s98 = sphi 0, %s96
    %s99 = sphi 0, %s98
    %s113 = sphi 0, %s99
    %s117 = sphi 0, %s117
    %s119 = sphi 0, %s117
    %s120 = sphi 0, %s119
    %s134 = sphi 0, %s120
    %s138 = sphi 0, %s138
    %s140 = sphi 0, %s138
    %s141 = sphi 0, %s140
    %s155 = sphi 0, %s141
    %s159 = sphi 0, %s159
    %s161 = sphi 0, %s159
    %s162 = sphi 0, %s161
    %s176 = sphi 0, %s162
    %s180 = sphi 0, %s180
    %s182 = sphi 0, %s180
    %s183 = sphi 0, %s182
    %s197 = sphi 0, %s183
    %s201 = sphi 0, %s201
    %s203 = sphi 0, %s201
    %s204 = sphi 0, %s203
    %s218 = sphi 0, %s204
    %s222 = sphi 0, %s222
    %s224 = sphi 0, %s222
    %s225 = sphi 0, %s224
    %s239 = sphi 0, %s225
    %s243 = sphi 0, %s243
    %s245 = sphi 0, %s243
    %s246 = sphi 0, %s245
    %s260 = sphi 0, %s246
    %s264 = sphi 0, %s264
    %s266 = sphi 0, %s264
    %s267 = sphi 0, %s266
    %s281 = sphi 0, %s267
    %s285 = sphi 0, %s285
    %s287 = sphi 0, %s285
    %s288 = sphi 0, %s287
    %s302 = sphi 0, %s288
    %s306 = sphi 0, %s306
    %s308 = sphi 0, %s306
    %s309 = sphi 0, %s308
    %s323 = sphi 0, %s309
    %s329 = sphi 0, %s331
    %s332 = sphi 0, %s329
    %s333 = sphi 0, %s332
    %s349 = sphi 0, %s333
  $region4: #{transformer_model_forward.1} parent=0 // loop_header_branch
    %23 = sbr.rel (%p21) target = $region8
  $region5: #{transformer_model_forward.1} parent=0 // loop_body
    %s25 = ssub.s32 %s20, 1
    %s26 = ssub.s32 %s20, 2
    %s27 = sadd.s32 %s20, 1
    %s28 = ssub.s32 %s20, %s27
    %p29 = scmp.eq.s32.totalorder %s28, 0
    %s31 = sadd.s32 %s30, 1
    %s32 = scalar_select %p29, %s30, %s31
    %p35 = pneg %p29
    %p36 = scmp.eq.s32.totalorder %s20, 1
    %p37 = por %p35, %p36
    %p38 = scmp.ne.s32.totalorder %s30, %s33
    %p39 = scmp.eq.s32.totalorder %s20, 0
    %p40 = por %p38, %p39
    %p41 = scmp.ne.s32.totalorder %s30, %s33
    %p42 = scmp.eq.s32.totalorder %s25, 1
    %p43 = por %p41, %p42
    %p44 = scmp.ne.s32.totalorder %s33, %s34
    %p45 = scmp.eq.s32.totalorder %s25, 0
    %p46 = por %p44, %p45
    %p47 = scmp.ne.s32.totalorder %s33, %s34
    %p48 = scmp.eq.s32.totalorder %s26, 1
    %p49 = por %p47, %p48
    %p51 = scmp.ne.s32.totalorder %s34, %s50
    %p52 = scmp.eq.s32.totalorder %s26, 0
    %p53 = por %p51, %p52
    %s55 = sadd.s32 %s54, 1
    %p58 = scmp.eq.s32.totalorder %s20, 1
    %p59 = scmp.ne.s32.totalorder %s54, %s56
    %p60 = scmp.eq.s32.totalorder %s20, 0
    %p61 = por %p59, %p60
    %p62 = scmp.ne.s32.totalorder %s54, %s56
    %p63 = scmp.eq.s32.totalorder %s25, 1
    %p64 = por %p62, %p63
    %p65 = scmp.ne.s32.totalorder %s56, %s57
    %p66 = scmp.eq.s32.totalorder %s25, 0
    %p67 = por %p65, %p66
    %p68 = scmp.ne.s32.totalorder %s56, %s57
    %p69 = scmp.eq.s32.totalorder %s26, 1
    %p70 = por %p68, %p69
    %p72 = scmp.ne.s32.totalorder %s57, %s71
    %p73 = scmp.eq.s32.totalorder %s26, 0
    %p74 = por %p72, %p73
    %s76 = sadd.s32 %s75, 1
    %p79 = scmp.eq.s32.totalorder %s20, 1
    %p80 = scmp.ne.s32.totalorder %s75, %s77
    %p81 = scmp.eq.s32.totalorder %s20, 0
    %p82 = por %p80, %p81
    %p83 = scmp.ne.s32.totalorder %s75, %s77
    %p84 = scmp.eq.s32.totalorder %s25, 1
    %p85 = por %p83, %p84
    %p86 = scmp.ne.s32.totalorder %s77, %s78
    %p87 = scmp.eq.s32.totalorder %s25, 0
    %p88 = por %p86, %p87
    %p89 = scmp.ne.s32.totalorder %s77, %s78
    %p90 = scmp.eq.s32.totalorder %s26, 1
    %p91 = por %p89, %p90
    %p93 = scmp.ne.s32.totalorder %s78, %s92
    %p94 = scmp.eq.s32.totalorder %s26, 0
    %p95 = por %p93, %p94
    %s97 = sadd.s32 %s96, 1
    %p100 = scmp.eq.s32.totalorder %s20, 1
    %p101 = scmp.ne.s32.totalorder %s96, %s98
    %p102 = scmp.eq.s32.totalorder %s20, 0
    %p103 = por %p101, %p102
    %p104 = scmp.ne.s32.totalorder %s96, %s98
    %p105 = scmp.eq.s32.totalorder %s25, 1
    %p106 = por %p104, %p105
    %p107 = scmp.ne.s32.totalorder %s98, %s99
    %p108 = scmp.eq.s32.totalorder %s25, 0
    %p109 = por %p107, %p108
    %p110 = scmp.ne.s32.totalorder %s98, %s99
    %p111 = scmp.eq.s32.totalorder %s26, 1
    %p112 = por %p110, %p111
    %p114 = scmp.ne.s32.totalorder %s99, %s113
    %p115 = scmp.eq.s32.totalorder %s26, 0
    %p116 = por %p114, %p115
    %s118 = sadd.s32 %s117, 1
    %p121 = scmp.eq.s32.totalorder %s20, 1
    %p122 = scmp.ne.s32.totalorder %s117, %s119
    %p123 = scmp.eq.s32.totalorder %s20, 0
    %p124 = por %p122, %p123
    %p125 = scmp.ne.s32.totalorder %s117, %s119
    %p126 = scmp.eq.s32.totalorder %s25, 1
    %p127 = por %p125, %p126
    %p128 = scmp.ne.s32.totalorder %s119, %s120
    %p129 = scmp.eq.s32.totalorder %s25, 0
    %p130 = por %p128, %p129
    %p131 = scmp.ne.s32.totalorder %s119, %s120
    %p132 = scmp.eq.s32.totalorder %s26, 1
    %p133 = por %p131, %p132
    %p135 = scmp.ne.s32.totalorder %s120, %s134
    %p136 = scmp.eq.s32.totalorder %s26, 0
    %p137 = por %p135, %p136
    %s139 = sadd.s32 %s138, 1
    %p142 = scmp.eq.s32.totalorder %s20, 1
    %p143 = scmp.ne.s32.totalorder %s138, %s140
    %p144 = scmp.eq.s32.totalorder %s20, 0
    %p145 = por %p143, %p144
    %p146 = scmp.ne.s32.totalorder %s138, %s140
    %p147 = scmp.eq.s32.totalorder %s25, 1
    %p148 = por %p146, %p147
    %p149 = scmp.ne.s32.totalorder %s140, %s141
    %p150 = scmp.eq.s32.totalorder %s25, 0
    %p151 = por %p149, %p150
    %p152 = scmp.ne.s32.totalorder %s140, %s141
    %p153 = scmp.eq.s32.totalorder %s26, 1
    %p154 = por %p152, %p153
    %p156 = scmp.ne.s32.totalorder %s141, %s155
    %p157 = scmp.eq.s32.totalorder %s26, 0
    %p158 = por %p156, %p157
    %s160 = sadd.s32 %s159, 1
    %p163 = scmp.eq.s32.totalorder %s20, 1
    %p164 = scmp.ne.s32.totalorder %s159, %s161
    %p165 = scmp.eq.s32.totalorder %s20, 0
    %p166 = por %p164, %p165
    %p167 = scmp.ne.s32.totalorder %s159, %s161
    %p168 = scmp.eq.s32.totalorder %s25, 1
    %p169 = por %p167, %p168
    %p170 = scmp.ne.s32.totalorder %s161, %s162
    %p171 = scmp.eq.s32.totalorder %s25, 0
    %p172 = por %p170, %p171
    %p173 = scmp.ne.s32.totalorder %s161, %s162
    %p174 = scmp.eq.s32.totalorder %s26, 1
    %p175 = por %p173, %p174
    %p177 = scmp.ne.s32.totalorder %s162, %s176
    %p178 = scmp.eq.s32.totalorder %s26, 0
    %p179 = por %p177, %p178
    %s181 = sadd.s32 %s180, 1
    %p184 = scmp.eq.s32.totalorder %s20, 1
    %p185 = scmp.ne.s32.totalorder %s180, %s182
    %p186 = scmp.eq.s32.totalorder %s20, 0
    %p187 = por %p185, %p186
    %p188 = scmp.ne.s32.totalorder %s180, %s182
    %p189 = scmp.eq.s32.totalorder %s25, 1
    %p190 = por %p188, %p189
    %p191 = scmp.ne.s32.totalorder %s182, %s183
    %p192 = scmp.eq.s32.totalorder %s25, 0
    %p193 = por %p191, %p192
    %p194 = scmp.ne.s32.totalorder %s182, %s183
    %p195 = scmp.eq.s32.totalorder %s26, 1
    %p196 = por %p194, %p195
    %p198 = scmp.ne.s32.totalorder %s183, %s197
    %p199 = scmp.eq.s32.totalorder %s26, 0
    %p200 = por %p198, %p199
    %s202 = sadd.s32 %s201, 1
    %p205 = scmp.eq.s32.totalorder %s20, 1
    %p206 = scmp.ne.s32.totalorder %s201, %s203
    %p207 = scmp.eq.s32.totalorder %s20, 0
    %p208 = por %p206, %p207
    %p209 = scmp.ne.s32.totalorder %s201, %s203
    %p210 = scmp.eq.s32.totalorder %s25, 1
    %p211 = por %p209, %p210
    %p212 = scmp.ne.s32.totalorder %s203, %s204
    %p213 = scmp.eq.s32.totalorder %s25, 0
    %p214 = por %p212, %p213
    %p215 = scmp.ne.s32.totalorder %s203, %s204
    %p216 = scmp.eq.s32.totalorder %s26, 1
    %p217 = por %p215, %p216
    %p219 = scmp.ne.s32.totalorder %s204, %s218
    %p220 = scmp.eq.s32.totalorder %s26, 0
    %p221 = por %p219, %p220
    %s223 = sadd.s32 %s222, 1
    %p226 = scmp.eq.s32.totalorder %s20, 1
    %p227 = scmp.ne.s32.totalorder %s222, %s224
    %p228 = scmp.eq.s32.totalorder %s20, 0
    %p229 = por %p227, %p228
    %p230 = scmp.ne.s32.totalorder %s222, %s224
    %p231 = scmp.eq.s32.totalorder %s25, 1
    %p232 = por %p230, %p231
    %p233 = scmp.ne.s32.totalorder %s224, %s225
    %p234 = scmp.eq.s32.totalorder %s25, 0
    %p235 = por %p233, %p234
    %p236 = scmp.ne.s32.totalorder %s224, %s225
    %p237 = scmp.eq.s32.totalorder %s26, 1
    %p238 = por %p236, %p237
    %p240 = scmp.ne.s32.totalorder %s225, %s239
    %p241 = scmp.eq.s32.totalorder %s26, 0
    %p242 = por %p240, %p241
    %s244 = sadd.s32 %s243, 1
    %p247 = scmp.eq.s32.totalorder %s20, 1
    %p248 = scmp.ne.s32.totalorder %s243, %s245
    %p249 = scmp.eq.s32.totalorder %s20, 0
    %p250 = por %p248, %p249
    %p251 = scmp.ne.s32.totalorder %s243, %s245
    %p252 = scmp.eq.s32.totalorder %s25, 1
    %p253 = por %p251, %p252
    %p254 = scmp.ne.s32.totalorder %s245, %s246
    %p255 = scmp.eq.s32.totalorder %s25, 0
    %p256 = por %p254, %p255
    %p257 = scmp.ne.s32.totalorder %s245, %s246
    %p258 = scmp.eq.s32.totalorder %s26, 1
    %p259 = por %p257, %p258
    %p261 = scmp.ne.s32.totalorder %s246, %s260
    %p262 = scmp.eq.s32.totalorder %s26, 0
    %p263 = por %p261, %p262
    %s265 = sadd.s32 %s264, 1
    %p268 = scmp.eq.s32.totalorder %s20, 1
    %p269 = scmp.ne.s32.totalorder %s264, %s266
    %p270 = scmp.eq.s32.totalorder %s20, 0
    %p271 = por %p269, %p270
    %p272 = scmp.ne.s32.totalorder %s264, %s266
    %p273 = scmp.eq.s32.totalorder %s25, 1
    %p274 = por %p272, %p273
    %p275 = scmp.ne.s32.totalorder %s266, %s267
    %p276 = scmp.eq.s32.totalorder %s25, 0
    %p277 = por %p275, %p276
    %p278 = scmp.ne.s32.totalorder %s266, %s267
    %p279 = scmp.eq.s32.totalorder %s26, 1
    %p280 = por %p278, %p279
    %p282 = scmp.ne.s32.totalorder %s267, %s281
    %p283 = scmp.eq.s32.totalorder %s26, 0
    %p284 = por %p282, %p283
    %s286 = sadd.s32 %s285, 1
    %p289 = scmp.eq.s32.totalorder %s20, 1
    %p290 = scmp.ne.s32.totalorder %s285, %s287
    %p291 = scmp.eq.s32.totalorder %s20, 0
    %p292 = por %p290, %p291
    %p293 = scmp.ne.s32.totalorder %s285, %s287
    %p294 = scmp.eq.s32.totalorder %s25, 1
    %p295 = por %p293, %p294
    %p296 = scmp.ne.s32.totalorder %s287, %s288
    %p297 = scmp.eq.s32.totalorder %s25, 0
    %p298 = por %p296, %p297
    %p299 = scmp.ne.s32.totalorder %s287, %s288
    %p300 = scmp.eq.s32.totalorder %s26, 1
    %p301 = por %p299, %p300
    %p303 = scmp.ne.s32.totalorder %s288, %s302
    %p304 = scmp.eq.s32.totalorder %s26, 0
    %p305 = por %p303, %p304
    %s307 = sadd.s32 %s306, 1
    %p310 = scmp.eq.s32.totalorder %s20, 1
    %p311 = scmp.ne.s32.totalorder %s306, %s308
    %p312 = scmp.eq.s32.totalorder %s20, 0
    %p313 = por %p311, %p312
    %p314 = scmp.ne.s32.totalorder %s306, %s308
    %p315 = scmp.eq.s32.totalorder %s25, 1
    %p316 = por %p314, %p315
    %p317 = scmp.ne.s32.totalorder %s308, %s309
    %p318 = scmp.eq.s32.totalorder %s25, 0
    %p319 = por %p317, %p318
    %p320 = scmp.ne.s32.totalorder %s308, %s309
    %p321 = scmp.eq.s32.totalorder %s26, 1
    %p322 = por %p320, %p321
    %p324 = scmp.ne.s32.totalorder %s309, %s323
    %p325 = scmp.eq.s32.totalorder %s26, 0
    %p326 = por %p324, %p325
    %s327 = ssub.s32 %s20, %s27
    %p328 = scmp.eq.s32.totalorder %s327, 0
    %s330 = sadd.s32 %s329, 1
    %s331 = scalar_select %p328, %s329, %s330
    %p334 = pneg %p328
    %p335 = scmp.eq.s32.totalorder %s20, 1
    %p336 = por %p334, %p335
    %p337 = scmp.ne.s32.totalorder %s329, %s332
    %p338 = scmp.eq.s32.totalorder %s20, 0
    %p339 = por %p337, %p338
    %p340 = scmp.ne.s32.totalorder %s329, %s332
    %p341 = scmp.eq.s32.totalorder %s25, 1
    %p342 = por %p340, %p341
    %p343 = scmp.ne.s32.totalorder %s332, %s333
    %p344 = scmp.eq.s32.totalorder %s25, 0
    %p345 = por %p343, %p344
    %p346 = scmp.ne.s32.totalorder %s332, %s333
    %p347 = scmp.eq.s32.totalorder %s26, 1
    %p348 = por %p346, %p347
    %p350 = scmp.ne.s32.totalorder %s333, %s349
    %p351 = scmp.eq.s32.totalorder %s26, 0
    %p352 = por %p350, %p351
    %p353 = scmp.le.s32.totalorder 1, %s20
    %p354 = scmp.lt.s32.totalorder %s20, 3
    %p355 = pnand %p353, %p354
    %p356 = pneg %p355
    // Predicated region
    $region9: #{transformer_model_forward.1} parent=5 // pred_check
      _
    $region10: #{transformer_model_forward.1} parent=5 // pred_check_branch
      %358 = sbr.rel (%p355) target = $region12
    $region11: #{transformer_model_forward.1} parent=5 // pred_region
      %s359 = ssub.s32 %s20, 1
      // Predicated region
      $region13: #{transformer_model_forward.1} parent=11 // pred_check
        %p360 = pneg %p67
      $region14: #{transformer_model_forward.1} parent=11 // pred_check_branch
        %362 = sbr.rel (%p360) target = $region16
      $region15: #{transformer_model_forward.1} parent=11 // pred_region
        _
      $region16: #{transformer_model_forward.1} parent=11 // pred_fallthru
        _
      // Predicated region
      $region17: #{transformer_model_forward.1} parent=11 // pred_check
        %p363 = pneg %p88
      $region18: #{transformer_model_forward.1} parent=11 // pred_check_branch
        %365 = sbr.rel (%p363) target = $region20
      $region19: #{transformer_model_forward.1} parent=11 // pred_region
        _
      $region20: #{transformer_model_forward.1} parent=11 // pred_fallthru
        _
      // Predicated region
      $region21: #{transformer_model_forward.1} parent=11 // pred_check
        %p366 = pneg %p109
      $region22: #{transformer_model_forward.1} parent=11 // pred_check_branch
        %368 = sbr.rel (%p366) target = $region24
      $region23: #{transformer_model_forward.1} parent=11 // pred_region
        _
      $region24: #{transformer_model_forward.1} parent=11 // pred_fallthru
        _
      // Predicated region
      $region25: #{transformer_model_forward.1} parent=11 // pred_check
        %p369 = pneg %p130
      $region26: #{transformer_model_forward.1} parent=11 // pred_check_branch
        %371 = sbr.rel (%p369) target = $region28
      $region27: #{transformer_model_forward.1} parent=11 // pred_region
        _
      $region28: #{transformer_model_forward.1} parent=11 // pred_fallthru
        _
      // Predicated region
      $region29: #{transformer_model_forward.1} parent=11 // pred_check
        %p372 = pneg %p151
      $region30: #{transformer_model_forward.1} parent=11 // pred_check_branch
        %374 = sbr.rel (%p372) target = $region32
      $region31: #{transformer_model_forward.1} parent=11 // pred_region
        _
      $region32: #{transformer_model_forward.1} parent=11 // pred_fallthru
        _
      // Predicated region
      $region33: #{transformer_model_forward.1} parent=11 // pred_check
        %p375 = pneg %p172
      $region34: #{transformer_model_forward.1} parent=11 // pred_check_branch
        %377 = sbr.rel (%p375) target = $region36
      $region35: #{transformer_model_forward.1} parent=11 // pred_region
        _
      $region36: #{transformer_model_forward.1} parent=11 // pred_fallthru
        _
      // Predicated region
      $region37: #{transformer_model_forward.1} parent=11 // pred_check
        %p378 = pneg %p193
      $region38: #{transformer_model_forward.1} parent=11 // pred_check_branch
        %380 = sbr.rel (%p378) target = $region40
      $region39: #{transformer_model_forward.1} parent=11 // pred_region
        _
      $region40: #{transformer_model_forward.1} parent=11 // pred_fallthru
        _
      // Predicated region
      $region41: #{transformer_model_forward.1} parent=11 // pred_check
        %p381 = pneg %p214
      $region42: #{transformer_model_forward.1} parent=11 // pred_check_branch
        %383 = sbr.rel (%p381) target = $region44
      $region43: #{transformer_model_forward.1} parent=11 // pred_region
        _
      $region44: #{transformer_model_forward.1} parent=11 // pred_fallthru
        _
      // Predicated region
      $region45: #{transformer_model_forward.1} parent=11 // pred_check
        %p384 = pneg %p235
      $region46: #{transformer_model_forward.1} parent=11 // pred_check_branch
        %386 = sbr.rel (%p384) target = $region48
      $region47: #{transformer_model_forward.1} parent=11 // pred_region
        _
      $region48: #{transformer_model_forward.1} parent=11 // pred_fallthru
        _
      // Predicated region
      $region49: #{transformer_model_forward.1} parent=11 // pred_check
        %p387 = pneg %p256
      $region50: #{transformer_model_forward.1} parent=11 // pred_check_branch
        %389 = sbr.rel (%p387) target = $region52
      $region51: #{transformer_model_forward.1} parent=11 // pred_region
        _
      $region52: #{transformer_model_forward.1} parent=11 // pred_fallthru
        _
      // Predicated region
      $region53: #{transformer_model_forward.1} parent=11 // pred_check
        %p390 = pneg %p277
      $region54: #{transformer_model_forward.1} parent=11 // pred_check_branch
        %392 = sbr.rel (%p390) target = $region56
      $region55: #{transformer_model_forward.1} parent=11 // pred_region
        _
      $region56: #{transformer_model_forward.1} parent=11 // pred_fallthru
        _
      // Predicated region
      $region57: #{transformer_model_forward.1} parent=11 // pred_check
        %p393 = pneg %p298
      $region58: #{transformer_model_forward.1} parent=11 // pred_check_branch
        %395 = sbr.rel (%p393) target = $region60
      $region59: #{transformer_model_forward.1} parent=11 // pred_region
        _
      $region60: #{transformer_model_forward.1} parent=11 // pred_fallthru
        _
      // Predicated region
      $region61: #{transformer_model_forward.1} parent=11 // pred_check
        %p396 = pneg %p319
      $region62: #{transformer_model_forward.1} parent=11 // pred_check_branch
        %398 = sbr.rel (%p396) target = $region64
      $region63: #{transformer_model_forward.1} parent=11 // pred_region
        _
      $region64: #{transformer_model_forward.1} parent=11 // pred_fallthru
        _
    $region12: #{transformer_model_forward.1} parent=5 // pred_fallthru
      _
    %p399 = scmp.lt.s32.totalorder %s20, 2
    // Predicated region
    $region65: #{transformer_model_forward.1} parent=5 // pred_check
      %p400 = pneg %p399
    $region66: #{transformer_model_forward.1} parent=5 // pred_check_branch
      %402 = sbr.rel (%p400) target = $region68
    $region67: #{transformer_model_forward.1} parent=5 // pred_region
      // Predicated region
      $region69: #{transformer_model_forward.1} parent=67 // pred_check
        %p403 = pneg %p40
      $region70: #{transformer_model_forward.1} parent=67 // pred_check_branch
        %405 = sbr.rel (%p403) target = $region72
      $region71: #{transformer_model_forward.1} parent=67 // pred_region
        %p406 = scmp.lt.s32.totalorder %s20, 1
        %s407 = scalar_select %p406, %s20, 1
        %s408 = smul.addr %s407, 4
        %s409 = smul.addr %s408, 8
        %s410 = scalar_lea.vmem %s0, %s409
      $region72: #{transformer_model_forward.1} parent=67 // pred_fallthru
        _
    $region68: #{transformer_model_forward.1} parent=5 // pred_fallthru
      _
    %p411 = scmp.le.s32.totalorder 1, %s20
    %p412 = scmp.lt.s32.totalorder %s20, 3
    %p413 = pnand %p411, %p412
    %p414 = pneg %p413
    // Predicated region
    $region73: #{transformer_model_forward.1} parent=5 // pred_check
      _
    $region74: #{transformer_model_forward.1} parent=5 // pred_check_branch
      %416 = sbr.rel (%p413) target = $region76
    $region75: #{transformer_model_forward.1} parent=5 // pred_region
      %s417 = ssub.s32 %s20, 1
      %p418 = scmp.lt.s32.totalorder %s25, 1
      %s419 = scalar_select %p418, %s25, 1
      %s420 = smul.addr %s419, 4
      %s421 = smul.addr %s420, 8
      %s422 = scalar_lea.vmem %s0, %s421
      %p423 = pneg %p46
      %p424 = pneg %p43
      %p425 = pneg %p67
      %p426 = pneg %p64
      %p427 = pneg %p88
      %p428 = pneg %p85
      %p429 = pneg %p109
      %p430 = pneg %p106
      %p431 = pneg %p130
      %p432 = pneg %p127
      %p433 = pneg %p151
      %p434 = pneg %p148
      %p435 = pneg %p172
      %p436 = pneg %p169
      %p437 = pneg %p193
      %p438 = pneg %p190
      %p439 = pneg %p214
      %p440 = pneg %p211
      %p441 = pneg %p235
      %p442 = pneg %p232
      %p443 = pneg %p256
      %p444 = pneg %p253
      %p445 = pneg %p277
      %p446 = pneg %p274
      %p447 = pneg %p298
      %p448 = pneg %p295
      %p449 = pneg %p319
      %p450 = pneg %p316
      %p451 = pneg %p345
      %p452 = pneg %p342
      %p453 = scmp.lt.s32.totalorder %s25, 1
      %s454 = scalar_select %p453, %s25, 1
      %s455 = smul.addr %s454, 4
      %s456 = smul.addr %s455, 8
      %s457 = scalar_lea.vmem %s14, %s456
      %p458 = scmp.lt.s32.totalorder %s25, 1
      %s459 = scalar_select %p458, %s25, 1
      %s460 = smul.addr %s459, 4
      %s461 = smul.addr %s460, 8
      %s462 = scalar_lea.vmem %s0, %s461
      %p463 = scmp.lt.s32.totalorder %s25, 1
      %s464 = scalar_select %p463, %s25, 1
      %s465 = smul.addr %s464, 4
      %s466 = smul.addr %s465, 8
      %s467 = scalar_lea.vmem %s14, %s466
      %v469 = vld [vmem:[%s1] sm:$0xff]
      %v470 = vld [vmem:[%s1 + $0x8] sm:$0xff]
      %v471 = vld [vmem:[%s1 + $0x10] sm:$0xff]
      %v472 = vld [vmem:[%s1 + $0x18] sm:$0xff]
      %v473 = vld [vmem:[%s1 + $0x20] sm:$0xff]
      %v474 = vld [vmem:[%s1 + $0x28] sm:$0xff]
      %v475 = vld [vmem:[%s1 + $0x30] sm:$0xff]
      %v476 = vld [vmem:[%s1 + $0x38] sm:$0xff]
      %v477 = vld [vmem:[%s1 + $0x40] sm:$0xff]
      %v478 = vld [vmem:[%s1 + $0x48] sm:$0xff]
      %v479 = vld [vmem:[%s1 + $0x50] sm:$0xff]
      %v480 = vld [vmem:[%s1 + $0x58] sm:$0xff]
      %v481 = vld [vmem:[%s1 + $0x60] sm:$0xff]
      %v482 = vld [vmem:[%s1 + $0x68] sm:$0xff]
      %v483 = vld [vmem:[%s1 + $0x70] sm:$0xff]
      %v484 = vld [vmem:[%s1 + $0x78] sm:$0xff]
      %v485 = vld [vmem:[%s1 + $0x80] sm:$0xff]
      %v486 = vld [vmem:[%s1 + $0x88] sm:$0xff]
      %v487 = vld [vmem:[%s1 + $0x90] sm:$0xff]
      %v488 = vld [vmem:[%s1 + $0x98] sm:$0xff]
      %v489 = vld [vmem:[%s1 + $0xa0] sm:$0xff]
      %v490 = vld [vmem:[%s1 + $0xa8] sm:$0xff]
      %v491 = vld [vmem:[%s1 + $0xb0] sm:$0xff]
      %v492 = vld [vmem:[%s1 + $0xb8] sm:$0xff]
      %v493 = vld [vmem:[%s1 + $0xc0] sm:$0xff]
      %v494 = vld [vmem:[%s1 + $0xc8] sm:$0xff]
      %v495 = vld [vmem:[%s1 + $0xd0] sm:$0xff]
      %v496 = vld [vmem:[%s1 + $0xd8] sm:$0xff]
      %v497 = vld [vmem:[%s1 + $0xe0] sm:$0xff]
      %v498 = vld [vmem:[%s1 + $0xe8] sm:$0xff]
      %v499 = vld [vmem:[%s1 + $0xf0] sm:$0xff]
      %v500 = vld [vmem:[%s1 + $0xf8] sm:$0xff]
      %v501 = vld [vmem:[%s1 + $0x100] sm:$0xff]
      %v502 = vld [vmem:[%s1 + $0x108] sm:$0xff]
      %v503 = vld [vmem:[%s1 + $0x110] sm:$0xff]
      %v504 = vld [vmem:[%s1 + $0x118] sm:$0xff]
      %v505 = vld [vmem:[%s1 + $0x120] sm:$0xff]
      %v506 = vld [vmem:[%s1 + $0x128] sm:$0xff]
      %v507 = vld [vmem:[%s1 + $0x130] sm:$0xff]
      %v508 = vld [vmem:[%s1 + $0x138] sm:$0xff]
      %v509 = vld [vmem:[%s1 + $0x140] sm:$0xff]
      %v510 = vld [vmem:[%s1 + $0x148] sm:$0xff]
      %v511 = vld [vmem:[%s1 + $0x150] sm:$0xff]
      %v512 = vld [vmem:[%s1 + $0x158] sm:$0xff]
      %v513 = vld [vmem:[%s1 + $0x160] sm:$0xff]
      %v514 = vld [vmem:[%s1 + $0x168] sm:$0xff]
      %v515 = vld [vmem:[%s1 + $0x170] sm:$0xff]
      %v516 = vld [vmem:[%s1 + $0x178] sm:$0xff]
      %v517 = vld [vmem:[%s1 + $0x180] sm:$0xff]
      %v518 = vld [vmem:[%s1 + $0x188] sm:$0xff]
      %v519 = vld [vmem:[%s1 + $0x190] sm:$0xff]
      %v520 = vld [vmem:[%s1 + $0x198] sm:$0xff]
      %v521 = vld [vmem:[%s1 + $0x1a0] sm:$0xff]
      %v522 = vld [vmem:[%s1 + $0x1a8] sm:$0xff]
      %v523 = vld [vmem:[%s1 + $0x1b0] sm:$0xff]
      %v524 = vld [vmem:[%s1 + $0x1b8] sm:$0xff]
      %v525 = vld [vmem:[%s1 + $0x1c0] sm:$0xff]
      %v526 = vld [vmem:[%s1 + $0x1c8] sm:$0xff]
      %v527 = vld [vmem:[%s1 + $0x1d0] sm:$0xff]
      %v528 = vld [vmem:[%s1 + $0x1d8] sm:$0xff]
      %v529 = vld [vmem:[%s1 + $0x1e0] sm:$0xff]
      %v530 = vld [vmem:[%s1 + $0x1e8] sm:$0xff]
      %v531 = vld [vmem:[%s1 + $0x1f0] sm:$0xff]
      %v532 = vld [vmem:[%s1 + $0x1f8] sm:$0xff]
      %v533 = vld [vmem:[%s462] sm:$0xff]
      %v534 = vld [vmem:[%s462 + $0x8] sm:$0xff]
      %v535 = vld [vmem:[%s462 + $0x10] sm:$0xff]
      %v536 = vld [vmem:[%s462 + $0x18] sm:$0xff]
      %537 = vmatprep.subr.mxu0 %v470
      %538 = vmatpush1.msra.mxu0 %v469
      %539 = vmatprep.subr.mxu0 %v472
      %540 = vmatpush1.msra.mxu0 %v471
      %541 = vmatprep.subr.mxu0 %v474
      %542 = vmatpush1.msra.mxu0 %v473
      %543 = vmatprep.subr.mxu0 %v476
      %544 = vmatpush1.msra.mxu0 %v475
      %545 = vmatprep.subr.mxu0 %v478
      %546 = vmatpush1.msra.mxu0 %v477
      %547 = vmatprep.subr.mxu0 %v480
      %548 = vmatpush1.msra.mxu0 %v479
      %549 = vmatprep.subr.mxu0 %v482
      %550 = vmatpush1.msra.mxu0 %v481
      %551 = vmatprep.subr.mxu0 %v484
      %552 = vmatpush1.msra.mxu0 %v483
      %553 = vmatprep.subr.mxu0 %v486
      %554 = vmatpush1.msra.mxu0 %v485
      %555 = vmatprep.subr.mxu0 %v488
      %556 = vmatpush1.msra.mxu0 %v487
      %557 = vmatprep.subr.mxu0 %v490
      %558 = vmatpush1.msra.mxu0 %v489
      %559 = vmatprep.subr.mxu0 %v492
      %560 = vmatpush1.msra.mxu0 %v491
      %561 = vmatprep.subr.mxu0 %v494
      %562 = vmatpush1.msra.mxu0 %v493
      %563 = vmatprep.subr.mxu0 %v496
      %564 = vmatpush1.msra.mxu0 %v495
      %565 = vmatprep.subr.mxu0 %v498
      %566 = vmatpush1.msra.mxu0 %v497
      %567 = vmatprep.subr.mxu0 %v500
      %568 = vmatpush1.msra.mxu0 %v499
      %569 = vmatprep.subr.mxu0 %v502
      %570 = vmatpush1.msra.mxu0 %v501
      %571 = vmatprep.subr.mxu0 %v504
      %572 = vmatpush1.msra.mxu0 %v503
      %573 = vmatprep.subr.mxu0 %v506
      %574 = vmatpush1.msra.mxu0 %v505
      %575 = vmatprep.subr.mxu0 %v508
      %576 = vmatpush1.msra.mxu0 %v507
      %577 = vmatprep.subr.mxu0 %v510
      %578 = vmatpush1.msra.mxu0 %v509
      %579 = vmatprep.subr.mxu0 %v512
      %580 = vmatpush1.msra.mxu0 %v511
      %581 = vmatprep.subr.mxu0 %v514
      %582 = vmatpush1.msra.mxu0 %v513
      %583 = vmatprep.subr.mxu0 %v516
      %584 = vmatpush1.msra.mxu0 %v515
      %585 = vmatprep.subr.mxu0 %v518
      %586 = vmatpush1.msra.mxu0 %v517
      %587 = vmatprep.subr.mxu0 %v520
      %588 = vmatpush1.msra.mxu0 %v519
      %589 = vmatprep.subr.mxu0 %v522
      %590 = vmatpush1.msra.mxu0 %v521
      %591 = vmatprep.subr.mxu0 %v524
      %592 = vmatpush1.msra.mxu0 %v523
      %593 = vmatprep.subr.mxu0 %v526
      %594 = vmatpush1.msra.mxu0 %v525
      %595 = vmatprep.subr.mxu0 %v528
      %596 = vmatpush1.msra.mxu0 %v527
      %597 = vmatprep.subr.mxu0 %v530
      %598 = vmatpush1.msra.mxu0 %v529
      %599 = vmatprep.subr.mxu0 %v532
      %600 = vmatpush1.msra.mxu0 %v531
      %601 = vmatprep.mubr.f32.mxu0 %v534
      %602 = vmatmul.mubr.f32.gmra.mrb[0].mxu0 %v533
      %v603 = vpop.f32.mrb[0].mxu0
      %v604 = vadd.f32 0.0, %v603
      %v605 = vpop.f32.mrb[0].mxu0
      %v606 = vadd.f32 0.0, %v605
      %607 = vmatprep.mubr.f32.mxu0 %v536
      %608 = vmatmul.mubr.f32.gmra.mrb[0].mxu0 %v535
      %v609 = vpop.f32.mrb[0].mxu0
      %v610 = vadd.f32 0.0, %v609
      %v611 = vpop.f32.mrb[0].mxu0
      %v612 = vadd.f32 0.0, %v611
      %613 = vdwg.mxu0
      %v614 = vsub.f32 %v533, %v604
      %v615 = vsub.f32 %v534, %v606
      %v616 = vsub.f32 %v535, %v610
      %v617 = vsub.f32 %v536, %v612
      %v618 = vmul.f32 %v614, %v614
      %v619 = vmul.f32 %v615, %v615
      %v620 = vmul.f32 %v616, %v616
      %v621 = vmul.f32 %v617, %v617
      %622 = vmatprep.subr.mxu0 %v470
      %623 = vmatpush1.msra.mxu0 %v469
      %624 = vmatprep.subr.mxu0 %v472
      %625 = vmatpush1.msra.mxu0 %v471
      %626 = vmatprep.subr.mxu0 %v474
      %627 = vmatpush1.msra.mxu0 %v473
      %628 = vmatprep.subr.mxu0 %v476
      %629 = vmatpush1.msra.mxu0 %v475
      %630 = vmatprep.subr.mxu0 %v478
      %631 = vmatpush1.msra.mxu0 %v477
      %632 = vmatprep.subr.mxu0 %v480
      %633 = vmatpush1.msra.mxu0 %v479
      %634 = vmatprep.subr.mxu0 %v482
      %635 = vmatpush1.msra.mxu0 %v481
      %636 = vmatprep.subr.mxu0 %v484
      %637 = vmatpush1.msra.mxu0 %v483
      %638 = vmatprep.subr.mxu0 %v486
      %639 = vmatpush1.msra.mxu0 %v485
      %640 = vmatprep.subr.mxu0 %v488
      %641 = vmatpush1.msra.mxu0 %v487
      %642 = vmatprep.subr.mxu0 %v490
      %643 = vmatpush1.msra.mxu0 %v489
      %644 = vmatprep.subr.mxu0 %v492
      %645 = vmatpush1.msra.mxu0 %v491
      %646 = vmatprep.subr.mxu0 %v494
      %647 = vmatpush1.msra.mxu0 %v493
      %648 = vmatprep.subr.mxu0 %v496
      %649 = vmatpush1.msra.mxu0 %v495
      %650 = vmatprep.subr.mxu0 %v498
      %651 = vmatpush1.msra.mxu0 %v497
      %652 = vmatprep.subr.mxu0 %v500
      %653 = vmatpush1.msra.mxu0 %v499
      %654 = vmatprep.subr.mxu0 %v502
      %655 = vmatpush1.msra.mxu0 %v501
      %656 = vmatprep.subr.mxu0 %v504
      %657 = vmatpush1.msra.mxu0 %v503
      %658 = vmatprep.subr.mxu0 %v506
      %659 = vmatpush1.msra.mxu0 %v505
      %660 = vmatprep.subr.mxu0 %v508
      %661 = vmatpush1.msra.mxu0 %v507
      %662 = vmatprep.subr.mxu0 %v510
      %663 = vmatpush1.msra.mxu0 %v509
      %664 = vmatprep.subr.mxu0 %v512
      %665 = vmatpush1.msra.mxu0 %v511
      %666 = vmatprep.subr.mxu0 %v514
      %667 = vmatpush1.msra.mxu0 %v513
      %668 = vmatprep.subr.mxu0 %v516
      %669 = vmatpush1.msra.mxu0 %v515
      %670 = vmatprep.subr.mxu0 %v518
      %671 = vmatpush1.msra.mxu0 %v517
      %672 = vmatprep.subr.mxu0 %v520
      %673 = vmatpush1.msra.mxu0 %v519
      %674 = vmatprep.subr.mxu0 %v522
      %675 = vmatpush1.msra.mxu0 %v521
      %676 = vmatprep.subr.mxu0 %v524
      %677 = vmatpush1.msra.mxu0 %v523
      %678 = vmatprep.subr.mxu0 %v526
      %679 = vmatpush1.msra.mxu0 %v525
      %680 = vmatprep.subr.mxu0 %v528
      %681 = vmatpush1.msra.mxu0 %v527
      %682 = vmatprep.subr.mxu0 %v530
      %683 = vmatpush1.msra.mxu0 %v529
      %684 = vmatprep.subr.mxu0 %v532
      %685 = vmatpush1.msra.mxu0 %v531
      %686 = vmatprep.mubr.f32.mxu0 %v619
      %687 = vmatmul.mubr.f32.gmra.mrb[0].mxu0 %v618
      %v688 = vpop.f32.mrb[0].mxu0
      %v689 = vadd.f32 1e-29, %v688
      %v690 = vpop.f32.mrb[0].mxu0
      %v691 = vadd.f32 1e-29, %v690
      %692 = vmatprep.mubr.f32.mxu0 %v621
      %693 = vmatmul.mubr.f32.gmra.mrb[0].mxu0 %v620
      %v694 = vpop.f32.mrb[0].mxu0
      %v695 = vadd.f32 1e-29, %v694
      %v696 = vpop.f32.mrb[0].mxu0
      %v697 = vadd.f32 1e-29, %v696
      %698 = vdwg.mxu0
      %v699 = vrsqrt.pop %v689
      %v700 = vrsqrt.pop %v691
      %v701 = vrsqrt.pop %v695
      %v702 = vrsqrt.pop %v697
      %v703 = vmul.f32 %v614, %v699
      %v704 = vmul.f32 %v615, %v700
      %v705 = vmul.f32 %v616, %v701
      %v706 = vmul.f32 %v617, %v702
      %v707 = vld [vmem:[%s2] sm:$0xff]
      %v708 = vld [vmem:[%s2 + $0x8] sm:$0xff]
      %v709 = vld [vmem:[%s2 + $0x10] sm:$0xff]
      %v710 = vld [vmem:[%s2 + $0x18] sm:$0xff]
      %v711 = vld [vmem:[%s2 + $0x20] sm:$0xff]
      %v712 = vld [vmem:[%s2 + $0x28] sm:$0xff]
      %v713 = vpack.c.bf16 %v708, %v707
      %v714 = vpack.c.bf16 %v710, %v709
      %v715 = vpack.c.bf16 %v712, %v711
      %v716 = vpack.c.bf16 %v705, %v703
      %v717 = vpack.c.bf16 %v706, %v704
      %vm718 = vcmask 130048
      %v720 = vsel %vm718, %v713, 0
      %v723 = vsel %vm718, %v714, 0
      %v726 = vsel %vm718, %v715, 0
      %728 = vmatprep.subr.bf16.mxu0 %v717
      %729 = vmatpush1.bf16.msra.mxu0 %v716
      %730 = vmatprep.subr.bf16.mxu0 0
      %731 = vmatpush1.bf16.msra.mxu0 0
      %732 = vmatprep.subr.bf16.mxu0 0
      %733 = vmatpush1.bf16.msra.mxu0 0
      %734 = vmatprep.subr.bf16.mxu0 0
      %735 = vmatpush1.bf16.msra.mxu0 0
      %736 = vmatprep.subr.bf16.mxu0 0
      %737 = vmatpush1.bf16.msra.mxu0 0
      %738 = vmatprep.subr.bf16.mxu0 0
      %739 = vmatpush1.bf16.msra.mxu0 0
      %740 = vmatprep.subr.bf16.mxu0 0
      %741 = vmatpush1.bf16.msra.mxu0 0
      %742 = vmatprep.subr.bf16.mxu0 0
      %743 = vmatpush1.bf16.msra.mxu0 0
      %744 = vmatprep.subr.bf16.mxu0 0
      %745 = vmatpush1.bf16.msra.mxu0 0
      %746 = vmatprep.subr.bf16.mxu0 0
      %747 = vmatpush1.bf16.msra.mxu0 0
      %748 = vmatprep.subr.bf16.mxu0 0
      %749 = vmatpush1.bf16.msra.mxu0 0
      %750 = vmatprep.subr.bf16.mxu0 0
      %751 = vmatpush1.bf16.msra.mxu0 0
      %752 = vmatprep.subr.bf16.mxu0 0
      %753 = vmatpush1.bf16.msra.mxu0 0
      %754 = vmatprep.subr.bf16.mxu0 0
      %755 = vmatpush1.bf16.msra.mxu0 0
      %756 = vmatprep.subr.bf16.mxu0 0
      %757 = vmatpush1.bf16.msra.mxu0 0
      %758 = vmatprep.subr.bf16.mxu0 0
      %759 = vmatpush1.bf16.msra.mxu0 0
      %760 = vmatprep.mubr.bf16.mxu0 0
      %761 = vmatmul.mubr.bf16.gmra.mrb[0].mxu0 %v720
      %v762 = vpop.f32.mrb[0].mxu0
      %v763 = vadd.f32 0.0, %v762
      %v764 = vpop.f32.mrb[0].mxu0
      %v765 = vadd.f32 0.0, %v764
      %v766 = vpop.f32.mrb[0].mxu0
      %v767 = vadd.f32 0.0, %v766
      %v768 = vpop.f32.mrb[0].mxu0
      %v769 = vadd.f32 0.0, %v768
      %770 = vmatprep.mubr.bf16.mxu0 0
      %771 = vmatmul.mubr.bf16.gmra.mrb[0].mxu0 %v723
      %v772 = vpop.f32.mrb[0].mxu0
      %v773 = vadd.f32 0.0, %v772
      %v774 = vpop.f32.mrb[0].mxu0
      %v775 = vadd.f32 0.0, %v774
      %v776 = vpop.f32.mrb[0].mxu0
      %v777 = vadd.f32 0.0, %v776
      %v778 = vpop.f32.mrb[0].mxu0
      %v779 = vadd.f32 0.0, %v778
      %780 = vmatprep.mubr.bf16.mxu0 0
      %781 = vmatmul.mubr.bf16.gmra.mrb[0].mxu0 %v726
      %v782 = vpop.f32.mrb[0].mxu0
      %v783 = vadd.f32 0.0, %v782
      %v784 = vpop.f32.mrb[0].mxu0
      %v785 = vadd.f32 0.0, %v784
      %v786 = vpop.f32.mrb[0].mxu0
      %v787 = vadd.f32 0.0, %v786
      %v788 = vpop.f32.mrb[0].mxu0
      %v789 = vadd.f32 0.0, %v788
      %790 = vdwg.mxu0
      %v793 = vcombine.low %v763, %v765
      %v794 = vcombine.high %v763, %v765
      %v796 = vunpack.c.l.s4 1966171168
      %v797 = vunpack.c.0.s8 %v796
      %v798 = vlaneseq
      %v799 = vshrl.u32 %v798, 7
      %v800 = vsub.s32 %v797, %v799
      %v801 = vrot.slane %v793, %v800
      %v803 = vunpack.c.l.s4 1966171168
      %v804 = vunpack.c.0.s8 %v803
      %v805 = vlaneseq
      %v806 = vshrl.u32 %v805, 7
      %v807 = vsub.s32 %v804, %v806
      %v808 = vrot.slane %v794, %v807
      %v809 = vcombine.high %v801, %v801
      %v810 = vcombine.high %v808, %v808
      %v812 = vunpack.c.l.s4 1966171168
      %v813 = vunpack.c.0.s8 %v812
      %v814 = vlaneseq
      %v815 = vshrl.u32 %v814, 7
      %v816 = vsub.s32 %v813, %v815
      %v817 = vrot.slane %v801, %v816
      %v819 = vunpack.c.l.s4 1966171168
      %v820 = vunpack.c.0.s8 %v819
      %v821 = vlaneseq
      %v822 = vshrl.u32 %v821, 7
      %v823 = vsub.s32 %v820, %v822
      %v824 = vrot.slane %v808, %v823
      %v826 = vunpack.c.l.s4 1966171168
      %v827 = vunpack.c.0.s8 %v826
      %v828 = vlaneseq
      %v829 = vshrl.u32 %v828, 7
      %v830 = vsub.s32 %v827, %v829
      %v831 = vrot.slane %v809, %v830
      %v833 = vunpack.c.l.s4 1966171168
      %v834 = vunpack.c.0.s8 %v833
      %v835 = vlaneseq
      %v836 = vshrl.u32 %v835, 7
      %v837 = vsub.s32 %v834, %v836
      %v838 = vrot.slane %v810, %v837
      %v839 = vcombine.high %v817, %v817
      %v840 = vcombine.high %v824, %v824
      %v841 = vcombine.high %v831, %v831
      %v842 = vcombine.high %v838, %v838
      %v843 = vlaneseq
      %v844 = vshrl.u32 %v843, 7
      %v845 = vsub.s32 0, %v844
      %v846 = vrot.slane %v817, %v845
      %v847 = vlaneseq
      %v848 = vshrl.u32 %v847, 7
      %v849 = vsub.s32 1, %v848
      %v850 = vrot.slane %v817, %v849
      %v851 = vlaneseq
      %v852 = vshrl.u32 %v851, 7
      %v853 = vsub.s32 0, %v852
      %v854 = vrot.slane %v831, %v853
      %v855 = vlaneseq
      %v856 = vshrl.u32 %v855, 7
      %v857 = vsub.s32 1, %v856
      %v858 = vrot.slane %v831, %v857
      %v859 = vlaneseq
      %v860 = vshrl.u32 %v859, 7
      %v861 = vsub.s32 0, %v860
      %v862 = vrot.slane %v839, %v861
      %v863 = vlaneseq
      %v864 = vshrl.u32 %v863, 7
      %v865 = vsub.s32 1, %v864
      %v866 = vrot.slane %v839, %v865
      %v867 = vlaneseq
      %v868 = vshrl.u32 %v867, 7
      %v869 = vsub.s32 0, %v868
      %v870 = vrot.slane %v841, %v869
      %v871 = vlaneseq
      %v872 = vshrl.u32 %v871, 7
      %v873 = vsub.s32 1, %v872
      %v874 = vrot.slane %v841, %v873
      %v875 = vlaneseq
      %v876 = vshrl.u32 %v875, 7
      %v877 = vsub.s32 0, %v876
      %v878 = vrot.slane %v824, %v877
      %v879 = vlaneseq
      %v880 = vshrl.u32 %v879, 7
      %v881 = vsub.s32 1, %v880
      %v882 = vrot.slane %v824, %v881
      %v883 = vlaneseq
      %v884 = vshrl.u32 %v883, 7
      %v885 = vsub.s32 0, %v884
      %v886 = vrot.slane %v838, %v885
      %v887 = vlaneseq
      %v888 = vshrl.u32 %v887, 7
      %v889 = vsub.s32 1, %v888
      %v890 = vrot.slane %v838, %v889
      %v891 = vlaneseq
      %v892 = vshrl.u32 %v891, 7
      %v893 = vsub.s32 0, %v892
      %v894 = vrot.slane %v840, %v893
      %v895 = vlaneseq
      %v896 = vshrl.u32 %v895, 7
      %v897 = vsub.s32 1, %v896
      %v898 = vrot.slane %v840, %v897
      %v899 = vlaneseq
      %v900 = vshrl.u32 %v899, 7
      %v901 = vsub.s32 0, %v900
      %v902 = vrot.slane %v842, %v901
      %v903 = vlaneseq
      %v904 = vshrl.u32 %v903, 7
      %v905 = vsub.s32 1, %v904
      %v906 = vrot.slane %v842, %v905
      %v923 = vmul.f32 %v846, %v773
      %v924 = vmul.f32 %v850, %v775
      %v925 = vmul.f32 %v854, %v773
      %v926 = vmul.f32 %v858, %v775
      %v927 = vmul.f32 %v862, %v773
      %v928 = vmul.f32 %v866, %v775
      %v929 = vmul.f32 %v870, %v773
      %v930 = vmul.f32 %v874, %v775
      %v931 = vmul.f32 %v878, %v773
      %v932 = vmul.f32 %v882, %v775
      %v933 = vmul.f32 %v886, %v773
      %v934 = vmul.f32 %v890, %v775
      %v935 = vmul.f32 %v894, %v773
      %v936 = vmul.f32 %v898, %v775
      %v937 = vmul.f32 %v902, %v773
      %v938 = vmul.f32 %v906, %v775
      %v941 = vcombine.low %v767, %v769
      %v942 = vcombine.high %v767, %v769
      %v944 = vunpack.c.l.s4 1966171168
      %v945 = vunpack.c.0.s8 %v944
      %v946 = vlaneseq
      %v947 = vshrl.u32 %v946, 7
      %v948 = vsub.s32 %v945, %v947
      %v949 = vrot.slane %v941, %v948
      %v951 = vunpack.c.l.s4 1966171168
      %v952 = vunpack.c.0.s8 %v951
      %v953 = vlaneseq
      %v954 = vshrl.u32 %v953, 7
      %v955 = vsub.s32 %v952, %v954
      %v956 = vrot.slane %v942, %v955
      %v957 = vcombine.high %v949, %v949
      %v958 = vcombine.high %v956, %v956
      %v960 = vunpack.c.l.s4 1966171168
      %v961 = vunpack.c.0.s8 %v960
      %v962 = vlaneseq
      %v963 = vshrl.u32 %v962, 7
      %v964 = vsub.s32 %v961, %v963
      %v965 = vrot.slane %v949, %v964
      %v967 = vunpack.c.l.s4 1966171168
      %v968 = vunpack.c.0.s8 %v967
      %v969 = vlaneseq
      %v970 = vshrl.u32 %v969, 7
      %v971 = vsub.s32 %v968, %v970
      %v972 = vrot.slane %v956, %v971
      %v974 = vunpack.c.l.s4 1966171168
      %v975 = vunpack.c.0.s8 %v974
      %v976 = vlaneseq
      %v977 = vshrl.u32 %v976, 7
      %v978 = vsub.s32 %v975, %v977
      %v979 = vrot.slane %v957, %v978
      %v981 = vunpack.c.l.s4 1966171168
      %v982 = vunpack.c.0.s8 %v981
      %v983 = vlaneseq
      %v984 = vshrl.u32 %v983, 7
      %v985 = vsub.s32 %v982, %v984
      %v986 = vrot.slane %v958, %v985
      %v987 = vcombine.high %v965, %v965
      %v988 = vcombine.high %v972, %v972
      %v989 = vcombine.high %v979, %v979
      %v990 = vcombine.high %v986, %v986
      %v991 = vlaneseq
      %v992 = vshrl.u32 %v991, 7
      %v993 = vsub.s32 0, %v992
      %v994 = vrot.slane %v965, %v993
      %v995 = vlaneseq
      %v996 = vshrl.u32 %v995, 7
      %v997 = vsub.s32 1, %v996
      %v998 = vrot.slane %v965, %v997
      %v999 = vlaneseq
      %v1000 = vshrl.u32 %v999, 7
      %v1001 = vsub.s32 0, %v1000
      %v1002 = vrot.slane %v979, %v1001
      %v1003 = vlaneseq
      %v1004 = vshrl.u32 %v1003, 7
      %v1005 = vsub.s32 1, %v1004
      %v1006 = vrot.slane %v979, %v1005
      %v1007 = vlaneseq
      %v1008 = vshrl.u32 %v1007, 7
      %v1009 = vsub.s32 0, %v1008
      %v1010 = vrot.slane %v987, %v1009
      %v1011 = vlaneseq
      %v1012 = vshrl.u32 %v1011, 7
      %v1013 = vsub.s32 1, %v1012
      %v1014 = vrot.slane %v987, %v1013
      %v1015 = vlaneseq
      %v1016 = vshrl.u32 %v1015, 7
      %v1017 = vsub.s32 0, %v1016
      %v1018 = vrot.slane %v989, %v1017
      %v1019 = vlaneseq
      %v1020 = vshrl.u32 %v1019, 7
      %v1021 = vsub.s32 1, %v1020
      %v1022 = vrot.slane %v989, %v1021
      %v1023 = vlaneseq
      %v1024 = vshrl.u32 %v1023, 7
      %v1025 = vsub.s32 0, %v1024
      %v1026 = vrot.slane %v972, %v1025
      %v1027 = vlaneseq
      %v1028 = vshrl.u32 %v1027, 7
      %v1029 = vsub.s32 1, %v1028
      %v1030 = vrot.slane %v972, %v1029
      %v1031 = vlaneseq
      %v1032 = vshrl.u32 %v1031, 7
      %v1033 = vsub.s32 0, %v1032
      %v1034 = vrot.slane %v986, %v1033
      %v1035 = vlaneseq
      %v1036 = vshrl.u32 %v1035, 7
      %v1037 = vsub.s32 1, %v1036
      %v1038 = vrot.slane %v986, %v1037
      %v1039 = vlaneseq
      %v1040 = vshrl.u32 %v1039, 7
      %v1041 = vsub.s32 0, %v1040
      %v1042 = vrot.slane %v988, %v1041
      %v1043 = vlaneseq
      %v1044 = vshrl.u32 %v1043, 7
      %v1045 = vsub.s32 1, %v1044
      %v1046 = vrot.slane %v988, %v1045
      %v1047 = vlaneseq
      %v1048 = vshrl.u32 %v1047, 7
      %v1049 = vsub.s32 0, %v1048
      %v1050 = vrot.slane %v990, %v1049
      %v1051 = vlaneseq
      %v1052 = vshrl.u32 %v1051, 7
      %v1053 = vsub.s32 1, %v1052
      %v1054 = vrot.slane %v990, %v1053
      %v1071 = vmul.f32 %v994, %v777
      %v1072 = vmul.f32 %v998, %v779
      %v1073 = vmul.f32 %v1002, %v777
      %v1074 = vmul.f32 %v1006, %v779
      %v1075 = vmul.f32 %v1010, %v777
      %v1076 = vmul.f32 %v1014, %v779
      %v1077 = vmul.f32 %v1018, %v777
      %v1078 = vmul.f32 %v1022, %v779
      %v1079 = vmul.f32 %v1026, %v777
      %v1080 = vmul.f32 %v1030, %v779
      %v1081 = vmul.f32 %v1034, %v777
      %v1082 = vmul.f32 %v1038, %v779
      %v1083 = vmul.f32 %v1042, %v777
      %v1084 = vmul.f32 %v1046, %v779
      %v1085 = vmul.f32 %v1050, %v777
      %v1086 = vmul.f32 %v1054, %v779
      %v1087 = vadd.f32 %v923, %v1071
      %v1088 = vadd.f32 %v924, %v1072
      %v1089 = vadd.f32 %v925, %v1073
      %v1090 = vadd.f32 %v926, %v1074
      %v1091 = vadd.f32 %v927, %v1075
      %v1092 = vadd.f32 %v928, %v1076
      %v1093 = vadd.f32 %v929, %v1077
      %v1094 = vadd.f32 %v930, %v1078
      %v1095 = vadd.f32 %v931, %v1079
      %v1096 = vadd.f32 %v932, %v1080
      %v1097 = vadd.f32 %v933, %v1081
      %v1098 = vadd.f32 %v934, %v1082
      %v1099 = vadd.f32 %v935, %v1083
      %v1100 = vadd.f32 %v936, %v1084
      %v1101 = vadd.f32 %v937, %v1085
      %v1102 = vadd.f32 %v938, %v1086
      %v1103 = vmul.f32 %v1087, 0.70710677
      %v1104 = vmul.f32 %v1088, 0.70710677
      %v1105 = vmul.f32 %v1089, 0.70710677
      %v1106 = vmul.f32 %v1090, 0.70710677
      %v1107 = vmul.f32 %v1091, 0.70710677
      %v1108 = vmul.f32 %v1092, 0.70710677
      %v1109 = vmul.f32 %v1093, 0.70710677
      %v1110 = vmul.f32 %v1094, 0.70710677
      %v1111 = vmul.f32 %v1095, 0.70710677
      %v1112 = vmul.f32 %v1096, 0.70710677
      %v1113 = vmul.f32 %v1097, 0.70710677
      %v1114 = vmul.f32 %v1098, 0.70710677
      %v1115 = vmul.f32 %v1099, 0.70710677
      %v1116 = vmul.f32 %v1100, 0.70710677
      %v1117 = vmul.f32 %v1101, 0.70710677
      %v1118 = vmul.f32 %v1102, 0.70710677
      %v1119 = vmul.f32 %v1103, 1.442695
      %v1120 = vpow.pop %v1119
      %v1121 = vmul.f32 %v1104, 1.442695
      %v1122 = vpow.pop %v1121
      %v1123 = vmul.f32 %v1105, 1.442695
      %v1124 = vpow.pop %v1123
      %v1125 = vmul.f32 %v1106, 1.442695
      %v1126 = vpow.pop %v1125
      %v1127 = vmul.f32 %v1107, 1.442695
      %v1128 = vpow.pop %v1127
      %v1129 = vmul.f32 %v1108, 1.442695
      %v1130 = vpow.pop %v1129
      %v1131 = vmul.f32 %v1109, 1.442695
      %v1132 = vpow.pop %v1131
      %v1133 = vmul.f32 %v1110, 1.442695
      %v1134 = vpow.pop %v1133
      %v1135 = vmul.f32 %v1111, 1.442695
      %v1136 = vpow.pop %v1135
      %v1137 = vmul.f32 %v1112, 1.442695
      %v1138 = vpow.pop %v1137
      %v1139 = vmul.f32 %v1113, 1.442695
      %v1140 = vpow.pop %v1139
      %v1141 = vmul.f32 %v1114, 1.442695
      %v1142 = vpow.pop %v1141
      %v1143 = vmul.f32 %v1115, 1.442695
      %v1144 = vpow.pop %v1143
      %v1145 = vmul.f32 %v1116, 1.442695
      %v1146 = vpow.pop %v1145
      %v1147 = vmul.f32 %v1117, 1.442695
      %v1148 = vpow.pop %v1147
      %v1149 = vmul.f32 %v1118, 1.442695
      %v1150 = vpow.pop %v1149
      %v1151 = vrot.slane %v1120, 4
      %v1152 = vadd.f32 %v1120, %v1151
      %v1153 = vrot.slane %v1152, 2
      %v1154 = vadd.f32 %v1152, %v1153
      %v1155 = vrot.slane %v1154, 1
      %v1156 = vadd.f32 %v1154, %v1155
      %v1157 = vrot.slane %v1122, 4
      %v1158 = vadd.f32 %v1122, %v1157
      %v1159 = vrot.slane %v1158, 2
      %v1160 = vadd.f32 %v1158, %v1159
      %v1161 = vrot.slane %v1160, 1
      %v1162 = vadd.f32 %v1160, %v1161
      %v1163 = vrot.slane %v1124, 4
      %v1164 = vadd.f32 %v1124, %v1163
      %v1165 = vrot.slane %v1164, 2
      %v1166 = vadd.f32 %v1164, %v1165
      %v1167 = vrot.slane %v1166, 1
      %v1168 = vadd.f32 %v1166, %v1167
      %v1169 = vrot.slane %v1126, 4
      %v1170 = vadd.f32 %v1126, %v1169
      %v1171 = vrot.slane %v1170, 2
      %v1172 = vadd.f32 %v1170, %v1171
      %v1173 = vrot.slane %v1172, 1
      %v1174 = vadd.f32 %v1172, %v1173
      %v1175 = vrot.slane %v1128, 4
      %v1176 = vadd.f32 %v1128, %v1175
      %v1177 = vrot.slane %v1176, 2
      %v1178 = vadd.f32 %v1176, %v1177
      %v1179 = vrot.slane %v1178, 1
      %v1180 = vadd.f32 %v1178, %v1179
      %v1181 = vrot.slane %v1130, 4
      %v1182 = vadd.f32 %v1130, %v1181
      %v1183 = vrot.slane %v1182, 2
      %v1184 = vadd.f32 %v1182, %v1183
      %v1185 = vrot.slane %v1184, 1
      %v1186 = vadd.f32 %v1184, %v1185
      %v1187 = vrot.slane %v1132, 4
      %v1188 = vadd.f32 %v1132, %v1187
      %v1189 = vrot.slane %v1188, 2
      %v1190 = vadd.f32 %v1188, %v1189
      %v1191 = vrot.slane %v1190, 1
      %v1192 = vadd.f32 %v1190, %v1191
      %v1193 = vrot.slane %v1134, 4
      %v1194 = vadd.f32 %v1134, %v1193
      %v1195 = vrot.slane %v1194, 2
      %v1196 = vadd.f32 %v1194, %v1195
      %v1197 = vrot.slane %v1196, 1
      %v1198 = vadd.f32 %v1196, %v1197
      %v1199 = vrot.slane %v1136, 4
      %v1200 = vadd.f32 %v1136, %v1199
      %v1201 = vrot.slane %v1200, 2
      %v1202 = vadd.f32 %v1200, %v1201
      %v1203 = vrot.slane %v1202, 1
      %v1204 = vadd.f32 %v1202, %v1203
      %v1205 = vrot.slane %v1138, 4
      %v1206 = vadd.f32 %v1138, %v1205
      %v1207 = vrot.slane %v1206, 2
      %v1208 = vadd.f32 %v1206, %v1207
      %v1209 = vrot.slane %v1208, 1
      %v1210 = vadd.f32 %v1208, %v1209
      %v1211 = vrot.slane %v1140, 4
      %v1212 = vadd.f32 %v1140, %v1211
      %v1213 = vrot.slane %v1212, 2
      %v1214 = vadd.f32 %v1212, %v1213
      %v1215 = vrot.slane %v1214, 1
      %v1216 = vadd.f32 %v1214, %v1215
      %v1217 = vrot.slane %v1142, 4
      %v1218 = vadd.f32 %v1142, %v1217
      %v1219 = vrot.slane %v1218, 2
      %v1220 = vadd.f32 %v1218, %v1219
      %v1221 = vrot.slane %v1220, 1
      %v1222 = vadd.f32 %v1220, %v1221
      %v1223 = vrot.slane %v1144, 4
      %v1224 = vadd.f32 %v1144, %v1223
      %v1225 = vrot.slane %v1224, 2
      %v1226 = vadd.f32 %v1224, %v1225
      %v1227 = vrot.slane %v1226, 1
      %v1228 = vadd.f32 %v1226, %v1227
      %v1229 = vrot.slane %v1146, 4
      %v1230 = vadd.f32 %v1146, %v1229
      %v1231 = vrot.slane %v1230, 2
      %v1232 = vadd.f32 %v1230, %v1231
      %v1233 = vrot.slane %v1232, 1
      %v1234 = vadd.f32 %v1232, %v1233
      %v1235 = vrot.slane %v1148, 4
      %v1236 = vadd.f32 %v1148, %v1235
      %v1237 = vrot.slane %v1236, 2
      %v1238 = vadd.f32 %v1236, %v1237
      %v1239 = vrot.slane %v1238, 1
      %v1240 = vadd.f32 %v1238, %v1239
      %v1241 = vrot.slane %v1150, 4
      %v1242 = vadd.f32 %v1150, %v1241
      %v1243 = vrot.slane %v1242, 2
      %v1244 = vadd.f32 %v1242, %v1243
      %v1245 = vrot.slane %v1244, 1
      %v1246 = vadd.f32 %v1244, %v1245
      %v1247 = vrcp.pop %v1156
      %v1248 = vrcp.pop %v1162
      %v1249 = vrcp.pop %v1168
      %v1250 = vrcp.pop %v1174
      %v1251 = vrcp.pop %v1180
      %v1252 = vrcp.pop %v1186
      %v1253 = vrcp.pop %v1192
      %v1254 = vrcp.pop %v1198
      %v1255 = vrcp.pop %v1204
      %v1256 = vrcp.pop %v1210
      %v1257 = vrcp.pop %v1216
      %v1258 = vrcp.pop %v1222
      %v1259 = vrcp.pop %v1228
      %v1260 = vrcp.pop %v1234
      %v1261 = vrcp.pop %v1240
      %v1262 = vrcp.pop %v1246
      %v1263 = vmul.f32 %v1120, %v783
      %v1264 = vmul.f32 %v1122, %v785
      %v1265 = vmul.f32 %v1124, %v783
      %v1266 = vmul.f32 %v1126, %v785
      %v1267 = vmul.f32 %v1128, %v783
      %v1268 = vmul.f32 %v1130, %v785
      %v1269 = vmul.f32 %v1132, %v783
      %v1270 = vmul.f32 %v1134, %v785
      %v1271 = vmul.f32 %v1136, %v783
      %v1272 = vmul.f32 %v1138, %v785
      %v1273 = vmul.f32 %v1140, %v783
      %v1274 = vmul.f32 %v1142, %v785
      %v1275 = vmul.f32 %v1144, %v783
      %v1276 = vmul.f32 %v1146, %v785
      %v1277 = vmul.f32 %v1148, %v783
      %v1278 = vmul.f32 %v1150, %v785
      %v1279 = vrot.slane %v1263, 4
      %v1280 = vadd.f32 %v1263, %v1279
      %v1281 = vrot.slane %v1280, 2
      %v1282 = vadd.f32 %v1280, %v1281
      %v1283 = vrot.slane %v1282, 1
      %v1284 = vadd.f32 %v1282, %v1283
      %v1285 = vrot.slane %v1264, 4
      %v1286 = vadd.f32 %v1264, %v1285
      %v1287 = vrot.slane %v1286, 2
      %v1288 = vadd.f32 %v1286, %v1287
      %v1289 = vrot.slane %v1288, 1
      %v1290 = vadd.f32 %v1288, %v1289
      %v1291 = vrot.slane %v1265, 4
      %v1292 = vadd.f32 %v1265, %v1291
      %v1293 = vrot.slane %v1292, 2
      %v1294 = vadd.f32 %v1292, %v1293
      %v1295 = vrot.slane %v1294, 1
      %v1296 = vadd.f32 %v1294, %v1295
      %v1297 = vrot.slane %v1266, 4
      %v1298 = vadd.f32 %v1266, %v1297
      %v1299 = vrot.slane %v1298, 2
      %v1300 = vadd.f32 %v1298, %v1299
      %v1301 = vrot.slane %v1300, 1
      %v1302 = vadd.f32 %v1300, %v1301
      %v1303 = vrot.slane %v1267, 4
      %v1304 = vadd.f32 %v1267, %v1303
      %v1305 = vrot.slane %v1304, 2
      %v1306 = vadd.f32 %v1304, %v1305
      %v1307 = vrot.slane %v1306, 1
      %v1308 = vadd.f32 %v1306, %v1307
      %v1309 = vrot.slane %v1268, 4
      %v1310 = vadd.f32 %v1268, %v1309
      %v1311 = vrot.slane %v1310, 2
      %v1312 = vadd.f32 %v1310, %v1311
      %v1313 = vrot.slane %v1312, 1
      %v1314 = vadd.f32 %v1312, %v1313
      %v1315 = vrot.slane %v1269, 4
      %v1316 = vadd.f32 %v1269, %v1315
      %v1317 = vrot.slane %v1316, 2
      %v1318 = vadd.f32 %v1316, %v1317
      %v1319 = vrot.slane %v1318, 1
      %v1320 = vadd.f32 %v1318, %v1319
      %v1321 = vrot.slane %v1270, 4
      %v1322 = vadd.f32 %v1270, %v1321
      %v1323 = vrot.slane %v1322, 2
      %v1324 = vadd.f32 %v1322, %v1323
      %v1325 = vrot.slane %v1324, 1
      %v1326 = vadd.f32 %v1324, %v1325
      %v1327 = vrot.slane %v1271, 4
      %v1328 = vadd.f32 %v1271, %v1327
      %v1329 = vrot.slane %v1328, 2
      %v1330 = vadd.f32 %v1328, %v1329
      %v1331 = vrot.slane %v1330, 1
      %v1332 = vadd.f32 %v1330, %v1331
      %v1333 = vrot.slane %v1272, 4
      %v1334 = vadd.f32 %v1272, %v1333
      %v1335 = vrot.slane %v1334, 2
      %v1336 = vadd.f32 %v1334, %v1335
      %v1337 = vrot.slane %v1336, 1
      %v1338 = vadd.f32 %v1336, %v1337
      %v1339 = vrot.slane %v1273, 4
      %v1340 = vadd.f32 %v1273, %v1339
      %v1341 = vrot.slane %v1340, 2
      %v1342 = vadd.f32 %v1340, %v1341
      %v1343 = vrot.slane %v1342, 1
      %v1344 = vadd.f32 %v1342, %v1343
      %v1345 = vrot.slane %v1274, 4
      %v1346 = vadd.f32 %v1274, %v1345
      %v1347 = vrot.slane %v1346, 2
      %v1348 = vadd.f32 %v1346, %v1347
      %v1349 = vrot.slane %v1348, 1
      %v1350 = vadd.f32 %v1348, %v1349
      %v1351 = vrot.slane %v1275, 4
      %v1352 = vadd.f32 %v1275, %v1351
      %v1353 = vrot.slane %v1352, 2
      %v1354 = vadd.f32 %v1352, %v1353
      %v1355 = vrot.slane %v1354, 1
      %v1356 = vadd.f32 %v1354, %v1355
      %v1357 = vrot.slane %v1276, 4
      %v1358 = vadd.f32 %v1276, %v1357
      %v1359 = vrot.slane %v1358, 2
      %v1360 = vadd.f32 %v1358, %v1359
      %v1361 = vrot.slane %v1360, 1
      %v1362 = vadd.f32 %v1360, %v1361
      %v1363 = vrot.slane %v1277, 4
      %v1364 = vadd.f32 %v1277, %v1363
      %v1365 = vrot.slane %v1364, 2
      %v1366 = vadd.f32 %v1364, %v1365
      %v1367 = vrot.slane %v1366, 1
      %v1368 = vadd.f32 %v1366, %v1367
      %v1369 = vrot.slane %v1278, 4
      %v1370 = vadd.f32 %v1278, %v1369
      %v1371 = vrot.slane %v1370, 2
      %v1372 = vadd.f32 %v1370, %v1371
      %v1373 = vrot.slane %v1372, 1
      %v1374 = vadd.f32 %v1372, %v1373
      %v1375 = vmul.f32 %v1284, %v1247
      %v1376 = vmul.f32 %v1290, %v1248
      %v1377 = vmul.f32 %v1296, %v1249
      %v1378 = vmul.f32 %v1302, %v1250
      %v1379 = vmul.f32 %v1308, %v1251
      %v1380 = vmul.f32 %v1314, %v1252
      %v1381 = vmul.f32 %v1320, %v1253
      %v1382 = vmul.f32 %v1326, %v1254
      %v1383 = vmul.f32 %v1332, %v1255
      %v1384 = vmul.f32 %v1338, %v1256
      %v1385 = vmul.f32 %v1344, %v1257
      %v1386 = vmul.f32 %v1350, %v1258
      %v1387 = vmul.f32 %v1356, %v1259
      %v1388 = vmul.f32 %v1362, %v1260
      %v1389 = vmul.f32 %v1368, %v1261
      %v1390 = vmul.f32 %v1374, %v1262
      %v1391 = vmul.f32 %v1120, %v787
      %v1392 = vmul.f32 %v1122, %v789
      %v1393 = vmul.f32 %v1124, %v787
      %v1394 = vmul.f32 %v1126, %v789
      %v1395 = vmul.f32 %v1128, %v787
      %v1396 = vmul.f32 %v1130, %v789
      %v1397 = vmul.f32 %v1132, %v787
      %v1398 = vmul.f32 %v1134, %v789
      %v1399 = vmul.f32 %v1136, %v787
      %v1400 = vmul.f32 %v1138, %v789
      %v1401 = vmul.f32 %v1140, %v787
      %v1402 = vmul.f32 %v1142, %v789
      %v1403 = vmul.f32 %v1144, %v787
      %v1404 = vmul.f32 %v1146, %v789
      %v1405 = vmul.f32 %v1148, %v787
      %v1406 = vmul.f32 %v1150, %v789
      %v1407 = vrot.slane %v1391, 4
      %v1408 = vadd.f32 %v1391, %v1407
      %v1409 = vrot.slane %v1408, 2
      %v1410 = vadd.f32 %v1408, %v1409
      %v1411 = vrot.slane %v1410, 1
      %v1412 = vadd.f32 %v1410, %v1411
      %v1413 = vrot.slane %v1392, 4
      %v1414 = vadd.f32 %v1392, %v1413
      %v1415 = vrot.slane %v1414, 2
      %v1416 = vadd.f32 %v1414, %v1415
      %v1417 = vrot.slane %v1416, 1
      %v1418 = vadd.f32 %v1416, %v1417
      %v1419 = vrot.slane %v1393, 4
      %v1420 = vadd.f32 %v1393, %v1419
      %v1421 = vrot.slane %v1420, 2
      %v1422 = vadd.f32 %v1420, %v1421
      %v1423 = vrot.slane %v1422, 1
      %v1424 = vadd.f32 %v1422, %v1423
      %v1425 = vrot.slane %v1394, 4
      %v1426 = vadd.f32 %v1394, %v1425
      %v1427 = vrot.slane %v1426, 2
      %v1428 = vadd.f32 %v1426, %v1427
      %v1429 = vrot.slane %v1428, 1
      %v1430 = vadd.f32 %v1428, %v1429
      %v1431 = vrot.slane %v1395, 4
      %v1432 = vadd.f32 %v1395, %v1431
      %v1433 = vrot.slane %v1432, 2
      %v1434 = vadd.f32 %v1432, %v1433
      %v1435 = vrot.slane %v1434, 1
      %v1436 = vadd.f32 %v1434, %v1435
      %v1437 = vrot.slane %v1396, 4
      %v1438 = vadd.f32 %v1396, %v1437
      %v1439 = vrot.slane %v1438, 2
      %v1440 = vadd.f32 %v1438, %v1439
      %v1441 = vrot.slane %v1440, 1
      %v1442 = vadd.f32 %v1440, %v1441
      %v1443 = vrot.slane %v1397, 4
      %v1444 = vadd.f32 %v1397, %v1443
      %v1445 = vrot.slane %v1444, 2
      %v1446 = vadd.f32 %v1444, %v1445
      %v1447 = vrot.slane %v1446, 1
      %v1448 = vadd.f32 %v1446, %v1447
      %v1449 = vrot.slane %v1398, 4
      %v1450 = vadd.f32 %v1398, %v1449
      %v1451 = vrot.slane %v1450, 2
      %v1452 = vadd.f32 %v1450, %v1451
      %v1453 = vrot.slane %v1452, 1
      %v1454 = vadd.f32 %v1452, %v1453
      %v1455 = vrot.slane %v1399, 4
      %v1456 = vadd.f32 %v1399, %v1455
      %v1457 = vrot.slane %v1456, 2
      %v1458 = vadd.f32 %v1456, %v1457
      %v1459 = vrot.slane %v1458, 1
      %v1460 = vadd.f32 %v1458, %v1459
      %v1461 = vrot.slane %v1400, 4
      %v1462 = vadd.f32 %v1400, %v1461
      %v1463 = vrot.slane %v1462, 2
      %v1464 = vadd.f32 %v1462, %v1463
      %v1465 = vrot.slane %v1464, 1
      %v1466 = vadd.f32 %v1464, %v1465
      %v1467 = vrot.slane %v1401, 4
      %v1468 = vadd.f32 %v1401, %v1467
      %v1469 = vrot.slane %v1468, 2
      %v1470 = vadd.f32 %v1468, %v1469
      %v1471 = vrot.slane %v1470, 1
      %v1472 = vadd.f32 %v1470, %v1471
      %v1473 = vrot.slane %v1402, 4
      %v1474 = vadd.f32 %v1402, %v1473
      %v1475 = vrot.slane %v1474, 2
      %v1476 = vadd.f32 %v1474, %v1475
      %v1477 = vrot.slane %v1476, 1
      %v1478 = vadd.f32 %v1476, %v1477
      %v1479 = vrot.slane %v1403, 4
      %v1480 = vadd.f32 %v1403, %v1479
      %v1481 = vrot.slane %v1480, 2
      %v1482 = vadd.f32 %v1480, %v1481
      %v1483 = vrot.slane %v1482, 1
      %v1484 = vadd.f32 %v1482, %v1483
      %v1485 = vrot.slane %v1404, 4
      %v1486 = vadd.f32 %v1404, %v1485
      %v1487 = vrot.slane %v1486, 2
      %v1488 = vadd.f32 %v1486, %v1487
      %v1489 = vrot.slane %v1488, 1
      %v1490 = vadd.f32 %v1488, %v1489
      %v1491 = vrot.slane %v1405, 4
      %v1492 = vadd.f32 %v1405, %v1491
      %v1493 = vrot.slane %v1492, 2
      %v1494 = vadd.f32 %v1492, %v1493
      %v1495 = vrot.slane %v1494, 1
      %v1496 = vadd.f32 %v1494, %v1495
      %v1497 = vrot.slane %v1406, 4
      %v1498 = vadd.f32 %v1406, %v1497
      %v1499 = vrot.slane %v1498, 2
      %v1500 = vadd.f32 %v1498, %v1499
      %v1501 = vrot.slane %v1500, 1
      %v1502 = vadd.f32 %v1500, %v1501
      %v1503 = vmul.f32 %v1412, %v1247
      %v1504 = vmul.f32 %v1418, %v1248
      %v1505 = vmul.f32 %v1424, %v1249
      %v1506 = vmul.f32 %v1430, %v1250
      %v1507 = vmul.f32 %v1436, %v1251
      %v1508 = vmul.f32 %v1442, %v1252
      %v1509 = vmul.f32 %v1448, %v1253
      %v1510 = vmul.f32 %v1454, %v1254
      %v1511 = vmul.f32 %v1460, %v1255
      %v1512 = vmul.f32 %v1466, %v1256
      %v1513 = vmul.f32 %v1472, %v1257
      %v1514 = vmul.f32 %v1478, %v1258
      %v1515 = vmul.f32 %v1484, %v1259
      %v1516 = vmul.f32 %v1490, %v1260
      %v1517 = vmul.f32 %v1496, %v1261
      %v1518 = vmul.f32 %v1502, %v1262
      %vm1535 = vcmask 1041409
      %v1536 = vsel %vm1535, %v1377, %v1375
      %vm1537 = vcmask 1042434
      %v1538 = vsel %vm1537, %v1379, %v1536
      %vm1539 = vcmask 1043459
      %v1540 = vsel %vm1539, %v1381, %v1538
      %vm1541 = vcmask 1044484
      %v1542 = vsel %vm1541, %v1383, %v1540
      %vm1543 = vcmask 1045509
      %v1544 = vsel %vm1543, %v1385, %v1542
      %vm1545 = vcmask 1046534
      %v1546 = vsel %vm1545, %v1387, %v1544
      %vm1547 = vcmask 1047559
      %v1548 = vsel %vm1547, %v1389, %v1546
      %v1549 = vsel %vm1535, %v1378, %v1376
      %v1550 = vsel %vm1537, %v1380, %v1549
      %v1551 = vsel %vm1539, %v1382, %v1550
      %v1552 = vsel %vm1541, %v1384, %v1551
      %v1553 = vsel %vm1543, %v1386, %v1552
      %v1554 = vsel %vm1545, %v1388, %v1553
      %v1555 = vsel %vm1547, %v1390, %v1554
      %v1574 = vsel %vm1535, %v1505, %v1503
      %v1575 = vsel %vm1537, %v1507, %v1574
      %v1576 = vsel %vm1539, %v1509, %v1575
      %v1577 = vsel %vm1541, %v1511, %v1576
      %v1578 = vsel %vm1543, %v1513, %v1577
      %v1579 = vsel %vm1545, %v1515, %v1578
      %v1580 = vsel %vm1547, %v1517, %v1579
      %v1581 = vsel %vm1535, %v1506, %v1504
      %v1582 = vsel %vm1537, %v1508, %v1581
      %v1583 = vsel %vm1539, %v1510, %v1582
      %v1584 = vsel %vm1541, %v1512, %v1583
      %v1585 = vsel %vm1543, %v1514, %v1584
      %v1586 = vsel %vm1545, %v1516, %v1585
      %v1587 = vsel %vm1547, %v1518, %v1586
      %v1590 = vld [vmem:[%s3] sm:$0xff]
      %v1591 = vld [vmem:[%s3 + $0x8] sm:$0xff]
      %v1592 = vpack.c.bf16 %v1591, %v1590
      %v1593 = vpack.c.bf16 %v1580, %v1548
      %v1594 = vpack.c.bf16 %v1587, %v1555
      %v1596 = vsel %vm718, %v1592, 0
      %1598 = vmatprep.subr.bf16.mxu0 %v1594
      %1599 = vmatpush1.bf16.msra.mxu0 %v1593
      %1600 = vmatprep.subr.bf16.mxu0 0
      %1601 = vmatpush1.bf16.msra.mxu0 0
      %1602 = vmatprep.subr.bf16.mxu0 0
      %1603 = vmatpush1.bf16.msra.mxu0 0
      %1604 = vmatprep.subr.bf16.mxu0 0
      %1605 = vmatpush1.bf16.msra.mxu0 0
      %1606 = vmatprep.subr.bf16.mxu0 0
      %1607 = vmatpush1.bf16.msra.mxu0 0
      %1608 = vmatprep.subr.bf16.mxu0 0
      %1609 = vmatpush1.bf16.msra.mxu0 0
      %1610 = vmatprep.subr.bf16.mxu0 0
      %1611 = vmatpush1.bf16.msra.mxu0 0
      %1612 = vmatprep.subr.bf16.mxu0 0
      %1613 = vmatpush1.bf16.msra.mxu0 0
      %1614 = vmatprep.subr.bf16.mxu0 0
      %1615 = vmatpush1.bf16.msra.mxu0 0
      %1616 = vmatprep.subr.bf16.mxu0 0
      %1617 = vmatpush1.bf16.msra.mxu0 0
      %1618 = vmatprep.subr.bf16.mxu0 0
      %1619 = vmatpush1.bf16.msra.mxu0 0
      %1620 = vmatprep.subr.bf16.mxu0 0
      %1621 = vmatpush1.bf16.msra.mxu0 0
      %1622 = vmatprep.subr.bf16.mxu0 0
      %1623 = vmatpush1.bf16.msra.mxu0 0
      %1624 = vmatprep.subr.bf16.mxu0 0
      %1625 = vmatpush1.bf16.msra.mxu0 0
      %1626 = vmatprep.subr.bf16.mxu0 0
      %1627 = vmatpush1.bf16.msra.mxu0 0
      %1628 = vmatprep.subr.bf16.mxu0 0
      %1629 = vmatpush1.bf16.msra.mxu0 0
      %1630 = vmatprep.mubr.bf16.mxu0 0
      %1631 = vmatmul.mubr.bf16.gmra.mrb[0].mxu0 %v1596
      %v1632 = vpop.f32.mrb[0].mxu0
      %v1633 = vadd.f32 0.0, %v1632
      %v1634 = vpop.f32.mrb[0].mxu0
      %v1635 = vadd.f32 0.0, %v1634
      %v1636 = vpop.f32.mrb[0].mxu0
      %v1637 = vadd.f32 0.0, %v1636
      %v1638 = vpop.f32.mrb[0].mxu0
      %v1639 = vadd.f32 0.0, %v1638
      %1640 = vdwg.mxu0
      %v1641 = vadd.f32 %v703, %v1633
      %v1642 = vadd.f32 %v704, %v1635
      %v1643 = vadd.f32 %v705, %v1637
      %v1644 = vadd.f32 %v706, %v1639
      %v1645 = vmax.f32 %v1641, 0.0
      %v1646 = vmax.f32 %v1642, 0.0
      %v1647 = vmax.f32 %v1643, 0.0
      %v1648 = vmax.f32 %v1644, 0.0
      %v1649 = vld [vmem:[%s4] sm:$0xff]
      %v1650 = vld [vmem:[%s4 + $0x8] sm:$0xff]
      %v1651 = vld [vmem:[%s4 + $0x10] sm:$0xff]
      %v1652 = vld [vmem:[%s4 + $0x18] sm:$0xff]
      %v1653 = vld [vmem:[%s4 + $0x20] sm:$0xff]
      %v1654 = vld [vmem:[%s4 + $0x28] sm:$0xff]
      %v1655 = vld [vmem:[%s4 + $0x30] sm:$0xff]
      %v1656 = vld [vmem:[%s4 + $0x38] sm:$0xff]
      %v1657 = vpack.c.bf16 %v1650, %v1649
      %v1658 = vpack.c.bf16 %v1652, %v1651
      %v1659 = vpack.c.bf16 %v1654, %v1653
      %v1660 = vpack.c.bf16 %v1656, %v1655
      %v1661 = vpack.c.bf16 %v1647, %v1645
      %v1662 = vpack.c.bf16 %v1648, %v1646
      %v1663 = vld [vmem:[%s5] sm:$0xff]
      %v1664 = vld [vmem:[%s5 + $0x8] sm:$0xff]
      %v1665 = vld [vmem:[%s5 + $0x10] sm:$0xff]
      %v1666 = vld [vmem:[%s5 + $0x18] sm:$0xff]
      %v1667 = vld [vmem:[%s5 + $0x20] sm:$0xff]
      %v1668 = vld [vmem:[%s5 + $0x28] sm:$0xff]
      %v1669 = vld [vmem:[%s5 + $0x30] sm:$0xff]
      %v1670 = vld [vmem:[%s5 + $0x38] sm:$0xff]
      %1672 = vset.pattern.permute.xlu0 0
      %1673 = vperm.xlu0 %1672, %v1663
      %v1674 = vpop.permute.xlu0 %1673
      %1677 = vset.pattern.permute.xlu0 0
      %1678 = vperm.xlu0 %1677, %v1664
      %v1679 = vpop.permute.xlu0 %1678
      %1682 = vset.pattern.permute.xlu0 0
      %1683 = vperm.xlu0 %1682, %v1665
      %v1684 = vpop.permute.xlu0 %1683
      %1687 = vset.pattern.permute.xlu0 0
      %1688 = vperm.xlu0 %1687, %v1666
      %v1689 = vpop.permute.xlu0 %1688
      %1692 = vset.pattern.permute.xlu0 0
      %1693 = vperm.xlu0 %1692, %v1667
      %v1694 = vpop.permute.xlu0 %1693
      %1697 = vset.pattern.permute.xlu0 0
      %1698 = vperm.xlu0 %1697, %v1668
      %v1699 = vpop.permute.xlu0 %1698
      %1702 = vset.pattern.permute.xlu0 0
      %1703 = vperm.xlu0 %1702, %v1669
      %v1704 = vpop.permute.xlu0 %1703
      %1707 = vset.pattern.permute.xlu0 0
      %1708 = vperm.xlu0 %1707, %v1670
      %v1709 = vpop.permute.xlu0 %1708
      %v1712 = vsel %vm718, %v1657, 0
      %v1715 = vsel %vm718, %v1658, 0
      %v1718 = vsel %vm718, %v1659, 0
      %v1721 = vsel %vm718, %v1660, 0
      %1723 = vmatprep.subr.bf16.mxu0 %v1662
      %1724 = vmatpush1.bf16.msra.mxu0 %v1661
      %1725 = vmatprep.subr.bf16.mxu0 0
      %1726 = vmatpush1.bf16.msra.mxu0 0
      %1727 = vmatprep.subr.bf16.mxu0 0
      %1728 = vmatpush1.bf16.msra.mxu0 0
      %1729 = vmatprep.subr.bf16.mxu0 0
      %1730 = vmatpush1.bf16.msra.mxu0 0
      %1731 = vmatprep.subr.bf16.mxu0 0
      %1732 = vmatpush1.bf16.msra.mxu0 0
      %1733 = vmatprep.subr.bf16.mxu0 0
      %1734 = vmatpush1.bf16.msra.mxu0 0
      %1735 = vmatprep.subr.bf16.mxu0 0
      %1736 = vmatpush1.bf16.msra.mxu0 0
      %1737 = vmatprep.subr.bf16.mxu0 0
      %1738 = vmatpush1.bf16.msra.mxu0 0
      %1739 = vmatprep.subr.bf16.mxu0 0
      %1740 = vmatpush1.bf16.msra.mxu0 0
      %1741 = vmatprep.subr.bf16.mxu0 0
      %1742 = vmatpush1.bf16.msra.mxu0 0
      %1743 = vmatprep.subr.bf16.mxu0 0
      %1744 = vmatpush1.bf16.msra.mxu0 0
      %1745 = vmatprep.subr.bf16.mxu0 0
      %1746 = vmatpush1.bf16.msra.mxu0 0
      %1747 = vmatprep.subr.bf16.mxu0 0
      %1748 = vmatpush1.bf16.msra.mxu0 0
      %1749 = vmatprep.subr.bf16.mxu0 0
      %1750 = vmatpush1.bf16.msra.mxu0 0
      %1751 = vmatprep.subr.bf16.mxu0 0
      %1752 = vmatpush1.bf16.msra.mxu0 0
      %1753 = vmatprep.subr.bf16.mxu0 0
      %1754 = vmatpush1.bf16.msra.mxu0 0
      %1755 = vmatprep.mubr.bf16.mxu0 0
      %1756 = vmatmul.mubr.bf16.gmra.mrb[0].mxu0 %v1712
      %v1757 = vpop.f32.mrb[0].mxu0
      %v1758 = vadd.f32 %v1674, %v1757
      %v1759 = vpop.f32.mrb[0].mxu0
      %v1760 = vadd.f32 %v1674, %v1759
      %v1761 = vpop.f32.mrb[0].mxu0
      %v1762 = vadd.f32 %v1679, %v1761
      %v1763 = vpop.f32.mrb[0].mxu0
      %v1764 = vadd.f32 %v1679, %v1763
      %1765 = vmatprep.mubr.bf16.mxu0 0
      %1766 = vmatmul.mubr.bf16.gmra.mrb[0].mxu0 %v1715
      %v1767 = vpop.f32.mrb[0].mxu0
      %v1768 = vadd.f32 %v1684, %v1767
      %v1769 = vpop.f32.mrb[0].mxu0
      %v1770 = vadd.f32 %v1684, %v1769
      %v1771 = vpop.f32.mrb[0].mxu0
      %v1772 = vadd.f32 %v1689, %v1771
      %v1773 = vpop.f32.mrb[0].mxu0
      %v1774 = vadd.f32 %v1689, %v1773
      %1775 = vmatprep.mubr.bf16.mxu0 0
      %1776 = vmatmul.mubr.bf16.gmra.mrb[0].mxu0 %v1718
      %v1777 = vpop.f32.mrb[0].mxu0
      %v1778 = vadd.f32 %v1694, %v1777
      %v1779 = vpop.f32.mrb[0].mxu0
      %v1780 = vadd.f32 %v1694, %v1779
      %v1781 = vpop.f32.mrb[0].mxu0
      %v1782 = vadd.f32 %v1699, %v1781
      %v1783 = vpop.f32.mrb[0].mxu0
      %v1784 = vadd.f32 %v1699, %v1783
      %1785 = vmatprep.mubr.bf16.mxu0 0
      %1786 = vmatmul.mubr.bf16.gmra.mrb[0].mxu0 %v1721
      %v1787 = vpop.f32.mrb[0].mxu0
      %v1788 = vadd.f32 %v1704, %v1787
      %v1789 = vpop.f32.mrb[0].mxu0
      %v1790 = vadd.f32 %v1704, %v1789
      %v1791 = vpop.f32.mrb[0].mxu0
      %v1792 = vadd.f32 %v1709, %v1791
      %v1793 = vpop.f32.mrb[0].mxu0
      %v1794 = vadd.f32 %v1709, %v1793
      %1795 = vdwg.mxu0
      %v1796 = vmax.f32 %v1758, 0.0
      %v1797 = vmax.f32 %v1760, 0.0
      %v1798 = vmax.f32 %v1762, 0.0
      %v1799 = vmax.f32 %v1764, 0.0
      %v1800 = vmax.f32 %v1768, 0.0
      %v1801 = vmax.f32 %v1770, 0.0
      %v1802 = vmax.f32 %v1772, 0.0
      %v1803 = vmax.f32 %v1774, 0.0
      %v1804 = vmax.f32 %v1778, 0.0
      %v1805 = vmax.f32 %v1780, 0.0
      %v1806 = vmax.f32 %v1782, 0.0
      %v1807 = vmax.f32 %v1784, 0.0
      %v1808 = vmax.f32 %v1788, 0.0
      %v1809 = vmax.f32 %v1790, 0.0
      %v1810 = vmax.f32 %v1792, 0.0
      %v1811 = vmax.f32 %v1794, 0.0
      %v1812 = vld [vmem:[%s6] sm:$0xff]
      %v1813 = vld [vmem:[%s6 + $0x8] sm:$0xff]
      %v1814 = vpack.c.bf16 %v1813, %v1812
      %v1815 = vpack.c.bf16 %v1798, %v1796
      %v1816 = vpack.c.bf16 %v1799, %v1797
      %v1817 = vpack.c.bf16 %v1802, %v1800
      %v1818 = vpack.c.bf16 %v1803, %v1801
      %v1819 = vpack.c.bf16 %v1806, %v1804
      %v1820 = vpack.c.bf16 %v1807, %v1805
      %v1821 = vpack.c.bf16 %v1810, %v1808
      %v1822 = vpack.c.bf16 %v1811, %v1809
      %v1823 = vld [vmem:[%s7] sm:$0xff]
      %v1824 = vld [vmem:[%s7 + $0x8] sm:$0xff]
      %1826 = vset.pattern.permute.xlu0 0
      %1827 = vperm.xlu0 %1826, %v1823
      %v1828 = vpop.permute.xlu0 %1827
      %1831 = vset.pattern.permute.xlu0 0
      %1832 = vperm.xlu0 %1831, %v1824
      %v1833 = vpop.permute.xlu0 %1832
      %vm1835 = vcmask 523264
      %v1837 = vsel %vm1835, %v1814, 0
      %1839 = vmatprep.subr.bf16.mxu0 %v1816
      %1840 = vmatpush1.bf16.msra.mxu0 %v1815
      %1841 = vmatprep.subr.bf16.mxu0 %v1818
      %1842 = vmatpush1.bf16.msra.mxu0 %v1817
      %1843 = vmatprep.subr.bf16.mxu0 %v1820
      %1844 = vmatpush1.bf16.msra.mxu0 %v1819
      %1845 = vmatprep.subr.bf16.mxu0 %v1822
      %1846 = vmatpush1.bf16.msra.mxu0 %v1821
      %1847 = vmatprep.subr.bf16.mxu0 0
      %1848 = vmatpush1.bf16.msra.mxu0 0
      %1849 = vmatprep.subr.bf16.mxu0 0
      %1850 = vmatpush1.bf16.msra.mxu0 0
      %1851 = vmatprep.subr.bf16.mxu0 0
      %1852 = vmatpush1.bf16.msra.mxu0 0
      %1853 = vmatprep.subr.bf16.mxu0 0
      %1854 = vmatpush1.bf16.msra.mxu0 0
      %1855 = vmatprep.subr.bf16.mxu0 0
      %1856 = vmatpush1.bf16.msra.mxu0 0
      %1857 = vmatprep.subr.bf16.mxu0 0
      %1858 = vmatpush1.bf16.msra.mxu0 0
      %1859 = vmatprep.subr.bf16.mxu0 0
      %1860 = vmatpush1.bf16.msra.mxu0 0
      %1861 = vmatprep.subr.bf16.mxu0 0
      %1862 = vmatpush1.bf16.msra.mxu0 0
      %1863 = vmatprep.subr.bf16.mxu0 0
      %1864 = vmatpush1.bf16.msra.mxu0 0
      %1865 = vmatprep.subr.bf16.mxu0 0
      %1866 = vmatpush1.bf16.msra.mxu0 0
      %1867 = vmatprep.subr.bf16.mxu0 0
      %1868 = vmatpush1.bf16.msra.mxu0 0
      %1869 = vmatprep.subr.bf16.mxu0 0
      %1870 = vmatpush1.bf16.msra.mxu0 0
      %1871 = vmatprep.mubr.bf16.mxu0 0
      %1872 = vmatmul.mubr.bf16.gmra.mrb[0].mxu0 %v1837
      %v1873 = vpop.f32.mrb[0].mxu0
      %v1874 = vadd.f32 %v1828, %v1873
      %v1875 = vpop.f32.mrb[0].mxu0
      %v1876 = vadd.f32 %v1828, %v1875
      %v1877 = vpop.f32.mrb[0].mxu0
      %v1878 = vadd.f32 %v1833, %v1877
      %v1879 = vpop.f32.mrb[0].mxu0
      %v1880 = vadd.f32 %v1833, %v1879
      %1881 = vdwg.mxu0
      %1882 = vmatprep.subr.mxu0 %v470
      %1883 = vmatpush1.msra.mxu0 %v469
      %1884 = vmatprep.subr.mxu0 %v472
      %1885 = vmatpush1.msra.mxu0 %v471
      %1886 = vmatprep.subr.mxu0 %v474
      %1887 = vmatpush1.msra.mxu0 %v473
      %1888 = vmatprep.subr.mxu0 %v476
      %1889 = vmatpush1.msra.mxu0 %v475
      %1890 = vmatprep.subr.mxu0 %v478
      %1891 = vmatpush1.msra.mxu0 %v477
      %1892 = vmatprep.subr.mxu0 %v480
      %1893 = vmatpush1.msra.mxu0 %v479
      %1894 = vmatprep.subr.mxu0 %v482
      %1895 = vmatpush1.msra.mxu0 %v481
      %1896 = vmatprep.subr.mxu0 %v484
      %1897 = vmatpush1.msra.mxu0 %v483
      %1898 = vmatprep.subr.mxu0 %v486
      %1899 = vmatpush1.msra.mxu0 %v485
      %1900 = vmatprep.subr.mxu0 %v488
      %1901 = vmatpush1.msra.mxu0 %v487
      %1902 = vmatprep.subr.mxu0 %v490
      %1903 = vmatpush1.msra.mxu0 %v489
      %1904 = vmatprep.subr.mxu0 %v492
      %1905 = vmatpush1.msra.mxu0 %v491
      %1906 = vmatprep.subr.mxu0 %v494
      %1907 = vmatpush1.msra.mxu0 %v493
      %1908 = vmatprep.subr.mxu0 %v496
      %1909 = vmatpush1.msra.mxu0 %v495
      %1910 = vmatprep.subr.mxu0 %v498
      %1911 = vmatpush1.msra.mxu0 %v497
      %1912 = vmatprep.subr.mxu0 %v500
      %1913 = vmatpush1.msra.mxu0 %v499
      %1914 = vmatprep.subr.mxu0 %v502
      %1915 = vmatpush1.msra.mxu0 %v501
      %1916 = vmatprep.subr.mxu0 %v504
      %1917 = vmatpush1.msra.mxu0 %v503
      %1918 = vmatprep.subr.mxu0 %v506
      %1919 = vmatpush1.msra.mxu0 %v505
      %1920 = vmatprep.subr.mxu0 %v508
      %1921 = vmatpush1.msra.mxu0 %v507
      %1922 = vmatprep.subr.mxu0 %v510
      %1923 = vmatpush1.msra.mxu0 %v509
      %1924 = vmatprep.subr.mxu0 %v512
      %1925 = vmatpush1.msra.mxu0 %v511
      %1926 = vmatprep.subr.mxu0 %v514
      %1927 = vmatpush1.msra.mxu0 %v513
      %1928 = vmatprep.subr.mxu0 %v516
      %1929 = vmatpush1.msra.mxu0 %v515
      %1930 = vmatprep.subr.mxu0 %v518
      %1931 = vmatpush1.msra.mxu0 %v517
      %1932 = vmatprep.subr.mxu0 %v520
      %1933 = vmatpush1.msra.mxu0 %v519
      %1934 = vmatprep.subr.mxu0 %v522
      %1935 = vmatpush1.msra.mxu0 %v521
      %1936 = vmatprep.subr.mxu0 %v524
      %1937 = vmatpush1.msra.mxu0 %v523
      %1938 = vmatprep.subr.mxu0 %v526
      %1939 = vmatpush1.msra.mxu0 %v525
      %1940 = vmatprep.subr.mxu0 %v528
      %1941 = vmatpush1.msra.mxu0 %v527
      %1942 = vmatprep.subr.mxu0 %v530
      %1943 = vmatpush1.msra.mxu0 %v529
      %1944 = vmatprep.subr.mxu0 %v532
      %1945 = vmatpush1.msra.mxu0 %v531
      %1946 = vmatprep.mubr.f32.mxu0 %v1876
      %1947 = vmatmul.mubr.f32.gmra.mrb[0].mxu0 %v1874
      %v1948 = vpop.f32.mrb[0].mxu0
      %v1949 = vadd.f32 0.0, %v1948
      %v1950 = vpop.f32.mrb[0].mxu0
      %v1951 = vadd.f32 0.0, %v1950
      %1952 = vmatprep.mubr.f32.mxu0 %v1880
      %1953 = vmatmul.mubr.f32.gmra.mrb[0].mxu0 %v1878
      %v1954 = vpop.f32.mrb[0].mxu0
      %v1955 = vadd.f32 0.0, %v1954
      %v1956 = vpop.f32.mrb[0].mxu0
      %v1957 = vadd.f32 0.0, %v1956
      %1958 = vdwg.mxu0
      %v1959 = vsub.f32 %v1874, %v1949
      %v1960 = vsub.f32 %v1876, %v1951
      %v1961 = vsub.f32 %v1878, %v1955
      %v1962 = vsub.f32 %v1880, %v1957
      %v1963 = vmul.f32 %v1959, %v1959
      %v1964 = vmul.f32 %v1960, %v1960
      %v1965 = vmul.f32 %v1961, %v1961
      %v1966 = vmul.f32 %v1962, %v1962
      %1967 = vmatprep.subr.mxu0 %v470
      %1968 = vmatpush1.msra.mxu0 %v469
      %1969 = vmatprep.subr.mxu0 %v472
      %1970 = vmatpush1.msra.mxu0 %v471
      %1971 = vmatprep.subr.mxu0 %v474
      %1972 = vmatpush1.msra.mxu0 %v473
      %1973 = vmatprep.subr.mxu0 %v476
      %1974 = vmatpush1.msra.mxu0 %v475
      %1975 = vmatprep.subr.mxu0 %v478
      %1976 = vmatpush1.msra.mxu0 %v477
      %1977 = vmatprep.subr.mxu0 %v480
      %1978 = vmatpush1.msra.mxu0 %v479
      %1979 = vmatprep.subr.mxu0 %v482
      %1980 = vmatpush1.msra.mxu0 %v481
      %1981 = vmatprep.subr.mxu0 %v484
      %1982 = vmatpush1.msra.mxu0 %v483
      %1983 = vmatprep.subr.mxu0 %v486
      %1984 = vmatpush1.msra.mxu0 %v485
      %1985 = vmatprep.subr.mxu0 %v488
      %1986 = vmatpush1.msra.mxu0 %v487
      %1987 = vmatprep.subr.mxu0 %v490
      %1988 = vmatpush1.msra.mxu0 %v489
      %1989 = vmatprep.subr.mxu0 %v492
      %1990 = vmatpush1.msra.mxu0 %v491
      %1991 = vmatprep.subr.mxu0 %v494
      %1992 = vmatpush1.msra.mxu0 %v493
      %1993 = vmatprep.subr.mxu0 %v496
      %1994 = vmatpush1.msra.mxu0 %v495
      %1995 = vmatprep.subr.mxu0 %v498
      %1996 = vmatpush1.msra.mxu0 %v497
      %1997 = vmatprep.subr.mxu0 %v500
      %1998 = vmatpush1.msra.mxu0 %v499
      %1999 = vmatprep.subr.mxu0 %v502
      %2000 = vmatpush1.msra.mxu0 %v501
      %2001 = vmatprep.subr.mxu0 %v504
      %2002 = vmatpush1.msra.mxu0 %v503
      %2003 = vmatprep.subr.mxu0 %v506
      %2004 = vmatpush1.msra.mxu0 %v505
      %2005 = vmatprep.subr.mxu0 %v508
      %2006 = vmatpush1.msra.mxu0 %v507
      %2007 = vmatprep.subr.mxu0 %v510
      %2008 = vmatpush1.msra.mxu0 %v509
      %2009 = vmatprep.subr.mxu0 %v512
      %2010 = vmatpush1.msra.mxu0 %v511
      %2011 = vmatprep.subr.mxu0 %v514
      %2012 = vmatpush1.msra.mxu0 %v513
      %2013 = vmatprep.subr.mxu0 %v516
      %2014 = vmatpush1.msra.mxu0 %v515
      %2015 = vmatprep.subr.mxu0 %v518
      %2016 = vmatpush1.msra.mxu0 %v517
      %2017 = vmatprep.subr.mxu0 %v520
      %2018 = vmatpush1.msra.mxu0 %v519
      %2019 = vmatprep.subr.mxu0 %v522
      %2020 = vmatpush1.msra.mxu0 %v521
      %2021 = vmatprep.subr.mxu0 %v524
      %2022 = vmatpush1.msra.mxu0 %v523
      %2023 = vmatprep.subr.mxu0 %v526
      %2024 = vmatpush1.msra.mxu0 %v525
      %2025 = vmatprep.subr.mxu0 %v528
      %2026 = vmatpush1.msra.mxu0 %v527
      %2027 = vmatprep.subr.mxu0 %v530
      %2028 = vmatpush1.msra.mxu0 %v529
      %2029 = vmatprep.subr.mxu0 %v532
      %2030 = vmatpush1.msra.mxu0 %v531
      %2031 = vmatprep.mubr.f32.mxu0 %v1964
      %2032 = vmatmul.mubr.f32.gmra.mrb[0].mxu0 %v1963
      %v2033 = vpop.f32.mrb[0].mxu0
      %v2034 = vadd.f32 1e-05, %v2033
      %v2035 = vpop.f32.mrb[0].mxu0
      %v2036 = vadd.f32 1e-05, %v2035
      %2037 = vmatprep.mubr.f32.mxu0 %v1966
      %2038 = vmatmul.mubr.f32.gmra.mrb[0].mxu0 %v1965
      %v2039 = vpop.f32.mrb[0].mxu0
      %v2040 = vadd.f32 1e-05, %v2039
      %v2041 = vpop.f32.mrb[0].mxu0
      %v2042 = vadd.f32 1e-05, %v2041
      %2043 = vdwg.mxu0
      %v2044 = vrsqrt.pop %v2034
      %v2045 = vrsqrt.pop %v2036
      %v2046 = vrsqrt.pop %v2040
      %v2047 = vrsqrt.pop %v2042
      %v2048 = vmul.f32 %v1959, %v2044
      %v2049 = vmul.f32 %v1960, %v2045
      %v2050 = vmul.f32 %v1961, %v2046
      %v2051 = vmul.f32 %v1962, %v2047
      %v2052 = vmul.f32 %v533, 1e+12
      %v2053 = vmul.f32 %v534, 1e+12
      %v2054 = vmul.f32 %v535, 1e+12
      %v2055 = vmul.f32 %v536, 1e+12
      %v2056 = vadd.f32 %v2048, %v2052
      %v2057 = vadd.f32 %v2049, %v2053
      %v2058 = vadd.f32 %v2050, %v2054
      %v2059 = vadd.f32 %v2051, %v2055
      %v2060 = vmax.f32 %v2056, 0.0
      %v2061 = vmax.f32 %v2057, 0.0
      %v2062 = vmax.f32 %v2058, 0.0
      %v2063 = vmax.f32 %v2059, 0.0
      %v2064 = vrcp.pop 1000000.0
      %v2065 = vmul.f32 %v2060, %v2064
      %v2066 = vmul.f32 %v2061, %v2064
      %v2067 = vmul.f32 %v2062, %v2064
      %v2068 = vmul.f32 %v2063, %v2064
      %v2069 = vfloor.f32 %v2065
      %v2070 = vfloor.f32 %v2066
      %v2071 = vfloor.f32 %v2067
      %v2072 = vfloor.f32 %v2068
      %2073 = vmatprep.subr.mxu0 %v470
      %2074 = vmatpush1.msra.mxu0 %v469
      %2075 = vmatprep.subr.mxu0 %v472
      %2076 = vmatpush1.msra.mxu0 %v471
      %2077 = vmatprep.subr.mxu0 %v474
      %2078 = vmatpush1.msra.mxu0 %v473
      %2079 = vmatprep.subr.mxu0 %v476
      %2080 = vmatpush1.msra.mxu0 %v475
      %2081 = vmatprep.subr.mxu0 %v478
      %2082 = vmatpush1.msra.mxu0 %v477
      %2083 = vmatprep.subr.mxu0 %v480
      %2084 = vmatpush1.msra.mxu0 %v479
      %2085 = vmatprep.subr.mxu0 %v482
      %2086 = vmatpush1.msra.mxu0 %v481
      %2087 = vmatprep.subr.mxu0 %v484
      %2088 = vmatpush1.msra.mxu0 %v483
      %2089 = vmatprep.subr.mxu0 %v486
      %2090 = vmatpush1.msra.mxu0 %v485
      %2091 = vmatprep.subr.mxu0 %v488
      %2092 = vmatpush1.msra.mxu0 %v487
      %2093 = vmatprep.subr.mxu0 %v490
      %2094 = vmatpush1.msra.mxu0 %v489
      %2095 = vmatprep.subr.mxu0 %v492
      %2096 = vmatpush1.msra.mxu0 %v491
      %2097 = vmatprep.subr.mxu0 %v494
      %2098 = vmatpush1.msra.mxu0 %v493
      %2099 = vmatprep.subr.mxu0 %v496
      %2100 = vmatpush1.msra.mxu0 %v495
      %2101 = vmatprep.subr.mxu0 %v498
      %2102 = vmatpush1.msra.mxu0 %v497
      %2103 = vmatprep.subr.mxu0 %v500
      %2104 = vmatpush1.msra.mxu0 %v499
      %2105 = vmatprep.subr.mxu0 %v502
      %2106 = vmatpush1.msra.mxu0 %v501
      %2107 = vmatprep.subr.mxu0 %v504
      %2108 = vmatpush1.msra.mxu0 %v503
      %2109 = vmatprep.subr.mxu0 %v506
      %2110 = vmatpush1.msra.mxu0 %v505
      %2111 = vmatprep.subr.mxu0 %v508
      %2112 = vmatpush1.msra.mxu0 %v507
      %2113 = vmatprep.subr.mxu0 %v510
      %2114 = vmatpush1.msra.mxu0 %v509
      %2115 = vmatprep.subr.mxu0 %v512
      %2116 = vmatpush1.msra.mxu0 %v511
      %2117 = vmatprep.subr.mxu0 %v514
      %2118 = vmatpush1.msra.mxu0 %v513
      %2119 = vmatprep.subr.mxu0 %v516
      %2120 = vmatpush1.msra.mxu0 %v515
      %2121 = vmatprep.subr.mxu0 %v518
      %2122 = vmatpush1.msra.mxu0 %v517
      %2123 = vmatprep.subr.mxu0 %v520
      %2124 = vmatpush1.msra.mxu0 %v519
      %2125 = vmatprep.subr.mxu0 %v522
      %2126 = vmatpush1.msra.mxu0 %v521
      %2127 = vmatprep.subr.mxu0 %v524
      %2128 = vmatpush1.msra.mxu0 %v523
      %2129 = vmatprep.subr.mxu0 %v526
      %2130 = vmatpush1.msra.mxu0 %v525
      %2131 = vmatprep.subr.mxu0 %v528
      %2132 = vmatpush1.msra.mxu0 %v527
      %2133 = vmatprep.subr.mxu0 %v530
      %2134 = vmatpush1.msra.mxu0 %v529
      %2135 = vmatprep.subr.mxu0 %v532
      %2136 = vmatpush1.msra.mxu0 %v531
      %2137 = vmatprep.mubr.f32.mxu0 %v2070
      %2138 = vmatmul.mubr.f32.gmra.mrb[0].mxu0 %v2069
      %v2139 = vpop.f32.mrb[0].mxu0
      %v2140 = vadd.f32 0.0, %v2139
      %v2141 = vpop.f32.mrb[0].mxu0
      %v2142 = vadd.f32 0.0, %v2141
      %2143 = vmatprep.mubr.f32.mxu0 %v2072
      %2144 = vmatmul.mubr.f32.gmra.mrb[0].mxu0 %v2071
      %v2145 = vpop.f32.mrb[0].mxu0
      %v2146 = vadd.f32 0.0, %v2145
      %v2147 = vpop.f32.mrb[0].mxu0
      %v2148 = vadd.f32 0.0, %v2147
      %2149 = vdwg.mxu0
      %v2150 = vsub.f32 %v2069, %v2140
      %v2151 = vsub.f32 %v2070, %v2142
      %v2152 = vsub.f32 %v2071, %v2146
      %v2153 = vsub.f32 %v2072, %v2148
      %v2154 = vmul.f32 %v2150, %v2150
      %v2155 = vmul.f32 %v2151, %v2151
      %v2156 = vmul.f32 %v2152, %v2152
      %v2157 = vmul.f32 %v2153, %v2153
      %2158 = vmatprep.subr.mxu0 %v470
      %2159 = vmatpush1.msra.mxu0 %v469
      %2160 = vmatprep.subr.mxu0 %v472
      %2161 = vmatpush1.msra.mxu0 %v471
      %2162 = vmatprep.subr.mxu0 %v474
      %2163 = vmatpush1.msra.mxu0 %v473
      %2164 = vmatprep.subr.mxu0 %v476
      %2165 = vmatpush1.msra.mxu0 %v475
      %2166 = vmatprep.subr.mxu0 %v478
      %2167 = vmatpush1.msra.mxu0 %v477
      %2168 = vmatprep.subr.mxu0 %v480
      %2169 = vmatpush1.msra.mxu0 %v479
      %2170 = vmatprep.subr.mxu0 %v482
      %2171 = vmatpush1.msra.mxu0 %v481
      %2172 = vmatprep.subr.mxu0 %v484
      %2173 = vmatpush1.msra.mxu0 %v483
      %2174 = vmatprep.subr.mxu0 %v486
      %2175 = vmatpush1.msra.mxu0 %v485
      %2176 = vmatprep.subr.mxu0 %v488
      %2177 = vmatpush1.msra.mxu0 %v487
      %2178 = vmatprep.subr.mxu0 %v490
      %2179 = vmatpush1.msra.mxu0 %v489
      %2180 = vmatprep.subr.mxu0 %v492
      %2181 = vmatpush1.msra.mxu0 %v491
      %2182 = vmatprep.subr.mxu0 %v494
      %2183 = vmatpush1.msra.mxu0 %v493
      %2184 = vmatprep.subr.mxu0 %v496
      %2185 = vmatpush1.msra.mxu0 %v495
      %2186 = vmatprep.subr.mxu0 %v498
      %2187 = vmatpush1.msra.mxu0 %v497
      %2188 = vmatprep.subr.mxu0 %v500
      %2189 = vmatpush1.msra.mxu0 %v499
      %2190 = vmatprep.subr.mxu0 %v502
      %2191 = vmatpush1.msra.mxu0 %v501
      %2192 = vmatprep.subr.mxu0 %v504
      %2193 = vmatpush1.msra.mxu0 %v503
      %2194 = vmatprep.subr.mxu0 %v506
      %2195 = vmatpush1.msra.mxu0 %v505
      %2196 = vmatprep.subr.mxu0 %v508
      %2197 = vmatpush1.msra.mxu0 %v507
      %2198 = vmatprep.subr.mxu0 %v510
      %2199 = vmatpush1.msra.mxu0 %v509
      %2200 = vmatprep.subr.mxu0 %v512
      %2201 = vmatpush1.msra.mxu0 %v511
      %2202 = vmatprep.subr.mxu0 %v514
      %2203 = vmatpush1.msra.mxu0 %v513
      %2204 = vmatprep.subr.mxu0 %v516
      %2205 = vmatpush1.msra.mxu0 %v515
      %2206 = vmatprep.subr.mxu0 %v518
      %2207 = vmatpush1.msra.mxu0 %v517
      %2208 = vmatprep.subr.mxu0 %v520
      %2209 = vmatpush1.msra.mxu0 %v519
      %2210 = vmatprep.subr.mxu0 %v522
      %2211 = vmatpush1.msra.mxu0 %v521
      %2212 = vmatprep.subr.mxu0 %v524
      %2213 = vmatpush1.msra.mxu0 %v523
      %2214 = vmatprep.subr.mxu0 %v526
      %2215 = vmatpush1.msra.mxu0 %v525
      %2216 = vmatprep.subr.mxu0 %v528
      %2217 = vmatpush1.msra.mxu0 %v527
      %2218 = vmatprep.subr.mxu0 %v530
      %2219 = vmatpush1.msra.mxu0 %v529
      %2220 = vmatprep.subr.mxu0 %v532
      %2221 = vmatpush1.msra.mxu0 %v531
      %2222 = vmatprep.mubr.f32.mxu0 %v2155
      %2223 = vmatmul.mubr.f32.gmra.mrb[0].mxu0 %v2154
      %v2224 = vpop.f32.mrb[0].mxu0
      %v2225 = vadd.f32 1e-17, %v2224
      %v2226 = vpop.f32.mrb[0].mxu0
      %v2227 = vadd.f32 1e-17, %v2226
      %2228 = vmatprep.mubr.f32.mxu0 %v2157
      %2229 = vmatmul.mubr.f32.gmra.mrb[0].mxu0 %v2156
      %v2230 = vpop.f32.mrb[0].mxu0
      %v2231 = vadd.f32 1e-17, %v2230
      %v2232 = vpop.f32.mrb[0].mxu0
      %v2233 = vadd.f32 1e-17, %v2232
      %2234 = vdwg.mxu0
      %v2235 = vrsqrt.pop %v2225
      %v2236 = vrsqrt.pop %v2227
      %v2237 = vrsqrt.pop %v2231
      %v2238 = vrsqrt.pop %v2233
      %v2239 = vmul.f32 %v2150, %v2235
      %v2240 = vmul.f32 %v2151, %v2236
      %v2241 = vmul.f32 %v2152, %v2237
      %v2242 = vmul.f32 %v2153, %v2238
      %v2243 = vld [vmem:[%s8] sm:$0xff]
      %v2244 = vld [vmem:[%s8 + $0x8] sm:$0xff]
      %v2245 = vld [vmem:[%s8 + $0x10] sm:$0xff]
      %v2246 = vld [vmem:[%s8 + $0x18] sm:$0xff]
      %v2247 = vld [vmem:[%s8 + $0x20] sm:$0xff]
      %v2248 = vld [vmem:[%s8 + $0x28] sm:$0xff]
      %v2249 = vpack.c.bf16 %v2244, %v2243
      %v2250 = vpack.c.bf16 %v2246, %v2245
      %v2251 = vpack.c.bf16 %v2248, %v2247
      %v2252 = vpack.c.bf16 %v2241, %v2239
      %v2253 = vpack.c.bf16 %v2242, %v2240
      %v2255 = vsel %vm718, %v2249, 0
      %v2258 = vsel %vm718, %v2250, 0
      %v2261 = vsel %vm718, %v2251, 0
      %2263 = vmatprep.subr.bf16.mxu0 %v2253
      %2264 = vmatpush1.bf16.msra.mxu0 %v2252
      %2265 = vmatprep.subr.bf16.mxu0 0
      %2266 = vmatpush1.bf16.msra.mxu0 0
      %2267 = vmatprep.subr.bf16.mxu0 0
      %2268 = vmatpush1.bf16.msra.mxu0 0
      %2269 = vmatprep.subr.bf16.mxu0 0
      %2270 = vmatpush1.bf16.msra.mxu0 0
      %2271 = vmatprep.subr.bf16.mxu0 0
      %2272 = vmatpush1.bf16.msra.mxu0 0
      %2273 = vmatprep.subr.bf16.mxu0 0
      %2274 = vmatpush1.bf16.msra.mxu0 0
      %2275 = vmatprep.subr.bf16.mxu0 0
      %2276 = vmatpush1.bf16.msra.mxu0 0
      %2277 = vmatprep.subr.bf16.mxu0 0
      %2278 = vmatpush1.bf16.msra.mxu0 0
      %2279 = vmatprep.subr.bf16.mxu0 0
      %2280 = vmatpush1.bf16.msra.mxu0 0
      %2281 = vmatprep.subr.bf16.mxu0 0
      %2282 = vmatpush1.bf16.msra.mxu0 0
      %2283 = vmatprep.subr.bf16.mxu0 0
      %2284 = vmatpush1.bf16.msra.mxu0 0
      %2285 = vmatprep.subr.bf16.mxu0 0
      %2286 = vmatpush1.bf16.msra.mxu0 0
      %2287 = vmatprep.subr.bf16.mxu0 0
      %2288 = vmatpush1.bf16.msra.mxu0 0
      %2289 = vmatprep.subr.bf16.mxu0 0
      %2290 = vmatpush1.bf16.msra.mxu0 0
      %2291 = vmatprep.subr.bf16.mxu0 0
      %2292 = vmatpush1.bf16.msra.mxu0 0
      %2293 = vmatprep.subr.bf16.mxu0 0
      %2294 = vmatpush1.bf16.msra.mxu0 0
      %2295 = vmatprep.mubr.bf16.mxu0 0
      %2296 = vmatmul.mubr.bf16.gmra.mrb[0].mxu0 %v2255
      %v2297 = vpop.f32.mrb[0].mxu0
      %v2298 = vadd.f32 0.0, %v2297
      %v2299 = vpop.f32.mrb[0].mxu0
      %v2300 = vadd.f32 0.0, %v2299
      %v2301 = vpop.f32.mrb[0].mxu0
      %v2302 = vadd.f32 0.0, %v2301
      %v2303 = vpop.f32.mrb[0].mxu0
      %v2304 = vadd.f32 0.0, %v2303
      %2305 = vmatprep.mubr.bf16.mxu0 0
      %2306 = vmatmul.mubr.bf16.gmra.mrb[0].mxu0 %v2258
      %v2307 = vpop.f32.mrb[0].mxu0
      %v2308 = vadd.f32 0.0, %v2307
      %v2309 = vpop.f32.mrb[0].mxu0
      %v2310 = vadd.f32 0.0, %v2309
      %v2311 = vpop.f32.mrb[0].mxu0
      %v2312 = vadd.f32 0.0, %v2311
      %v2313 = vpop.f32.mrb[0].mxu0
      %v2314 = vadd.f32 0.0, %v2313
      %2315 = vmatprep.mubr.bf16.mxu0 0
      %2316 = vmatmul.mubr.bf16.gmra.mrb[0].mxu0 %v2261
      %v2317 = vpop.f32.mrb[0].mxu0
      %v2318 = vadd.f32 0.0, %v2317
      %v2319 = vpop.f32.mrb[0].mxu0
      %v2320 = vadd.f32 0.0, %v2319
      %v2321 = vpop.f32.mrb[0].mxu0
      %v2322 = vadd.f32 0.0, %v2321
      %v2323 = vpop.f32.mrb[0].mxu0
      %v2324 = vadd.f32 0.0, %v2323
      %2325 = vdwg.mxu0
      %v2328 = vcombine.low %v2298, %v2300
      %v2329 = vcombine.high %v2298, %v2300
      %v2331 = vunpack.c.l.s4 1966171168
      %v2332 = vunpack.c.0.s8 %v2331
      %v2333 = vlaneseq
      %v2334 = vshrl.u32 %v2333, 7
      %v2335 = vsub.s32 %v2332, %v2334
      %v2336 = vrot.slane %v2328, %v2335
      %v2338 = vunpack.c.l.s4 1966171168
      %v2339 = vunpack.c.0.s8 %v2338
      %v2340 = vlaneseq
      %v2341 = vshrl.u32 %v2340, 7
      %v2342 = vsub.s32 %v2339, %v2341
      %v2343 = vrot.slane %v2329, %v2342
      %v2344 = vcombine.high %v2336, %v2336
      %v2345 = vcombine.high %v2343, %v2343
      %v2347 = vunpack.c.l.s4 1966171168
      %v2348 = vunpack.c.0.s8 %v2347
      %v2349 = vlaneseq
      %v2350 = vshrl.u32 %v2349, 7
      %v2351 = vsub.s32 %v2348, %v2350
      %v2352 = vrot.slane %v2336, %v2351
      %v2354 = vunpack.c.l.s4 1966171168
      %v2355 = vunpack.c.0.s8 %v2354
      %v2356 = vlaneseq
      %v2357 = vshrl.u32 %v2356, 7
      %v2358 = vsub.s32 %v2355, %v2357
      %v2359 = vrot.slane %v2343, %v2358
      %v2361 = vunpack.c.l.s4 1966171168
      %v2362 = vunpack.c.0.s8 %v2361
      %v2363 = vlaneseq
      %v2364 = vshrl.u32 %v2363, 7
      %v2365 = vsub.s32 %v2362, %v2364
      %v2366 = vrot.slane %v2344, %v2365
      %v2368 = vunpack.c.l.s4 1966171168
      %v2369 = vunpack.c.0.s8 %v2368
      %v2370 = vlaneseq
      %v2371 = vshrl.u32 %v2370, 7
      %v2372 = vsub.s32 %v2369, %v2371
      %v2373 = vrot.slane %v2345, %v2372
      %v2374 = vcombine.high %v2352, %v2352
      %v2375 = vcombine.high %v2359, %v2359
      %v2376 = vcombine.high %v2366, %v2366
      %v2377 = vcombine.high %v2373, %v2373
      %v2378 = vlaneseq
      %v2379 = vshrl.u32 %v2378, 7
      %v2380 = vsub.s32 0, %v2379
      %v2381 = vrot.slane %v2352, %v2380
      %v2382 = vlaneseq
      %v2383 = vshrl.u32 %v2382, 7
      %v2384 = vsub.s32 1, %v2383
      %v2385 = vrot.slane %v2352, %v2384
      %v2386 = vlaneseq
      %v2387 = vshrl.u32 %v2386, 7
      %v2388 = vsub.s32 0, %v2387
      %v2389 = vrot.slane %v2366, %v2388
      %v2390 = vlaneseq
      %v2391 = vshrl.u32 %v2390, 7
      %v2392 = vsub.s32 1, %v2391
      %v2393 = vrot.slane %v2366, %v2392
      %v2394 = vlaneseq
      %v2395 = vshrl.u32 %v2394, 7
      %v2396 = vsub.s32 0, %v2395
      %v2397 = vrot.slane %v2374, %v2396
      %v2398 = vlaneseq
      %v2399 = vshrl.u32 %v2398, 7
      %v2400 = vsub.s32 1, %v2399
      %v2401 = vrot.slane %v2374, %v2400
      %v2402 = vlaneseq
      %v2403 = vshrl.u32 %v2402, 7
      %v2404 = vsub.s32 0, %v2403
      %v2405 = vrot.slane %v2376, %v2404
      %v2406 = vlaneseq
      %v2407 = vshrl.u32 %v2406, 7
      %v2408 = vsub.s32 1, %v2407
      %v2409 = vrot.slane %v2376, %v2408
      %v2410 = vlaneseq
      %v2411 = vshrl.u32 %v2410, 7
      %v2412 = vsub.s32 0, %v2411
      %v2413 = vrot.slane %v2359, %v2412
      %v2414 = vlaneseq
      %v2415 = vshrl.u32 %v2414, 7
      %v2416 = vsub.s32 1, %v2415
      %v2417 = vrot.slane %v2359, %v2416
      %v2418 = vlaneseq
      %v2419 = vshrl.u32 %v2418, 7
      %v2420 = vsub.s32 0, %v2419
      %v2421 = vrot.slane %v2373, %v2420
      %v2422 = vlaneseq
      %v2423 = vshrl.u32 %v2422, 7
      %v2424 = vsub.s32 1, %v2423
      %v2425 = vrot.slane %v2373, %v2424
      %v2426 = vlaneseq
      %v2427 = vshrl.u32 %v2426, 7
      %v2428 = vsub.s32 0, %v2427
      %v2429 = vrot.slane %v2375, %v2428
      %v2430 = vlaneseq
      %v2431 = vshrl.u32 %v2430, 7
      %v2432 = vsub.s32 1, %v2431
      %v2433 = vrot.slane %v2375, %v2432
      %v2434 = vlaneseq
      %v2435 = vshrl.u32 %v2434, 7
      %v2436 = vsub.s32 0, %v2435
      %v2437 = vrot.slane %v2377, %v2436
      %v2438 = vlaneseq
      %v2439 = vshrl.u32 %v2438, 7
      %v2440 = vsub.s32 1, %v2439
      %v2441 = vrot.slane %v2377, %v2440
      %v2458 = vmul.f32 %v2381, %v2308
      %v2459 = vmul.f32 %v2385, %v2310
      %v2460 = vmul.f32 %v2389, %v2308
      %v2461 = vmul.f32 %v2393, %v2310
      %v2462 = vmul.f32 %v2397, %v2308
      %v2463 = vmul.f32 %v2401, %v2310
      %v2464 = vmul.f32 %v2405, %v2308
      %v2465 = vmul.f32 %v2409, %v2310
      %v2466 = vmul.f32 %v2413, %v2308
      %v2467 = vmul.f32 %v2417, %v2310
      %v2468 = vmul.f32 %v2421, %v2308
      %v2469 = vmul.f32 %v2425, %v2310
      %v2470 = vmul.f32 %v2429, %v2308
      %v2471 = vmul.f32 %v2433, %v2310
      %v2472 = vmul.f32 %v2437, %v2308
      %v2473 = vmul.f32 %v2441, %v2310
      %v2476 = vcombine.low %v2302, %v2304
      %v2477 = vcombine.high %v2302, %v2304
      %v2479 = vunpack.c.l.s4 1966171168
      %v2480 = vunpack.c.0.s8 %v2479
      %v2481 = vlaneseq
      %v2482 = vshrl.u32 %v2481, 7
      %v2483 = vsub.s32 %v2480, %v2482
      %v2484 = vrot.slane %v2476, %v2483
      %v2486 = vunpack.c.l.s4 1966171168
      %v2487 = vunpack.c.0.s8 %v2486
      %v2488 = vlaneseq
      %v2489 = vshrl.u32 %v2488, 7
      %v2490 = vsub.s32 %v2487, %v2489
      %v2491 = vrot.slane %v2477, %v2490
      %v2492 = vcombine.high %v2484, %v2484
      %v2493 = vcombine.high %v2491, %v2491
      %v2495 = vunpack.c.l.s4 1966171168
      %v2496 = vunpack.c.0.s8 %v2495
      %v2497 = vlaneseq
      %v2498 = vshrl.u32 %v2497, 7
      %v2499 = vsub.s32 %v2496, %v2498
      %v2500 = vrot.slane %v2484, %v2499
      %v2502 = vunpack.c.l.s4 1966171168
      %v2503 = vunpack.c.0.s8 %v2502
      %v2504 = vlaneseq
      %v2505 = vshrl.u32 %v2504, 7
      %v2506 = vsub.s32 %v2503, %v2505
      %v2507 = vrot.slane %v2491, %v2506
      %v2509 = vunpack.c.l.s4 1966171168
      %v2510 = vunpack.c.0.s8 %v2509
      %v2511 = vlaneseq
      %v2512 = vshrl.u32 %v2511, 7
      %v2513 = vsub.s32 %v2510, %v2512
      %v2514 = vrot.slane %v2492, %v2513
      %v2516 = vunpack.c.l.s4 1966171168
      %v2517 = vunpack.c.0.s8 %v2516
      %v2518 = vlaneseq
      %v2519 = vshrl.u32 %v2518, 7
      %v2520 = vsub.s32 %v2517, %v2519
      %v2521 = vrot.slane %v2493, %v2520
      %v2522 = vcombine.high %v2500, %v2500
      %v2523 = vcombine.high %v2507, %v2507
      %v2524 = vcombine.high %v2514, %v2514
      %v2525 = vcombine.high %v2521, %v2521
      %v2526 = vlaneseq
      %v2527 = vshrl.u32 %v2526, 7
      %v2528 = vsub.s32 0, %v2527
      %v2529 = vrot.slane %v2500, %v2528
      %v2530 = vlaneseq
      %v2531 = vshrl.u32 %v2530, 7
      %v2532 = vsub.s32 1, %v2531
      %v2533 = vrot.slane %v2500, %v2532
      %v2534 = vlaneseq
      %v2535 = vshrl.u32 %v2534, 7
      %v2536 = vsub.s32 0, %v2535
      %v2537 = vrot.slane %v2514, %v2536
      %v2538 = vlaneseq
      %v2539 = vshrl.u32 %v2538, 7
      %v2540 = vsub.s32 1, %v2539
      %v2541 = vrot.slane %v2514, %v2540
      %v2542 = vlaneseq
      %v2543 = vshrl.u32 %v2542, 7
      %v2544 = vsub.s32 0, %v2543
      %v2545 = vrot.slane %v2522, %v2544
      %v2546 = vlaneseq
      %v2547 = vshrl.u32 %v2546, 7
      %v2548 = vsub.s32 1, %v2547
      %v2549 = vrot.slane %v2522, %v2548
      %v2550 = vlaneseq
      %v2551 = vshrl.u32 %v2550, 7
      %v2552 = vsub.s32 0, %v2551
      %v2553 = vrot.slane %v2524, %v2552
      %v2554 = vlaneseq
      %v2555 = vshrl.u32 %v2554, 7
      %v2556 = vsub.s32 1, %v2555
      %v2557 = vrot.slane %v2524, %v2556
      %v2558 = vlaneseq
      %v2559 = vshrl.u32 %v2558, 7
      %v2560 = vsub.s32 0, %v2559
      %v2561 = vrot.slane %v2507, %v2560
      %v2562 = vlaneseq
      %v2563 = vshrl.u32 %v2562, 7
      %v2564 = vsub.s32 1, %v2563
      %v2565 = vrot.slane %v2507, %v2564
      %v2566 = vlaneseq
      %v2567 = vshrl.u32 %v2566, 7
      %v2568 = vsub.s32 0, %v2567
      %v2569 = vrot.slane %v2521, %v2568
      %v2570 = vlaneseq
      %v2571 = vshrl.u32 %v2570, 7
      %v2572 = vsub.s32 1, %v2571
      %v2573 = vrot.slane %v2521, %v2572
      %v2574 = vlaneseq
      %v2575 = vshrl.u32 %v2574, 7
      %v2576 = vsub.s32 0, %v2575
      %v2577 = vrot.slane %v2523, %v2576
      %v2578 = vlaneseq
      %v2579 = vshrl.u32 %v2578, 7
      %v2580 = vsub.s32 1, %v2579
      %v2581 = vrot.slane %v2523, %v2580
      %v2582 = vlaneseq
      %v2583 = vshrl.u32 %v2582, 7
      %v2584 = vsub.s32 0, %v2583
      %v2585 = vrot.slane %v2525, %v2584
      %v2586 = vlaneseq
      %v2587 = vshrl.u32 %v2586, 7
      %v2588 = vsub.s32 1, %v2587
      %v2589 = vrot.slane %v2525, %v2588
      %v2606 = vmul.f32 %v2529, %v2312
      %v2607 = vmul.f32 %v2533, %v2314
      %v2608 = vmul.f32 %v2537, %v2312
      %v2609 = vmul.f32 %v2541, %v2314
      %v2610 = vmul.f32 %v2545, %v2312
      %v2611 = vmul.f32 %v2549, %v2314
      %v2612 = vmul.f32 %v2553, %v2312
      %v2613 = vmul.f32 %v2557, %v2314
      %v2614 = vmul.f32 %v2561, %v2312
      %v2615 = vmul.f32 %v2565, %v2314
      %v2616 = vmul.f32 %v2569, %v2312
      %v2617 = vmul.f32 %v2573, %v2314
      %v2618 = vmul.f32 %v2577, %v2312
      %v2619 = vmul.f32 %v2581, %v2314
      %v2620 = vmul.f32 %v2585, %v2312
      %v2621 = vmul.f32 %v2589, %v2314
      %v2622 = vadd.f32 %v2458, %v2606
      %v2623 = vadd.f32 %v2459, %v2607
      %v2624 = vadd.f32 %v2460, %v2608
      %v2625 = vadd.f32 %v2461, %v2609
      %v2626 = vadd.f32 %v2462, %v2610
      %v2627 = vadd.f32 %v2463, %v2611
      %v2628 = vadd.f32 %v2464, %v2612
      %v2629 = vadd.f32 %v2465, %v2613
      %v2630 = vadd.f32 %v2466, %v2614
      %v2631 = vadd.f32 %v2467, %v2615
      %v2632 = vadd.f32 %v2468, %v2616
      %v2633 = vadd.f32 %v2469, %v2617
      %v2634 = vadd.f32 %v2470, %v2618
      %v2635 = vadd.f32 %v2471, %v2619
      %v2636 = vadd.f32 %v2472, %v2620
      %v2637 = vadd.f32 %v2473, %v2621
      %v2638 = vmul.f32 %v2622, 0.70710677
      %v2639 = vmul.f32 %v2623, 0.70710677
      %v2640 = vmul.f32 %v2624, 0.70710677
      %v2641 = vmul.f32 %v2625, 0.70710677
      %v2642 = vmul.f32 %v2626, 0.70710677
      %v2643 = vmul.f32 %v2627, 0.70710677
      %v2644 = vmul.f32 %v2628, 0.70710677
      %v2645 = vmul.f32 %v2629, 0.70710677
      %v2646 = vmul.f32 %v2630, 0.70710677
      %v2647 = vmul.f32 %v2631, 0.70710677
      %v2648 = vmul.f32 %v2632, 0.70710677
      %v2649 = vmul.f32 %v2633, 0.70710677
      %v2650 = vmul.f32 %v2634, 0.70710677
      %v2651 = vmul.f32 %v2635, 0.70710677
      %v2652 = vmul.f32 %v2636, 0.70710677
      %v2653 = vmul.f32 %v2637, 0.70710677
      %v2654 = vmul.f32 %v2638, 1.442695
      %v2655 = vpow.pop %v2654
      %v2656 = vmul.f32 %v2639, 1.442695
      %v2657 = vpow.pop %v2656
      %v2658 = vmul.f32 %v2640, 1.442695
      %v2659 = vpow.pop %v2658
      %v2660 = vmul.f32 %v2641, 1.442695
      %v2661 = vpow.pop %v2660
      %v2662 = vmul.f32 %v2642, 1.442695
      %v2663 = vpow.pop %v2662
      %v2664 = vmul.f32 %v2643, 1.442695
      %v2665 = vpow.pop %v2664
      %v2666 = vmul.f32 %v2644, 1.442695
      %v2667 = vpow.pop %v2666
      %v2668 = vmul.f32 %v2645, 1.442695
      %v2669 = vpow.pop %v2668
      %v2670 = vmul.f32 %v2646, 1.442695
      %v2671 = vpow.pop %v2670
      %v2672 = vmul.f32 %v2647, 1.442695
      %v2673 = vpow.pop %v2672
      %v2674 = vmul.f32 %v2648, 1.442695
      %v2675 = vpow.pop %v2674
      %v2676 = vmul.f32 %v2649, 1.442695
      %v2677 = vpow.pop %v2676
      %v2678 = vmul.f32 %v2650, 1.442695
      %v2679 = vpow.pop %v2678
      %v2680 = vmul.f32 %v2651, 1.442695
      %v2681 = vpow.pop %v2680
      %v2682 = vmul.f32 %v2652, 1.442695
      %v2683 = vpow.pop %v2682
      %v2684 = vmul.f32 %v2653, 1.442695
      %v2685 = vpow.pop %v2684
      %v2686 = vrot.slane %v2655, 4
      %v2687 = vadd.f32 %v2655, %v2686
      %v2688 = vrot.slane %v2687, 2
      %v2689 = vadd.f32 %v2687, %v2688
      %v2690 = vrot.slane %v2689, 1
      %v2691 = vadd.f32 %v2689, %v2690
      %v2692 = vrot.slane %v2657, 4
      %v2693 = vadd.f32 %v2657, %v2692
      %v2694 = vrot.slane %v2693, 2
      %v2695 = vadd.f32 %v2693, %v2694
      %v2696 = vrot.slane %v2695, 1
      %v2697 = vadd.f32 %v2695, %v2696
      %v2698 = vrot.slane %v2659, 4
      %v2699 = vadd.f32 %v2659, %v2698
      %v2700 = vrot.slane %v2699, 2
      %v2701 = vadd.f32 %v2699, %v2700
      %v2702 = vrot.slane %v2701, 1
      %v2703 = vadd.f32 %v2701, %v2702
      %v2704 = vrot.slane %v2661, 4
      %v2705 = vadd.f32 %v2661, %v2704
      %v2706 = vrot.slane %v2705, 2
      %v2707 = vadd.f32 %v2705, %v2706
      %v2708 = vrot.slane %v2707, 1
      %v2709 = vadd.f32 %v2707, %v2708
      %v2710 = vrot.slane %v2663, 4
      %v2711 = vadd.f32 %v2663, %v2710
      %v2712 = vrot.slane %v2711, 2
      %v2713 = vadd.f32 %v2711, %v2712
      %v2714 = vrot.slane %v2713, 1
      %v2715 = vadd.f32 %v2713, %v2714
      %v2716 = vrot.slane %v2665, 4
      %v2717 = vadd.f32 %v2665, %v2716
      %v2718 = vrot.slane %v2717, 2
      %v2719 = vadd.f32 %v2717, %v2718
      %v2720 = vrot.slane %v2719, 1
      %v2721 = vadd.f32 %v2719, %v2720
      %v2722 = vrot.slane %v2667, 4
      %v2723 = vadd.f32 %v2667, %v2722
      %v2724 = vrot.slane %v2723, 2
      %v2725 = vadd.f32 %v2723, %v2724
      %v2726 = vrot.slane %v2725, 1
      %v2727 = vadd.f32 %v2725, %v2726
      %v2728 = vrot.slane %v2669, 4
      %v2729 = vadd.f32 %v2669, %v2728
      %v2730 = vrot.slane %v2729, 2
      %v2731 = vadd.f32 %v2729, %v2730
      %v2732 = vrot.slane %v2731, 1
      %v2733 = vadd.f32 %v2731, %v2732
      %v2734 = vrot.slane %v2671, 4
      %v2735 = vadd.f32 %v2671, %v2734
      %v2736 = vrot.slane %v2735, 2
      %v2737 = vadd.f32 %v2735, %v2736
      %v2738 = vrot.slane %v2737, 1
      %v2739 = vadd.f32 %v2737, %v2738
      %v2740 = vrot.slane %v2673, 4
      %v2741 = vadd.f32 %v2673, %v2740
      %v2742 = vrot.slane %v2741, 2
      %v2743 = vadd.f32 %v2741, %v2742
      %v2744 = vrot.slane %v2743, 1
      %v2745 = vadd.f32 %v2743, %v2744
      %v2746 = vrot.slane %v2675, 4
      %v2747 = vadd.f32 %v2675, %v2746
      %v2748 = vrot.slane %v2747, 2
      %v2749 = vadd.f32 %v2747, %v2748
      %v2750 = vrot.slane %v2749, 1
      %v2751 = vadd.f32 %v2749, %v2750
      %v2752 = vrot.slane %v2677, 4
      %v2753 = vadd.f32 %v2677, %v2752
      %v2754 = vrot.slane %v2753, 2
      %v2755 = vadd.f32 %v2753, %v2754
      %v2756 = vrot.slane %v2755, 1
      %v2757 = vadd.f32 %v2755, %v2756
      %v2758 = vrot.slane %v2679, 4
      %v2759 = vadd.f32 %v2679, %v2758
      %v2760 = vrot.slane %v2759, 2
      %v2761 = vadd.f32 %v2759, %v2760
      %v2762 = vrot.slane %v2761, 1
      %v2763 = vadd.f32 %v2761, %v2762
      %v2764 = vrot.slane %v2681, 4
      %v2765 = vadd.f32 %v2681, %v2764
      %v2766 = vrot.slane %v2765, 2
      %v2767 = vadd.f32 %v2765, %v2766
      %v2768 = vrot.slane %v2767, 1
      %v2769 = vadd.f32 %v2767, %v2768
      %v2770 = vrot.slane %v2683, 4
      %v2771 = vadd.f32 %v2683, %v2770
      %v2772 = vrot.slane %v2771, 2
      %v2773 = vadd.f32 %v2771, %v2772
      %v2774 = vrot.slane %v2773, 1
      %v2775 = vadd.f32 %v2773, %v2774
      %v2776 = vrot.slane %v2685, 4
      %v2777 = vadd.f32 %v2685, %v2776
      %v2778 = vrot.slane %v2777, 2
      %v2779 = vadd.f32 %v2777, %v2778
      %v2780 = vrot.slane %v2779, 1
      %v2781 = vadd.f32 %v2779, %v2780
      %v2782 = vrcp.pop %v2691
      %v2783 = vrcp.pop %v2697
      %v2784 = vrcp.pop %v2703
      %v2785 = vrcp.pop %v2709
      %v2786 = vrcp.pop %v2715
      %v2787 = vrcp.pop %v2721
      %v2788 = vrcp.pop %v2727
      %v2789 = vrcp.pop %v2733
      %v2790 = vrcp.pop %v2739
      %v2791 = vrcp.pop %v2745
      %v2792 = vrcp.pop %v2751
      %v2793 = vrcp.pop %v2757
      %v2794 = vrcp.pop %v2763
      %v2795 = vrcp.pop %v2769
      %v2796 = vrcp.pop %v2775
      %v2797 = vrcp.pop %v2781
      %v2798 = vmul.f32 %v2655, %v2318
      %v2799 = vmul.f32 %v2657, %v2320
      %v2800 = vmul.f32 %v2659, %v2318
      %v2801 = vmul.f32 %v2661, %v2320
      %v2802 = vmul.f32 %v2663, %v2318
      %v2803 = vmul.f32 %v2665, %v2320
      %v2804 = vmul.f32 %v2667, %v2318
      %v2805 = vmul.f32 %v2669, %v2320
      %v2806 = vmul.f32 %v2671, %v2318
      %v2807 = vmul.f32 %v2673, %v2320
      %v2808 = vmul.f32 %v2675, %v2318
      %v2809 = vmul.f32 %v2677, %v2320
      %v2810 = vmul.f32 %v2679, %v2318
      %v2811 = vmul.f32 %v2681, %v2320
      %v2812 = vmul.f32 %v2683, %v2318
      %v2813 = vmul.f32 %v2685, %v2320
      %v2814 = vrot.slane %v2798, 4
      %v2815 = vadd.f32 %v2798, %v2814
      %v2816 = vrot.slane %v2815, 2
      %v2817 = vadd.f32 %v2815, %v2816
      %v2818 = vrot.slane %v2817, 1
      %v2819 = vadd.f32 %v2817, %v2818
      %v2820 = vrot.slane %v2799, 4
      %v2821 = vadd.f32 %v2799, %v2820
      %v2822 = vrot.slane %v2821, 2
      %v2823 = vadd.f32 %v2821, %v2822
      %v2824 = vrot.slane %v2823, 1
      %v2825 = vadd.f32 %v2823, %v2824
      %v2826 = vrot.slane %v2800, 4
      %v2827 = vadd.f32 %v2800, %v2826
      %v2828 = vrot.slane %v2827, 2
      %v2829 = vadd.f32 %v2827, %v2828
      %v2830 = vrot.slane %v2829, 1
      %v2831 = vadd.f32 %v2829, %v2830
      %v2832 = vrot.slane %v2801, 4
      %v2833 = vadd.f32 %v2801, %v2832
      %v2834 = vrot.slane %v2833, 2
      %v2835 = vadd.f32 %v2833, %v2834
      %v2836 = vrot.slane %v2835, 1
      %v2837 = vadd.f32 %v2835, %v2836
      %v2838 = vrot.slane %v2802, 4
      %v2839 = vadd.f32 %v2802, %v2838
      %v2840 = vrot.slane %v2839, 2
      %v2841 = vadd.f32 %v2839, %v2840
      %v2842 = vrot.slane %v2841, 1
      %v2843 = vadd.f32 %v2841, %v2842
      %v2844 = vrot.slane %v2803, 4
      %v2845 = vadd.f32 %v2803, %v2844
      %v2846 = vrot.slane %v2845, 2
      %v2847 = vadd.f32 %v2845, %v2846
      %v2848 = vrot.slane %v2847, 1
      %v2849 = vadd.f32 %v2847, %v2848
      %v2850 = vrot.slane %v2804, 4
      %v2851 = vadd.f32 %v2804, %v2850
      %v2852 = vrot.slane %v2851, 2
      %v2853 = vadd.f32 %v2851, %v2852
      %v2854 = vrot.slane %v2853, 1
      %v2855 = vadd.f32 %v2853, %v2854
      %v2856 = vrot.slane %v2805, 4
      %v2857 = vadd.f32 %v2805, %v2856
      %v2858 = vrot.slane %v2857, 2
      %v2859 = vadd.f32 %v2857, %v2858
      %v2860 = vrot.slane %v2859, 1
      %v2861 = vadd.f32 %v2859, %v2860
      %v2862 = vrot.slane %v2806, 4
      %v2863 = vadd.f32 %v2806, %v2862
      %v2864 = vrot.slane %v2863, 2
      %v2865 = vadd.f32 %v2863, %v2864
      %v2866 = vrot.slane %v2865, 1
      %v2867 = vadd.f32 %v2865, %v2866
      %v2868 = vrot.slane %v2807, 4
      %v2869 = vadd.f32 %v2807, %v2868
      %v2870 = vrot.slane %v2869, 2
      %v2871 = vadd.f32 %v2869, %v2870
      %v2872 = vrot.slane %v2871, 1
      %v2873 = vadd.f32 %v2871, %v2872
      %v2874 = vrot.slane %v2808, 4
      %v2875 = vadd.f32 %v2808, %v2874
      %v2876 = vrot.slane %v2875, 2
      %v2877 = vadd.f32 %v2875, %v2876
      %v2878 = vrot.slane %v2877, 1
      %v2879 = vadd.f32 %v2877, %v2878
      %v2880 = vrot.slane %v2809, 4
      %v2881 = vadd.f32 %v2809, %v2880
      %v2882 = vrot.slane %v2881, 2
      %v2883 = vadd.f32 %v2881, %v2882
      %v2884 = vrot.slane %v2883, 1
      %v2885 = vadd.f32 %v2883, %v2884
      %v2886 = vrot.slane %v2810, 4
      %v2887 = vadd.f32 %v2810, %v2886
      %v2888 = vrot.slane %v2887, 2
      %v2889 = vadd.f32 %v2887, %v2888
      %v2890 = vrot.slane %v2889, 1
      %v2891 = vadd.f32 %v2889, %v2890
      %v2892 = vrot.slane %v2811, 4
      %v2893 = vadd.f32 %v2811, %v2892
      %v2894 = vrot.slane %v2893, 2
      %v2895 = vadd.f32 %v2893, %v2894
      %v2896 = vrot.slane %v2895, 1
      %v2897 = vadd.f32 %v2895, %v2896
      %v2898 = vrot.slane %v2812, 4
      %v2899 = vadd.f32 %v2812, %v2898
      %v2900 = vrot.slane %v2899, 2
      %v2901 = vadd.f32 %v2899, %v2900
      %v2902 = vrot.slane %v2901, 1
      %v2903 = vadd.f32 %v2901, %v2902
      %v2904 = vrot.slane %v2813, 4
      %v2905 = vadd.f32 %v2813, %v2904
      %v2906 = vrot.slane %v2905, 2
      %v2907 = vadd.f32 %v2905, %v2906
      %v2908 = vrot.slane %v2907, 1
      %v2909 = vadd.f32 %v2907, %v2908
      %v2910 = vmul.f32 %v2819, %v2782
      %v2911 = vmul.f32 %v2825, %v2783
      %v2912 = vmul.f32 %v2831, %v2784
      %v2913 = vmul.f32 %v2837, %v2785
      %v2914 = vmul.f32 %v2843, %v2786
      %v2915 = vmul.f32 %v2849, %v2787
      %v2916 = vmul.f32 %v2855, %v2788
      %v2917 = vmul.f32 %v2861, %v2789
      %v2918 = vmul.f32 %v2867, %v2790
      %v2919 = vmul.f32 %v2873, %v2791
      %v2920 = vmul.f32 %v2879, %v2792
      %v2921 = vmul.f32 %v2885, %v2793
      %v2922 = vmul.f32 %v2891, %v2794
      %v2923 = vmul.f32 %v2897, %v2795
      %v2924 = vmul.f32 %v2903, %v2796
      %v2925 = vmul.f32 %v2909, %v2797
      %v2926 = vmul.f32 %v2655, %v2322
      %v2927 = vmul.f32 %v2657, %v2324
      %v2928 = vmul.f32 %v2659, %v2322
      %v2929 = vmul.f32 %v2661, %v2324
      %v2930 = vmul.f32 %v2663, %v2322
      %v2931 = vmul.f32 %v2665, %v2324
      %v2932 = vmul.f32 %v2667, %v2322
      %v2933 = vmul.f32 %v2669, %v2324
      %v2934 = vmul.f32 %v2671, %v2322
      %v2935 = vmul.f32 %v2673, %v2324
      %v2936 = vmul.f32 %v2675, %v2322
      %v2937 = vmul.f32 %v2677, %v2324
      %v2938 = vmul.f32 %v2679, %v2322
      %v2939 = vmul.f32 %v2681, %v2324
      %v2940 = vmul.f32 %v2683, %v2322
      %v2941 = vmul.f32 %v2685, %v2324
      %v2942 = vrot.slane %v2926, 4
      %v2943 = vadd.f32 %v2926, %v2942
      %v2944 = vrot.slane %v2943, 2
      %v2945 = vadd.f32 %v2943, %v2944
      %v2946 = vrot.slane %v2945, 1
      %v2947 = vadd.f32 %v2945, %v2946
      %v2948 = vrot.slane %v2927, 4
      %v2949 = vadd.f32 %v2927, %v2948
      %v2950 = vrot.slane %v2949, 2
      %v2951 = vadd.f32 %v2949, %v2950
      %v2952 = vrot.slane %v2951, 1
      %v2953 = vadd.f32 %v2951, %v2952
      %v2954 = vrot.slane %v2928, 4
      %v2955 = vadd.f32 %v2928, %v2954
      %v2956 = vrot.slane %v2955, 2
      %v2957 = vadd.f32 %v2955, %v2956
      %v2958 = vrot.slane %v2957, 1
      %v2959 = vadd.f32 %v2957, %v2958
      %v2960 = vrot.slane %v2929, 4
      %v2961 = vadd.f32 %v2929, %v2960
      %v2962 = vrot.slane %v2961, 2
      %v2963 = vadd.f32 %v2961, %v2962
      %v2964 = vrot.slane %v2963, 1
      %v2965 = vadd.f32 %v2963, %v2964
      %v2966 = vrot.slane %v2930, 4
      %v2967 = vadd.f32 %v2930, %v2966
      %v2968 = vrot.slane %v2967, 2
      %v2969 = vadd.f32 %v2967, %v2968
      %v2970 = vrot.slane %v2969, 1
      %v2971 = vadd.f32 %v2969, %v2970
      %v2972 = vrot.slane %v2931, 4
      %v2973 = vadd.f32 %v2931, %v2972
      %v2974 = vrot.slane %v2973, 2
      %v2975 = vadd.f32 %v2973, %v2974
      %v2976 = vrot.slane %v2975, 1
      %v2977 = vadd.f32 %v2975, %v2976
      %v2978 = vrot.slane %v2932, 4
      %v2979 = vadd.f32 %v2932, %v2978
      %v2980 = vrot.slane %v2979, 2
      %v2981 = vadd.f32 %v2979, %v2980
      %v2982 = vrot.slane %v2981, 1
      %v2983 = vadd.f32 %v2981, %v2982
      %v2984 = vrot.slane %v2933, 4
      %v2985 = vadd.f32 %v2933, %v2984
      %v2986 = vrot.slane %v2985, 2
      %v2987 = vadd.f32 %v2985, %v2986
      %v2988 = vrot.slane %v2987, 1
      %v2989 = vadd.f32 %v2987, %v2988
      %v2990 = vrot.slane %v2934, 4
      %v2991 = vadd.f32 %v2934, %v2990
      %v2992 = vrot.slane %v2991, 2
      %v2993 = vadd.f32 %v2991, %v2992
      %v2994 = vrot.slane %v2993, 1
      %v2995 = vadd.f32 %v2993, %v2994
      %v2996 = vrot.slane %v2935, 4
      %v2997 = vadd.f32 %v2935, %v2996
      %v2998 = vrot.slane %v2997, 2
      %v2999 = vadd.f32 %v2997, %v2998
      %v3000 = vrot.slane %v2999, 1
      %v3001 = vadd.f32 %v2999, %v3000
      %v3002 = vrot.slane %v2936, 4
      %v3003 = vadd.f32 %v2936, %v3002
      %v3004 = vrot.slane %v3003, 2
      %v3005 = vadd.f32 %v3003, %v3004
      %v3006 = vrot.slane %v3005, 1
      %v3007 = vadd.f32 %v3005, %v3006
      %v3008 = vrot.slane %v2937, 4
      %v3009 = vadd.f32 %v2937, %v3008
      %v3010 = vrot.slane %v3009, 2
      %v3011 = vadd.f32 %v3009, %v3010
      %v3012 = vrot.slane %v3011, 1
      %v3013 = vadd.f32 %v3011, %v3012
      %v3014 = vrot.slane %v2938, 4
      %v3015 = vadd.f32 %v2938, %v3014
      %v3016 = vrot.slane %v3015, 2
      %v3017 = vadd.f32 %v3015, %v3016
      %v3018 = vrot.slane %v3017, 1
      %v3019 = vadd.f32 %v3017, %v3018
      %v3020 = vrot.slane %v2939, 4
      %v3021 = vadd.f32 %v2939, %v3020
      %v3022 = vrot.slane %v3021, 2
      %v3023 = vadd.f32 %v3021, %v3022
      %v3024 = vrot.slane %v3023, 1
      %v3025 = vadd.f32 %v3023, %v3024
      %v3026 = vrot.slane %v2940, 4
      %v3027 = vadd.f32 %v2940, %v3026
      %v3028 = vrot.slane %v3027, 2
      %v3029 = vadd.f32 %v3027, %v3028
      %v3030 = vrot.slane %v3029, 1
      %v3031 = vadd.f32 %v3029, %v3030
      %v3032 = vrot.slane %v2941, 4
      %v3033 = vadd.f32 %v2941, %v3032
      %v3034 = vrot.slane %v3033, 2
      %v3035 = vadd.f32 %v3033, %v3034
      %v3036 = vrot.slane %v3035, 1
      %v3037 = vadd.f32 %v3035, %v3036
      %v3038 = vmul.f32 %v2947, %v2782
      %v3039 = vmul.f32 %v2953, %v2783
      %v3040 = vmul.f32 %v2959, %v2784
      %v3041 = vmul.f32 %v2965, %v2785
      %v3042 = vmul.f32 %v2971, %v2786
      %v3043 = vmul.f32 %v2977, %v2787
      %v3044 = vmul.f32 %v2983, %v2788
      %v3045 = vmul.f32 %v2989, %v2789
      %v3046 = vmul.f32 %v2995, %v2790
      %v3047 = vmul.f32 %v3001, %v2791
      %v3048 = vmul.f32 %v3007, %v2792
      %v3049 = vmul.f32 %v3013, %v2793
      %v3050 = vmul.f32 %v3019, %v2794
      %v3051 = vmul.f32 %v3025, %v2795
      %v3052 = vmul.f32 %v3031, %v2796
      %v3053 = vmul.f32 %v3037, %v2797
      %v3070 = vsel %vm1535, %v2912, %v2910
      %v3071 = vsel %vm1537, %v2914, %v3070
      %v3072 = vsel %vm1539, %v2916, %v3071
      %v3073 = vsel %vm1541, %v2918, %v3072
      %v3074 = vsel %vm1543, %v2920, %v3073
      %v3075 = vsel %vm1545, %v2922, %v3074
      %v3076 = vsel %vm1547, %v2924, %v3075
      %v3077 = vsel %vm1535, %v2913, %v2911
      %v3078 = vsel %vm1537, %v2915, %v3077
      %v3079 = vsel %vm1539, %v2917, %v3078
      %v3080 = vsel %vm1541, %v2919, %v3079
      %v3081 = vsel %vm1543, %v2921, %v3080
      %v3082 = vsel %vm1545, %v2923, %v3081
      %v3083 = vsel %vm1547, %v2925, %v3082
      %v3102 = vsel %vm1535, %v3040, %v3038
      %v3103 = vsel %vm1537, %v3042, %v3102
      %v3104 = vsel %vm1539, %v3044, %v3103
      %v3105 = vsel %vm1541, %v3046, %v3104
      %v3106 = vsel %vm1543, %v3048, %v3105
      %v3107 = vsel %vm1545, %v3050, %v3106
      %v3108 = vsel %vm1547, %v3052, %v3107
      %v3109 = vsel %vm1535, %v3041, %v3039
      %v3110 = vsel %vm1537, %v3043, %v3109
      %v3111 = vsel %vm1539, %v3045, %v3110
      %v3112 = vsel %vm1541, %v3047, %v3111
      %v3113 = vsel %vm1543, %v3049, %v3112
      %v3114 = vsel %vm1545, %v3051, %v3113
      %v3115 = vsel %vm1547, %v3053, %v3114
      %v3118 = vld [vmem:[%s9] sm:$0xff]
      %v3119 = vld [vmem:[%s9 + $0x8] sm:$0xff]
      %v3120 = vpack.c.bf16 %v3119, %v3118
      %v3121 = vpack.c.bf16 %v3108, %v3076
      %v3122 = vpack.c.bf16 %v3115, %v3083
      %v3124 = vsel %vm718, %v3120, 0
      %3126 = vmatprep.subr.bf16.mxu0 %v3122
      %3127 = vmatpush1.bf16.msra.mxu0 %v3121
      %3128 = vmatprep.subr.bf16.mxu0 0
      %3129 = vmatpush1.bf16.msra.mxu0 0
      %3130 = vmatprep.subr.bf16.mxu0 0
      %3131 = vmatpush1.bf16.msra.mxu0 0
      %3132 = vmatprep.subr.bf16.mxu0 0
      %3133 = vmatpush1.bf16.msra.mxu0 0
      %3134 = vmatprep.subr.bf16.mxu0 0
      %3135 = vmatpush1.bf16.msra.mxu0 0
      %3136 = vmatprep.subr.bf16.mxu0 0
      %3137 = vmatpush1.bf16.msra.mxu0 0
      %3138 = vmatprep.subr.bf16.mxu0 0
      %3139 = vmatpush1.bf16.msra.mxu0 0
      %3140 = vmatprep.subr.bf16.mxu0 0
      %3141 = vmatpush1.bf16.msra.mxu0 0
      %3142 = vmatprep.subr.bf16.mxu0 0
      %3143 = vmatpush1.bf16.msra.mxu0 0
      %3144 = vmatprep.subr.bf16.mxu0 0
      %3145 = vmatpush1.bf16.msra.mxu0 0
      %3146 = vmatprep.subr.bf16.mxu0 0
      %3147 = vmatpush1.bf16.msra.mxu0 0
      %3148 = vmatprep.subr.bf16.mxu0 0
      %3149 = vmatpush1.bf16.msra.mxu0 0
      %3150 = vmatprep.subr.bf16.mxu0 0
      %3151 = vmatpush1.bf16.msra.mxu0 0
      %3152 = vmatprep.subr.bf16.mxu0 0
      %3153 = vmatpush1.bf16.msra.mxu0 0
      %3154 = vmatprep.subr.bf16.mxu0 0
      %3155 = vmatpush1.bf16.msra.mxu0 0
      %3156 = vmatprep.subr.bf16.mxu0 0
      %3157 = vmatpush1.bf16.msra.mxu0 0
      %3158 = vmatprep.mubr.bf16.mxu0 0
      %3159 = vmatmul.mubr.bf16.gmra.mrb[0].mxu0 %v3124
      %v3160 = vpop.f32.mrb[0].mxu0
      %v3161 = vadd.f32 0.0, %v3160
      %v3162 = vpop.f32.mrb[0].mxu0
      %v3163 = vadd.f32 0.0, %v3162
      %v3164 = vpop.f32.mrb[0].mxu0
      %v3165 = vadd.f32 0.0, %v3164
      %v3166 = vpop.f32.mrb[0].mxu0
      %v3167 = vadd.f32 0.0, %v3166
      %3168 = vdwg.mxu0
      %v3169 = vadd.f32 %v2239, %v3161
      %v3170 = vadd.f32 %v2240, %v3163
      %v3171 = vadd.f32 %v2241, %v3165
      %v3172 = vadd.f32 %v2242, %v3167
      %v3173 = vmax.f32 %v3169, 0.0
      %v3174 = vmax.f32 %v3170, 0.0
      %v3175 = vmax.f32 %v3171, 0.0
      %v3176 = vmax.f32 %v3172, 0.0
      %v3177 = vld [vmem:[%s10] sm:$0xff]
      %v3178 = vld [vmem:[%s10 + $0x8] sm:$0xff]
      %v3179 = vld [vmem:[%s10 + $0x10] sm:$0xff]
      %v3180 = vld [vmem:[%s10 + $0x18] sm:$0xff]
      %v3181 = vld [vmem:[%s10 + $0x20] sm:$0xff]
      %v3182 = vld [vmem:[%s10 + $0x28] sm:$0xff]
      %v3183 = vld [vmem:[%s10 + $0x30] sm:$0xff]
      %v3184 = vld [vmem:[%s10 + $0x38] sm:$0xff]
      %v3185 = vpack.c.bf16 %v3178, %v3177
      %v3186 = vpack.c.bf16 %v3180, %v3179
      %v3187 = vpack.c.bf16 %v3182, %v3181
      %v3188 = vpack.c.bf16 %v3184, %v3183
      %v3189 = vpack.c.bf16 %v3175, %v3173
      %v3190 = vpack.c.bf16 %v3176, %v3174
      %v3191 = vld [vmem:[%s11] sm:$0xff]
      %v3192 = vld [vmem:[%s11 + $0x8] sm:$0xff]
      %v3193 = vld [vmem:[%s11 + $0x10] sm:$0xff]
      %v3194 = vld [vmem:[%s11 + $0x18] sm:$0xff]
      %v3195 = vld [vmem:[%s11 + $0x20] sm:$0xff]
      %v3196 = vld [vmem:[%s11 + $0x28] sm:$0xff]
      %v3197 = vld [vmem:[%s11 + $0x30] sm:$0xff]
      %v3198 = vld [vmem:[%s11 + $0x38] sm:$0xff]
      %3200 = vset.pattern.permute.xlu0 0
      %3201 = vperm.xlu0 %3200, %v3191
      %v3202 = vpop.permute.xlu0 %3201
      %3205 = vset.pattern.permute.xlu0 0
      %3206 = vperm.xlu0 %3205, %v3192
      %v3207 = vpop.permute.xlu0 %3206
      %3210 = vset.pattern.permute.xlu0 0
      %3211 = vperm.xlu0 %3210, %v3193
      %v3212 = vpop.permute.xlu0 %3211
      %3215 = vset.pattern.permute.xlu0 0
      %3216 = vperm.xlu0 %3215, %v3194
      %v3217 = vpop.permute.xlu0 %3216
      %3220 = vset.pattern.permute.xlu0 0
      %3221 = vperm.xlu0 %3220, %v3195
      %v3222 = vpop.permute.xlu0 %3221
      %3225 = vset.pattern.permute.xlu0 0
      %3226 = vperm.xlu0 %3225, %v3196
      %v3227 = vpop.permute.xlu0 %3226
      %3230 = vset.pattern.permute.xlu0 0
      %3231 = vperm.xlu0 %3230, %v3197
      %v3232 = vpop.permute.xlu0 %3231
      %3235 = vset.pattern.permute.xlu0 0
      %3236 = vperm.xlu0 %3235, %v3198
      %v3237 = vpop.permute.xlu0 %3236
      %v3240 = vsel %vm718, %v3185, 0
      %v3243 = vsel %vm718, %v3186, 0
      %v3246 = vsel %vm718, %v3187, 0
      %v3249 = vsel %vm718, %v3188, 0
      %3251 = vmatprep.subr.bf16.mxu0 %v3190
      %3252 = vmatpush1.bf16.msra.mxu0 %v3189
      %3253 = vmatprep.subr.bf16.mxu0 0
      %3254 = vmatpush1.bf16.msra.mxu0 0
      %3255 = vmatprep.subr.bf16.mxu0 0
      %3256 = vmatpush1.bf16.msra.mxu0 0
      %3257 = vmatprep.subr.bf16.mxu0 0
      %3258 = vmatpush1.bf16.msra.mxu0 0
      %3259 = vmatprep.subr.bf16.mxu0 0
      %3260 = vmatpush1.bf16.msra.mxu0 0
      %3261 = vmatprep.subr.bf16.mxu0 0
      %3262 = vmatpush1.bf16.msra.mxu0 0
      %3263 = vmatprep.subr.bf16.mxu0 0
      %3264 = vmatpush1.bf16.msra.mxu0 0
      %3265 = vmatprep.subr.bf16.mxu0 0
      %3266 = vmatpush1.bf16.msra.mxu0 0
      %3267 = vmatprep.subr.bf16.mxu0 0
      %3268 = vmatpush1.bf16.msra.mxu0 0
      %3269 = vmatprep.subr.bf16.mxu0 0
      %3270 = vmatpush1.bf16.msra.mxu0 0
      %3271 = vmatprep.subr.bf16.mxu0 0
      %3272 = vmatpush1.bf16.msra.mxu0 0
      %3273 = vmatprep.subr.bf16.mxu0 0
      %3274 = vmatpush1.bf16.msra.mxu0 0
      %3275 = vmatprep.subr.bf16.mxu0 0
      %3276 = vmatpush1.bf16.msra.mxu0 0
      %3277 = vmatprep.subr.bf16.mxu0 0
      %3278 = vmatpush1.bf16.msra.mxu0 0
      %3279 = vmatprep.subr.bf16.mxu0 0
      %3280 = vmatpush1.bf16.msra.mxu0 0
      %3281 = vmatprep.subr.bf16.mxu0 0
      %3282 = vmatpush1.bf16.msra.mxu0 0
      %3283 = vmatprep.mubr.bf16.mxu0 0
      %3284 = vmatmul.mubr.bf16.gmra.mrb[0].mxu0 %v3240
      %v3285 = vpop.f32.mrb[0].mxu0
      %v3286 = vadd.f32 %v3202, %v3285
      %v3287 = vpop.f32.mrb[0].mxu0
      %v3288 = vadd.f32 %v3202, %v3287
      %v3289 = vpop.f32.mrb[0].mxu0
      %v3290 = vadd.f32 %v3207, %v3289
      %v3291 = vpop.f32.mrb[0].mxu0
      %v3292 = vadd.f32 %v3207, %v3291
      %3293 = vmatprep.mubr.bf16.mxu0 0
      %3294 = vmatmul.mubr.bf16.gmra.mrb[0].mxu0 %v3243
      %v3295 = vpop.f32.mrb[0].mxu0
      %v3296 = vadd.f32 %v3212, %v3295
      %v3297 = vpop.f32.mrb[0].mxu0
      %v3298 = vadd.f32 %v3212, %v3297
      %v3299 = vpop.f32.mrb[0].mxu0
      %v3300 = vadd.f32 %v3217, %v3299
      %v3301 = vpop.f32.mrb[0].mxu0
      %v3302 = vadd.f32 %v3217, %v3301
      %3303 = vmatprep.mubr.bf16.mxu0 0
      %3304 = vmatmul.mubr.bf16.gmra.mrb[0].mxu0 %v3246
      %v3305 = vpop.f32.mrb[0].mxu0
      %v3306 = vadd.f32 %v3222, %v3305
      %v3307 = vpop.f32.mrb[0].mxu0
      %v3308 = vadd.f32 %v3222, %v3307
      %v3309 = vpop.f32.mrb[0].mxu0
      %v3310 = vadd.f32 %v3227, %v3309
      %v3311 = vpop.f32.mrb[0].mxu0
      %v3312 = vadd.f32 %v3227, %v3311
      %3313 = vmatprep.mubr.bf16.mxu0 0
      %3314 = vmatmul.mubr.bf16.gmra.mrb[0].mxu0 %v3249
      %v3315 = vpop.f32.mrb[0].mxu0
      %v3316 = vadd.f32 %v3232, %v3315
      %v3317 = vpop.f32.mrb[0].mxu0
      %v3318 = vadd.f32 %v3232, %v3317
      %v3319 = vpop.f32.mrb[0].mxu0
      %v3320 = vadd.f32 %v3237, %v3319
      %v3321 = vpop.f32.mrb[0].mxu0
      %v3322 = vadd.f32 %v3237, %v3321
      %3323 = vdwg.mxu0
      %v3324 = vmax.f32 %v3286, 0.0
      %v3325 = vmax.f32 %v3288, 0.0
      %v3326 = vmax.f32 %v3290, 0.0
      %v3327 = vmax.f32 %v3292, 0.0
      %v3328 = vmax.f32 %v3296, 0.0
      %v3329 = vmax.f32 %v3298, 0.0
      %v3330 = vmax.f32 %v3300, 0.0
      %v3331 = vmax.f32 %v3302, 0.0
      %v3332 = vmax.f32 %v3306, 0.0
      %v3333 = vmax.f32 %v3308, 0.0
      %v3334 = vmax.f32 %v3310, 0.0
      %v3335 = vmax.f32 %v3312, 0.0
      %v3336 = vmax.f32 %v3316, 0.0
      %v3337 = vmax.f32 %v3318, 0.0
      %v3338 = vmax.f32 %v3320, 0.0
      %v3339 = vmax.f32 %v3322, 0.0
      %v3340 = vld [vmem:[%s12] sm:$0xff]
      %v3341 = vld [vmem:[%s12 + $0x8] sm:$0xff]
      %v3342 = vpack.c.bf16 %v3341, %v3340
      %v3343 = vpack.c.bf16 %v3326, %v3324
      %v3344 = vpack.c.bf16 %v3327, %v3325
      %v3345 = vpack.c.bf16 %v3330, %v3328
      %v3346 = vpack.c.bf16 %v3331, %v3329
      %v3347 = vpack.c.bf16 %v3334, %v3332
      %v3348 = vpack.c.bf16 %v3335, %v3333
      %v3349 = vpack.c.bf16 %v3338, %v3336
      %v3350 = vpack.c.bf16 %v3339, %v3337
      %v3351 = vld [vmem:[%s13] sm:$0xff]
      %v3352 = vld [vmem:[%s13 + $0x8] sm:$0xff]
      %3354 = vset.pattern.permute.xlu0 0
      %3355 = vperm.xlu0 %3354, %v3351
      %v3356 = vpop.permute.xlu0 %3355
      %3359 = vset.pattern.permute.xlu0 0
      %3360 = vperm.xlu0 %3359, %v3352
      %v3361 = vpop.permute.xlu0 %3360
      %v3364 = vsel %vm1835, %v3342, 0
      %3366 = vmatprep.subr.bf16.mxu0 %v3344
      %3367 = vmatpush1.bf16.msra.mxu0 %v3343
      %3368 = vmatprep.subr.bf16.mxu0 %v3346
      %3369 = vmatpush1.bf16.msra.mxu0 %v3345
      %3370 = vmatprep.subr.bf16.mxu0 %v3348
      %3371 = vmatpush1.bf16.msra.mxu0 %v3347
      %3372 = vmatprep.subr.bf16.mxu0 %v3350
      %3373 = vmatpush1.bf16.msra.mxu0 %v3349
      %3374 = vmatprep.subr.bf16.mxu0 0
      %3375 = vmatpush1.bf16.msra.mxu0 0
      %3376 = vmatprep.subr.bf16.mxu0 0
      %3377 = vmatpush1.bf16.msra.mxu0 0
      %3378 = vmatprep.subr.bf16.mxu0 0
      %3379 = vmatpush1.bf16.msra.mxu0 0
      %3380 = vmatprep.subr.bf16.mxu0 0
      %3381 = vmatpush1.bf16.msra.mxu0 0
      %3382 = vmatprep.subr.bf16.mxu0 0
      %3383 = vmatpush1.bf16.msra.mxu0 0
      %3384 = vmatprep.subr.bf16.mxu0 0
      %3385 = vmatpush1.bf16.msra.mxu0 0
      %3386 = vmatprep.subr.bf16.mxu0 0
      %3387 = vmatpush1.bf16.msra.mxu0 0
      %3388 = vmatprep.subr.bf16.mxu0 0
      %3389 = vmatpush1.bf16.msra.mxu0 0
      %3390 = vmatprep.subr.bf16.mxu0 0
      %3391 = vmatpush1.bf16.msra.mxu0 0
      %3392 = vmatprep.subr.bf16.mxu0 0
      %3393 = vmatpush1.bf16.msra.mxu0 0
      %3394 = vmatprep.subr.bf16.mxu0 0
      %3395 = vmatpush1.bf16.msra.mxu0 0
      %3396 = vmatprep.subr.bf16.mxu0 0
      %3397 = vmatpush1.bf16.msra.mxu0 0
      %3398 = vmatprep.mubr.bf16.mxu0 0
      %3399 = vmatmul.mubr.bf16.gmra.mrb[0].mxu0 %v3364
      %v3400 = vpop.f32.mrb[0].mxu0
      %v3401 = vadd.f32 %v3356, %v3400
      %v3402 = vpop.f32.mrb[0].mxu0
      %v3403 = vadd.f32 %v3356, %v3402
      %v3404 = vpop.f32.mrb[0].mxu0
      %v3405 = vadd.f32 %v3361, %v3404
      %v3406 = vpop.f32.mrb[0].mxu0
      %v3407 = vadd.f32 %v3361, %v3406
      %3408 = vdwg.mxu0
      %3409 = vmatprep.subr.mxu0 %v470
      %3410 = vmatpush1.msra.mxu0 %v469
      %3411 = vmatprep.subr.mxu0 %v472
      %3412 = vmatpush1.msra.mxu0 %v471
      %3413 = vmatprep.subr.mxu0 %v474
      %3414 = vmatpush1.msra.mxu0 %v473
      %3415 = vmatprep.subr.mxu0 %v476
      %3416 = vmatpush1.msra.mxu0 %v475
      %3417 = vmatprep.subr.mxu0 %v478
      %3418 = vmatpush1.msra.mxu0 %v477
      %3419 = vmatprep.subr.mxu0 %v480
      %3420 = vmatpush1.msra.mxu0 %v479
      %3421 = vmatprep.subr.mxu0 %v482
      %3422 = vmatpush1.msra.mxu0 %v481
      %3423 = vmatprep.subr.mxu0 %v484
      %3424 = vmatpush1.msra.mxu0 %v483
      %3425 = vmatprep.subr.mxu0 %v486
      %3426 = vmatpush1.msra.mxu0 %v485
      %3427 = vmatprep.subr.mxu0 %v488
      %3428 = vmatpush1.msra.mxu0 %v487
      %3429 = vmatprep.subr.mxu0 %v490
      %3430 = vmatpush1.msra.mxu0 %v489
      %3431 = vmatprep.subr.mxu0 %v492
      %3432 = vmatpush1.msra.mxu0 %v491
      %3433 = vmatprep.subr.mxu0 %v494
      %3434 = vmatpush1.msra.mxu0 %v493
      %3435 = vmatprep.subr.mxu0 %v496
      %3436 = vmatpush1.msra.mxu0 %v495
      %3437 = vmatprep.subr.mxu0 %v498
      %3438 = vmatpush1.msra.mxu0 %v497
      %3439 = vmatprep.subr.mxu0 %v500
      %3440 = vmatpush1.msra.mxu0 %v499
      %3441 = vmatprep.subr.mxu0 %v502
      %3442 = vmatpush1.msra.mxu0 %v501
      %3443 = vmatprep.subr.mxu0 %v504
      %3444 = vmatpush1.msra.mxu0 %v503
      %3445 = vmatprep.subr.mxu0 %v506
      %3446 = vmatpush1.msra.mxu0 %v505
      %3447 = vmatprep.subr.mxu0 %v508
      %3448 = vmatpush1.msra.mxu0 %v507
      %3449 = vmatprep.subr.mxu0 %v510
      %3450 = vmatpush1.msra.mxu0 %v509
      %3451 = vmatprep.subr.mxu0 %v512
      %3452 = vmatpush1.msra.mxu0 %v511
      %3453 = vmatprep.subr.mxu0 %v514
      %3454 = vmatpush1.msra.mxu0 %v513
      %3455 = vmatprep.subr.mxu0 %v516
      %3456 = vmatpush1.msra.mxu0 %v515
      %3457 = vmatprep.subr.mxu0 %v518
      %3458 = vmatpush1.msra.mxu0 %v517
      %3459 = vmatprep.subr.mxu0 %v520
      %3460 = vmatpush1.msra.mxu0 %v519
      %3461 = vmatprep.subr.mxu0 %v522
      %3462 = vmatpush1.msra.mxu0 %v521
      %3463 = vmatprep.subr.mxu0 %v524
      %3464 = vmatpush1.msra.mxu0 %v523
      %3465 = vmatprep.subr.mxu0 %v526
      %3466 = vmatpush1.msra.mxu0 %v525
      %3467 = vmatprep.subr.mxu0 %v528
      %3468 = vmatpush1.msra.mxu0 %v527
      %3469 = vmatprep.subr.mxu0 %v530
      %3470 = vmatpush1.msra.mxu0 %v529
      %3471 = vmatprep.subr.mxu0 %v532
      %3472 = vmatpush1.msra.mxu0 %v531
      %3473 = vmatprep.mubr.f32.mxu0 %v3403
      %3474 = vmatmul.mubr.f32.gmra.mrb[0].mxu0 %v3401
      %v3475 = vpop.f32.mrb[0].mxu0
      %v3476 = vadd.f32 0.0, %v3475
      %v3477 = vpop.f32.mrb[0].mxu0
      %v3478 = vadd.f32 0.0, %v3477
      %3479 = vmatprep.mubr.f32.mxu0 %v3407
      %3480 = vmatmul.mubr.f32.gmra.mrb[0].mxu0 %v3405
      %v3481 = vpop.f32.mrb[0].mxu0
      %v3482 = vadd.f32 0.0, %v3481
      %v3483 = vpop.f32.mrb[0].mxu0
      %v3484 = vadd.f32 0.0, %v3483
      %3485 = vdwg.mxu0
      %v3486 = vsub.f32 %v3401, %v3476
      %v3487 = vsub.f32 %v3403, %v3478
      %v3488 = vsub.f32 %v3405, %v3482
      %v3489 = vsub.f32 %v3407, %v3484
      %v3490 = vmul.f32 %v3486, %v3486
      %v3491 = vmul.f32 %v3487, %v3487
      %v3492 = vmul.f32 %v3488, %v3488
      %v3493 = vmul.f32 %v3489, %v3489
      %3494 = vmatprep.subr.mxu0 %v470
      %3495 = vmatpush1.msra.mxu0 %v469
      %3496 = vmatprep.subr.mxu0 %v472
      %3497 = vmatpush1.msra.mxu0 %v471
      %3498 = vmatprep.subr.mxu0 %v474
      %3499 = vmatpush1.msra.mxu0 %v473
      %3500 = vmatprep.subr.mxu0 %v476
      %3501 = vmatpush1.msra.mxu0 %v475
      %3502 = vmatprep.subr.mxu0 %v478
      %3503 = vmatpush1.msra.mxu0 %v477
      %3504 = vmatprep.subr.mxu0 %v480
      %3505 = vmatpush1.msra.mxu0 %v479
      %3506 = vmatprep.subr.mxu0 %v482
      %3507 = vmatpush1.msra.mxu0 %v481
      %3508 = vmatprep.subr.mxu0 %v484
      %3509 = vmatpush1.msra.mxu0 %v483
      %3510 = vmatprep.subr.mxu0 %v486
      %3511 = vmatpush1.msra.mxu0 %v485
      %3512 = vmatprep.subr.mxu0 %v488
      %3513 = vmatpush1.msra.mxu0 %v487
      %3514 = vmatprep.subr.mxu0 %v490
      %3515 = vmatpush1.msra.mxu0 %v489
      %3516 = vmatprep.subr.mxu0 %v492
      %3517 = vmatpush1.msra.mxu0 %v491
      %3518 = vmatprep.subr.mxu0 %v494
      %3519 = vmatpush1.msra.mxu0 %v493
      %3520 = vmatprep.subr.mxu0 %v496
      %3521 = vmatpush1.msra.mxu0 %v495
      %3522 = vmatprep.subr.mxu0 %v498
      %3523 = vmatpush1.msra.mxu0 %v497
      %3524 = vmatprep.subr.mxu0 %v500
      %3525 = vmatpush1.msra.mxu0 %v499
      %3526 = vmatprep.subr.mxu0 %v502
      %3527 = vmatpush1.msra.mxu0 %v501
      %3528 = vmatprep.subr.mxu0 %v504
      %3529 = vmatpush1.msra.mxu0 %v503
      %3530 = vmatprep.subr.mxu0 %v506
      %3531 = vmatpush1.msra.mxu0 %v505
      %3532 = vmatprep.subr.mxu0 %v508
      %3533 = vmatpush1.msra.mxu0 %v507
      %3534 = vmatprep.subr.mxu0 %v510
      %3535 = vmatpush1.msra.mxu0 %v509
      %3536 = vmatprep.subr.mxu0 %v512
      %3537 = vmatpush1.msra.mxu0 %v511
      %3538 = vmatprep.subr.mxu0 %v514
      %3539 = vmatpush1.msra.mxu0 %v513
      %3540 = vmatprep.subr.mxu0 %v516
      %3541 = vmatpush1.msra.mxu0 %v515
      %3542 = vmatprep.subr.mxu0 %v518
      %3543 = vmatpush1.msra.mxu0 %v517
      %3544 = vmatprep.subr.mxu0 %v520
      %3545 = vmatpush1.msra.mxu0 %v519
      %3546 = vmatprep.subr.mxu0 %v522
      %3547 = vmatpush1.msra.mxu0 %v521
      %3548 = vmatprep.subr.mxu0 %v524
      %3549 = vmatpush1.msra.mxu0 %v523
      %3550 = vmatprep.subr.mxu0 %v526
      %3551 = vmatpush1.msra.mxu0 %v525
      %3552 = vmatprep.subr.mxu0 %v528
      %3553 = vmatpush1.msra.mxu0 %v527
      %3554 = vmatprep.subr.mxu0 %v530
      %3555 = vmatpush1.msra.mxu0 %v529
      %3556 = vmatprep.subr.mxu0 %v532
      %3557 = vmatpush1.msra.mxu0 %v531
      %3558 = vmatprep.mubr.f32.mxu0 %v3491
      %3559 = vmatmul.mubr.f32.gmra.mrb[0].mxu0 %v3490
      %v3560 = vpop.f32.mrb[0].mxu0
      %v3561 = vadd.f32 1e-05, %v3560
      %v3562 = vpop.f32.mrb[0].mxu0
      %v3563 = vadd.f32 1e-05, %v3562
      %3564 = vmatprep.mubr.f32.mxu0 %v3493
      %3565 = vmatmul.mubr.f32.gmra.mrb[0].mxu0 %v3492
      %v3566 = vpop.f32.mrb[0].mxu0
      %v3567 = vadd.f32 1e-05, %v3566
      %v3568 = vpop.f32.mrb[0].mxu0
      %v3569 = vadd.f32 1e-05, %v3568
      %3570 = vdwg.mxu0
      %v3571 = vrsqrt.pop %v3561
      %v3572 = vrsqrt.pop %v3563
      %v3573 = vrsqrt.pop %v3567
      %v3574 = vrsqrt.pop %v3569
      %v3575 = vmul.f32 %v3486, %v3571
      %v3576 = vmul.f32 %v3487, %v3572
      %v3577 = vmul.f32 %v3488, %v3573
      %v3578 = vmul.f32 %v3489, %v3574
      %v3579 = vmul.f32 %v2069, 1000000.0
      %v3580 = vmul.f32 %v2070, 1000000.0
      %v3581 = vmul.f32 %v2071, 1000000.0
      %v3582 = vmul.f32 %v2072, 1000000.0
      %v3583 = vadd.f32 %v3575, %v3579
      %v3584 = vadd.f32 %v3576, %v3580
      %v3585 = vadd.f32 %v3577, %v3581
      %v3586 = vadd.f32 %v3578, %v3582
      %v3587 = vmax.f32 %v3583, 0.0
      %v3588 = vmax.f32 %v3584, 0.0
      %v3589 = vmax.f32 %v3585, 0.0
      %v3590 = vmax.f32 %v3586, 0.0
      %v3591 = vmul.f32 %v3587, %v2064
      %v3592 = vmul.f32 %v3588, %v2064
      %v3593 = vmul.f32 %v3589, %v2064
      %v3594 = vmul.f32 %v3590, %v2064
      %v3595 = vfloor.f32 %v3591
      %v3596 = vfloor.f32 %v3592
      %v3597 = vfloor.f32 %v3593
      %v3598 = vfloor.f32 %v3594
      %v3599 = vmul.f32 %v3595, %v2064
      %v3600 = vmul.f32 %v3596, %v2064
      %v3601 = vmul.f32 %v3597, %v2064
      %v3602 = vmul.f32 %v3598, %v2064
      %v3603 = vfloor.f32 %v3599
      %v3604 = vfloor.f32 %v3600
      %v3605 = vfloor.f32 %v3601
      %v3606 = vfloor.f32 %v3602
      %3607 = vst [vmem:[%s467] sm:$0xff] %v3603
      %3608 = vst [vmem:[%s467 + $0x8] sm:$0xff] %v3604
      %3609 = vst [vmem:[%s467 + $0x10] sm:$0xff] %v3605
      %3610 = vst [vmem:[%s467 + $0x18] sm:$0xff] %v3606
      %p3611 = scmp.lt.s32.totalorder %s25, 1
      %s3612 = scalar_select %p3611, %s25, 1
      %s3613 = smul.addr %s3612, 4
      %s3614 = smul.addr %s3613, 8
      %s3615 = scalar_lea.vmem %s14, %s3614
      // Predicated region
      $region77: #{transformer_model_forward.1} parent=75 // pred_check
        %p3616 = pneg %p342
      $region78: #{transformer_model_forward.1} parent=75 // pred_check_branch
        %3618 = sbr.rel (%p3616) target = $region80
      $region79: #{transformer_model_forward.1} parent=75 // pred_region
        _
      $region80: #{transformer_model_forward.1} parent=75 // pred_fallthru
        _
    $region76: #{transformer_model_forward.1} parent=5 // pred_fallthru
      _
    %p3619 = scmp.le.s32.totalorder 2, %s20
    // Predicated region
    $region81: #{transformer_model_forward.1} parent=5 // pred_check
      %p3620 = pneg %p3619
    $region82: #{transformer_model_forward.1} parent=5 // pred_check_branch
      %3622 = sbr.rel (%p3620) target = $region84
    $region83: #{transformer_model_forward.1} parent=5 // pred_region
      %s3623 = ssub.s32 %s20, 2
      // Predicated region
      $region85: #{transformer_model_forward.1} parent=83 // pred_check
        %p3624 = pneg %p348
      $region86: #{transformer_model_forward.1} parent=83 // pred_check_branch
        %3626 = sbr.rel (%p3624) target = $region88
      $region87: #{transformer_model_forward.1} parent=83 // pred_region
        %p3627 = scmp.lt.s32.totalorder %s26, 1
        %s3628 = scalar_select %p3627, %s26, 1
        %s3629 = smul.addr %s3628, 4
        %s3630 = smul.addr %s3629, 8
        %s3631 = scalar_lea.vmem %s14, %s3630
      $region88: #{transformer_model_forward.1} parent=83 // pred_fallthru
        _
    $region84: #{transformer_model_forward.1} parent=5 // pred_fallthru
      _
  $region6: #{transformer_model_forward.1} parent=0 // loop_footer
    %s24 = sadd.s32 1, %s20
  $region7: #{transformer_model_forward.1} parent=0 // loop_footer_branch
    %19 = sbr.rel target = $region3
  $region8: #{transformer_model_forward.1} parent=0 // loop_exit
    _

</llo_original>
